<compile_context>
chip_gen: v7x
topology: tpu7x:2x2x1
jax: 0.10.0
libtpu: 0.0.40
codegen_flags: <defaults>
</compile_context>

<pallas_src>
import math

import jax
import jax.numpy as jnp
from jax import lax
from jax.experimental import pallas as pl
from jax.experimental.pallas import tpu as pltpu


# ----------------------------- in-kernel helpers -----------------------------

def _layernorm(x, w, b, eps=1e-5):
    mu = jnp.mean(x, axis=-1, keepdims=True)
    xc = x - mu
    var = jnp.mean(xc * xc, axis=-1, keepdims=True)
    return xc * lax.rsqrt(var + eps) * w + b


def _sigmoid(x):
    # exact sigmoid (per correctness review: no approx reciprocal in the gates)
    return 1.0 / (1.0 + jnp.exp(-x))


def _silu(x):
    return x * _sigmoid(x)


def _softplus(x):
    xs = jnp.minimum(x, 20.0)
    return jnp.where(x > 20.0, x, jnp.log(1.0 + jnp.exp(xs)))


def _erf(x):
    # TODO(synk): exact-GELU erf via Abramowitz&Stegun 7.1.26 (|err| < 1.5e-7);
    # lax.erf has no guaranteed Mosaic lowering.
    a1, a2, a3, a4, a5 = 0.254829592, -0.284496736, 1.421413741, -1.453152027, 1.061405429
    p = 0.3275911
    s = jnp.where(x >= 0.0, 1.0, -1.0)
    ax = jnp.abs(x)
    t = 1.0 / (1.0 + p * ax)
    poly = ((((a5 * t + a4) * t + a3) * t + a2) * t + a1) * t
    return s * (1.0 - poly * jnp.exp(-ax * ax))


def _gelu_exact(x):
    return 0.5 * x * (1.0 + _erf(x * (1.0 / math.sqrt(2.0))))


# ---------------- fused kernel: Mamba layer stack + final head ----------------

def _mol_encoder_kernel(emb_ref, mask_ref,
                        lnw_ref, lnb_ref, win_ref, cw_ref, cb_ref,
                        wxf_ref, dtb_ref, alog_ref, dp_ref, wo_ref,
                        nfw_ref, nfb_ref, we_ref, be_ref, lfw_ref, lfb_ref,
                        wh_ref,
                        logits_ref, emb_out_ref, pool_ref,
                        hid_scr, res_scr, dA_scr, dBu_scr, c_scr, y_scr):
    Bt, L, D = hid_scr.shape
    K = cw_ref.shape[1]
    E = cw_ref.shape[2]
    NE = alog_ref.shape[2]
    N = NE // E
    V = wh_ref.shape[1]
    M = Bt * L

    layer = pl.program_id(1)
    n_layers = pl.num_programs(1)

    # ---- start of a new batch tile: load embedding, zero residual ----
    @pl.when(layer == 0)
    def _():
        hid_scr[...] = emb_ref[...]
        res_scr[...] = jnp.zeros_like(res_scr)

    # pre-norm Block semantics: residual = hidden + residual; x = LN(residual)
    resid = hid_scr[...] + res_scr[...]                           # (Bt, L, D)
    res_scr[...] = resid
    xn = _layernorm(resid.reshape(M, D), lnw_ref[0], lnb_ref[0])  # (M, D)

    # fused in_proj (lane-dense 2E output), bf16 on the MXU, f32 accumulate
    xz = jnp.dot(xn.astype(win_ref.dtype), win_ref[0],
                 preferred_element_type=jnp.float32)              # (M, 2E)
    x = xz[:, :E]
    z = xz[:, E:]

    # causal depthwise conv along seq: K shifted adds (roll + hoisted pos mask)
    cwv = cw_ref[0]                                               # (K, E)
    tpos = lax.broadcasted_iota(jnp.int32, (Bt, L, 1), 1).reshape(M, 1)
    xc = x * cwv[K - 1:K, :]                                      # shift-0 tap
    for k in range(K - 1):                                        # static, K = d_conv
        s = K - 1 - k
        xs = pltpu.roll(x, shift=s, axis=0)
        xs = jnp.where(tpos >= s, xs, 0.0)                        # zero causal pad rows
        xc = xc + xs * cwv[k:k + 1, :]
    xc = _silu(xc + cb_ref[0])                                    # (M, E)

    # fused x_proj (dt_proj folded offline, columns zero-padded to lane-dense P)
    dbc = jnp.dot(xc, wxf_ref[0], preferred_element_type=jnp.float32)  # (M, P)
    dt = _softplus(dbc[:, :E] + dtb_ref[0])                       # (M, E)
    Bm = dbc[:, E:E + N]                                          # (M, N)
    Cm = dbc[:, E + N:E + 2 * N]                                  # (M, N)

    # vectorized scan precompute into lane-dense (Bt, L, N*E) slabs
    A_neg = -jnp.exp(alog_ref[0])                                 # (1, N*E)
    dt_rep = jnp.concatenate([dt] * N, axis=-1)                   # (M, N*E)
    dA_scr[...] = jnp.exp(dt_rep * A_neg).reshape(Bt, L, NE)
    dtu = dt * xc                                                 # (M, E)
    dBu_scr[...] = jnp.concatenate(
        [dtu * Bm[:, n:n + 1] for n in range(N)], axis=-1).reshape(Bt, L, NE)
    c_scr[...] = Cm.reshape(Bt, L, N)

    # serial recurrence: lane-dense FMA on (Bt, 1, N*E) + fused C·h per step
    def step(t, h):
        h = dA_scr[:, pl.ds(t, 1), :] * h + dBu_scr[:, pl.ds(t, 1), :]  # (Bt,1,NE)
        c_t = c_scr[:, pl.ds(t, 1), :]                                  # (Bt,1,N)
        y_t = h[:, :, 0:E] * c_t[:, :, 0:1]
        for n in range(1, N):
            y_t = y_t + h[:, :, n * E:(n + 1) * E] * c_t[:, :, n:n + 1]
        y_scr[:, pl.ds(t, 1), :] = y_t
        return h

    h0 = jnp.zeros((Bt, 1, NE), jnp.float32)
    unroll = 8 if L % 8 == 0 else (4 if L % 4 == 0 else (2 if L % 2 == 0 else 1))
    lax.fori_loop(0, L, step, h0, unroll=unroll)

    # y = C·h + D·u, gate, out_proj
    y = y_scr[...].reshape(M, E) + dp_ref[0] * xc
    y = y * _silu(z)
    out = jnp.dot(y.astype(wo_ref.dtype), wo_ref[0],
                  preferred_element_type=jnp.float32)             # (M, D)
    hid_scr[...] = out.reshape(Bt, L, D)

    # ---- last layer: final norm + masked-mean pooling + LangLayer head ----
    @pl.when(layer == n_layers - 1)
    def _():
        xf = _layernorm((hid_scr[...] + res_scr[...]).reshape(M, D),
                        nfw_ref[...], nfb_ref[...])               # (M, D)
        x3 = xf.reshape(Bt, L, D)
        emb_out_ref[...] = x3

        m = mask_ref[...]                                         # (Bt, L, 1)
        ssum = jnp.sum(x3 * m, axis=1, keepdims=True)             # (Bt, 1, D)
        cnt = jnp.maximum(jnp.sum(m, axis=1, keepdims=True), 1e-9)
        pool_ref[...] = ssum * pl.reciprocal(cnt, approx=True)

        # LangLayer: Linear -> exact GELU -> LayerNorm -> head (no bias)
        e = jnp.dot(xf.astype(we_ref.dtype), we_ref[...],
                    preferred_element_type=jnp.float32) + be_ref[...]
        e = _gelu_exact(e)
        e = _layernorm(e, lfw_ref[...], lfb_ref[...])
        logits = jnp.dot(e.astype(wh_ref.dtype), wh_ref[...],
                         preferred_element_type=jnp.float32)
        logits_ref[...] = logits.reshape(Bt, L, V)


# ------------------------------- pallas wrapper -------------------------------

def _pick_block_batch(B, L, d_model, d_inner, d_state):
    """Heuristic batch tile (perf review):
      * maximize Bt*L (MXU M dimension) within a conservative scratch budget
        that also fits v7x's 64 MiB VMEM,
      * prefer >=2 tiles on the 'parallel' axis (v7x megacore) when that keeps
        Bt*L >= 256 tokens."""
    NE = d_state * d_inner
    per_token = 4 * (2 * NE + d_inner + d_state + 4 * d_model)
    budget = 24 * 1024 * 1024
    bt = 1
    for d in range(B, 0, -1):
        if B % d == 0 and d * L * per_token <= budget:
            bt = d
            break
    if bt == B and B % 2 == 0 and (B // 2) * L >= 256:
        bt = B // 2
    return bt


def _mol_encoder_fused(emb, mask_f, params, block_batch=None):
    B, L, D = emb.shape
    n_layer = params["lnw"].shape[0]
    K = params["cw"].shape[1]
    E = params["cw"].shape[2]
    NE = params["Alog_flat"].shape[2]
    N = NE // E
    P = params["w_xf"].shape[2]
    V = params["lang_head_wT"].shape[1]

    Bt = block_batch if block_batch is not None else _pick_block_batch(B, L, D, E, N)
    assert B % Bt == 0

    bld = pl.BlockSpec((Bt, L, D), lambda bt, l: (bt, 0, 0))
    bl1 = pl.BlockSpec((Bt, L, 1), lambda bt, l: (bt, 0, 0))
    blv = pl.BlockSpec((Bt, L, V), lambda bt, l: (bt, 0, 0))
    b1d = pl.BlockSpec((Bt, 1, D), lambda bt, l: (bt, 0, 0))

    def lspec(shape):                                  # per-layer stacked weight
        nd = len(shape)
        return pl.BlockSpec((1,) + tuple(shape),
                            lambda bt, l, _n=nd: (l,) + (0,) * _n)

    def gspec(shape):                                  # global (unstacked) weight
        nd = len(shape)
        return pl.BlockSpec(tuple(shape), lambda bt, l, _n=nd: (0,) * _n)

    return pl.pallas_call(
        _mol_encoder_kernel,
        out_shape=(jax.ShapeDtypeStruct((B, L, V), jnp.float32),
                   jax.ShapeDtypeStruct((B, L, D), jnp.float32),
                   jax.ShapeDtypeStruct((B, 1, D), jnp.float32)),
        grid=(B // Bt, n_layer),
        in_specs=[bld, bl1,
                  lspec((1, D)), lspec((1, D)), lspec((D, 2 * E)),
                  lspec((K, E)), lspec((1, E)), lspec((E, P)),
                  lspec((1, E)), lspec((1, NE)), lspec((1, E)), lspec((E, D)),
                  gspec((1, D)), gspec((1, D)),
                  gspec((D, D)), gspec((1, D)), gspec((1, D)), gspec((1, D)),
                  gspec((D, V))],
        out_specs=(blv, bld, b1d),
        scratch_shapes=[pltpu.VMEM((Bt, L, D), jnp.float32),    # hidden carry
                        pltpu.VMEM((Bt, L, D), jnp.float32),    # residual carry
                        pltpu.VMEM((Bt, L, NE), jnp.float32),   # dA (lane-dense)
                        pltpu.VMEM((Bt, L, NE), jnp.float32),   # dt*B*u (lane-dense)
                        pltpu.VMEM((Bt, L, N), jnp.float32),    # C coefficients
                        pltpu.VMEM((Bt, L, E), jnp.float32)],   # y = C·h
        compiler_params=pltpu.CompilerParams(
            dimension_semantics=("parallel", "arbitrary"),
            vmem_limit_bytes=48 * 1024 * 1024),
    )(emb, mask_f,
      params["lnw"], params["lnb"], params["w_in"], params["cw"], params["cb"],
      params["w_xf"], params["dtb"], params["Alog_flat"], params["Dp"],
      params["wo"],
      params["norm_f_w"], params["norm_f_b"],
      params["lang_embed_wT"], params["lang_embed_b"],
      params["lang_ln_w"], params["lang_ln_b"],
      params["lang_head_wT"])


# ------------------------ deterministic parameter init ------------------------

def init_params(key, n_vocab=64, d_model=32, n_layer=2, d_state=8, d_conv=4,
                expand=2, dt_rank=2, dt_min=0.001, dt_max=0.1):
    d_inner = expand * d_model
    pad = (-(d_inner + 2 * d_state)) % 128          # lane-pad folded x_proj output
    keys = iter(jax.random.split(key, 8 * n_layer + 8))

    def nrm(shape, scale=0.02):
        return (scale * jax.random.normal(next(keys), shape)).astype(jnp.float32)

    params = {"embedding": nrm((n_vocab, d_model))}
    lnw, lnb, w_in, cw, cb, w_xf, dtb, alogf, Dp, wo = ([] for _ in range(10))
    for _ in range(n_layer):
        w_in_l = nrm((2 * d_inner, d_model))                      # in_proj.weight (2E, D)
        w_x_l = nrm((dt_rank + 2 * d_state, d_inner))             # x_proj.weight (R+2N, E)
        w_dt_l = nrm((d_inner, dt_rank), 0.5)                     # dt_proj.weight (E, R)
        dt = jnp.exp(jax.random.uniform(next(keys), (d_inner,)) *
                     (math.log(dt_max) - math.log(dt_min)) + math.log(dt_min))
        dt = jnp.maximum(dt, 1e-4)
        dt_bias = dt + jnp.log(-jnp.expm1(-dt))                   # inverse softplus
        conv_w = nrm((d_inner, d_conv), 0.2)                      # conv1d.weight (E,1,K)->(E,K)
        conv_b = nrm((1, d_inner))
        A = jnp.tile(jnp.arange(1, d_state + 1, dtype=jnp.float32)[None, :],
                     (d_inner, 1))                                # (E, N)

        # fold dt_proj into x_proj:  dt_lin = xc @ (w_x^T[:, :R] @ w_dt^T)
        w_xT = jnp.transpose(w_x_l)                               # (E, R+2N)
        w_dtT = jnp.transpose(w_dt_l)                             # (R, E)
        w_dt_full = w_xT[:, :dt_rank] @ w_dtT                     # (E, E)
        w_bc = w_xT[:, dt_rank:]                                  # (E, 2N)
        parts = [w_dt_full, w_bc]
        if pad:
            parts.append(jnp.zeros((d_inner, pad), jnp.float32))
        w_xf_l = jnp.concatenate(parts, axis=1)                   # (E, P) lane-dense

        lnw.append(jnp.ones((1, d_model), jnp.float32))
        lnb.append(jnp.zeros((1, d_model), jnp.float32))
        w_in.append(jnp.transpose(w_in_l))                        # (D, 2E): [x | z]
        cw.append(jnp.transpose(conv_w))                          # (K, E)
        cb.append(conv_b)                                         # (1, E)
        w_xf.append(w_xf_l)                                       # (E, P): [dt | B | C | 0]
        dtb.append(dt_bias.reshape(1, d_inner).astype(jnp.float32))
        alogf.append(jnp.transpose(jnp.log(A)).reshape(1, d_state * d_inner))  # (1, N*E)
        Dp.append(jnp.ones((1, d_inner), jnp.float32))
        wo.append(jnp.transpose(nrm((d_model, d_inner))))         # (E, D)

    params.update(
        lnw=jnp.stack(lnw), lnb=jnp.stack(lnb),
        w_in=jnp.stack(w_in).astype(jnp.bfloat16),                # bf16 MXU weights
        cw=jnp.stack(cw), cb=jnp.stack(cb),
        w_xf=jnp.stack(w_xf), dtb=jnp.stack(dtb),
        Alog_flat=jnp.stack(alogf), Dp=jnp.stack(Dp),
        wo=jnp.stack(wo).astype(jnp.bfloat16),
    )
    params["norm_f_w"] = jnp.ones((1, d_model), jnp.float32)
    params["norm_f_b"] = jnp.zeros((1, d_model), jnp.float32)
    params["lang_embed_wT"] = jnp.transpose(nrm((d_model, d_model))).astype(jnp.bfloat16)
    params["lang_embed_b"] = nrm((1, d_model))
    params["lang_ln_w"] = jnp.ones((1, d_model), jnp.float32)
    params["lang_ln_b"] = jnp.zeros((1, d_model), jnp.float32)
    params["lang_head_wT"] = jnp.transpose(nrm((n_vocab, d_model))).astype(jnp.bfloat16)
    return params


# --------------------------------- forward -----------------------------------

def mol_encoder_forward(params, idx, mask=None, inference=False, block_batch=None):
    B, L = idx.shape
    # embedding lookup is glue (gather); everything else runs in the fused kernel
    emb = jnp.take(params["embedding"], idx, axis=0).astype(jnp.float32)   # (B, L, D)
    if mask is None:
        mask_f = jnp.ones((B, L, 1), jnp.float32)
    else:
        mask_f = mask.astype(jnp.float32).reshape(B, L, 1)

    logits, token_emb, pooled = _mol_encoder_fused(emb, mask_f, params,
                                                   block_batch=block_batch)
    if not inference:
        return logits
    return pooled[:, 0, :], token_emb


# ----------------------------------- main -------------------------------------

if __name__ == "__main__":
    B, L = 2, 8
    n_vocab, d_model, n_layer = 64, 32, 2

    root = jax.random.PRNGKey(0)
    kparam, kidx, kmask = jax.random.split(root, 3)

    params = init_params(kparam, n_vocab=n_vocab, d_model=d_model, n_layer=n_layer)

    idx = jax.random.randint(kidx, (B, L), 0, n_vocab, dtype=jnp.int32)
    mask = (jax.random.uniform(kmask, (B, L)) > 0.3).astype(jnp.float32)
    mask = mask.at[:, 0].set(1.0)

    logits = mol_encoder_forward(params, idx)                                   # training path
    pooled, token_emb = mol_encoder_forward(params, idx, mask=mask, inference=True)
    jax.block_until_ready((logits, pooled, token_emb))

    assert logits.shape == (B, L, n_vocab)
    assert token_emb.shape == (B, L, d_model)
    assert pooled.shape == (B, d_model)
    assert bool(jnp.all(jnp.isfinite(logits)))
    assert bool(jnp.all(jnp.isfinite(pooled)))
    print("KERNEL_OK")
</pallas_src>

<mosaic_0001>
module attributes {stable_mosaic.version = 11 : i64} {
  func.func @_mol_encoder_kernel(%arg0: i32, %arg1: i32, %arg2: memref<2x8x32xf32, #tpu.memory_space<vmem>>, %arg3: memref<2x8x1xf32, #tpu.memory_space<vmem>>, %arg4: memref<1x1x32xf32, #tpu.memory_space<vmem>>, %arg5: memref<1x1x32xf32, #tpu.memory_space<vmem>>, %arg6: memref<1x32x128xbf16, #tpu.memory_space<vmem>>, %arg7: memref<1x4x64xf32, #tpu.memory_space<vmem>>, %arg8: memref<1x1x64xf32, #tpu.memory_space<vmem>>, %arg9: memref<1x64x128xf32, #tpu.memory_space<vmem>>, %arg10: memref<1x1x64xf32, #tpu.memory_space<vmem>>, %arg11: memref<1x1x512xf32, #tpu.memory_space<vmem>>, %arg12: memref<1x1x64xf32, #tpu.memory_space<vmem>>, %arg13: memref<1x64x32xbf16, #tpu.memory_space<vmem>>, %arg14: memref<1x32xf32, #tpu.memory_space<vmem>>, %arg15: memref<1x32xf32, #tpu.memory_space<vmem>>, %arg16: memref<32x32xbf16, #tpu.memory_space<vmem>>, %arg17: memref<1x32xf32, #tpu.memory_space<vmem>>, %arg18: memref<1x32xf32, #tpu.memory_space<vmem>>, %arg19: memref<1x32xf32, #tpu.memory_space<vmem>>, %arg20: memref<32x64xbf16, #tpu.memory_space<vmem>>, %arg21: memref<2x8x64xf32, #tpu.memory_space<vmem>>, %arg22: memref<2x8x32xf32, #tpu.memory_space<vmem>>, %arg23: memref<2x1x32xf32, #tpu.memory_space<vmem>>, %arg24: memref<2x8x32xf32, #tpu.memory_space<vmem>>, %arg25: memref<2x8x32xf32, #tpu.memory_space<vmem>>, %arg26: memref<2x8x512xf32, #tpu.memory_space<vmem>>, %arg27: memref<2x8x512xf32, #tpu.memory_space<vmem>>, %arg28: memref<2x8x8xf32, #tpu.memory_space<vmem>>, %arg29: memref<2x8x64xf32, #tpu.memory_space<vmem>>) attributes {dimension_semantics = [#tpu.dimension_semantics<parallel>, #tpu.dimension_semantics<arbitrary>], iteration_bounds = array<i64: 1, 2>, scalar_prefetch = 0 : i64, scratch_operands = 6 : i64, tpu.core_type = #tpu.core_type<tc>, window_params = [{transform_indices = @transform_0, window_bounds = array<i64: 2, 8, 32>}, {transform_indices = @transform_1, window_bounds = array<i64: 2, 8, 1>}, {transform_indices = @transform_2, window_bounds = array<i64: 1, 1, 32>}, {transform_indices = @transform_3, window_bounds = array<i64: 1, 1, 32>}, {transform_indices = @transform_4, window_bounds = array<i64: 1, 32, 128>}, {transform_indices = @transform_5, window_bounds = array<i64: 1, 4, 64>}, {transform_indices = @transform_6, window_bounds = array<i64: 1, 1, 64>}, {transform_indices = @transform_7, window_bounds = array<i64: 1, 64, 128>}, {transform_indices = @transform_8, window_bounds = array<i64: 1, 1, 64>}, {transform_indices = @transform_9, window_bounds = array<i64: 1, 1, 512>}, {transform_indices = @transform_10, window_bounds = array<i64: 1, 1, 64>}, {transform_indices = @transform_11, window_bounds = array<i64: 1, 64, 32>}, {pipeline_mode = #tpu.pipeline_mode<synchronous>, transform_indices = @transform_12, window_bounds = array<i64: 1, 32>}, {pipeline_mode = #tpu.pipeline_mode<synchronous>, transform_indices = @transform_13, window_bounds = array<i64: 1, 32>}, {pipeline_mode = #tpu.pipeline_mode<synchronous>, transform_indices = @transform_14, window_bounds = array<i64: 32, 32>}, {pipeline_mode = #tpu.pipeline_mode<synchronous>, transform_indices = @transform_15, window_bounds = array<i64: 1, 32>}, {pipeline_mode = #tpu.pipeline_mode<synchronous>, transform_indices = @transform_16, window_bounds = array<i64: 1, 32>}, {pipeline_mode = #tpu.pipeline_mode<synchronous>, transform_indices = @transform_17, window_bounds = array<i64: 1, 32>}, {pipeline_mode = #tpu.pipeline_mode<synchronous>, transform_indices = @transform_18, window_bounds = array<i64: 32, 64>}, {transform_indices = @transform_19, window_bounds = array<i64: 2, 8, 64>}, {transform_indices = @transform_20, window_bounds = array<i64: 2, 8, 32>}, {transform_indices = @transform_21, window_bounds = array<i64: 2, 1, 32>}]} {
    %c0_i32 = arith.constant 0 : i32
    %0 = arith.cmpi eq, %arg1, %c0_i32 : i32
    %1 = arith.extui %0 : i1 to i32
    %c0_i32_0 = arith.constant 0 : i32
    %2 = arith.cmpi ne, %1, %c0_i32_0 : i32
    scf.if %2 {
      %c0_148 = arith.constant 0 : index
      %c0_149 = arith.constant 0 : index
      %c0_150 = arith.constant 0 : index
      %568 = vector.load %arg2[%c0_148, %c0_149, %c0_150] : memref<2x8x32xf32, #tpu.memory_space<vmem>>, vector<2x8x32xf32>
      %c0_151 = arith.constant 0 : index
      %c0_152 = arith.constant 0 : index
      %c0_153 = arith.constant 0 : index
      %569 = vector.load %arg24[%c0_151, %c0_152, %c0_153] : memref<2x8x32xf32, #tpu.memory_space<vmem>>, vector<2x8x32xf32>
      tpu.vector_store %arg24[%c0_151, %c0_152, %c0_153], %568 {strides = array<i32>} : memref<2x8x32xf32, #tpu.memory_space<vmem>>, vector<2x8x32xf32>,
      %cst_154 = arith.constant 0.000000e+00 : f32
      %570 = vector.broadcast %cst_154 : f32 to vector<2x8x32xf32>
      %c0_155 = arith.constant 0 : index
      %c0_156 = arith.constant 0 : index
      %c0_157 = arith.constant 0 : index
      %571 = vector.load %arg25[%c0_155, %c0_156, %c0_157] : memref<2x8x32xf32, #tpu.memory_space<vmem>>, vector<2x8x32xf32>
      tpu.vector_store %arg25[%c0_155, %c0_156, %c0_157], %570 {strides = array<i32>} : memref<2x8x32xf32, #tpu.memory_space<vmem>>, vector<2x8x32xf32>,
    } else {
    }
    %c0 = arith.constant 0 : index
    %c0_1 = arith.constant 0 : index
    %c0_2 = arith.constant 0 : index
    %3 = vector.load %arg24[%c0, %c0_1, %c0_2] : memref<2x8x32xf32, #tpu.memory_space<vmem>>, vector<2x8x32xf32>
    %c0_3 = arith.constant 0 : index
    %c0_4 = arith.constant 0 : index
    %c0_5 = arith.constant 0 : index
    %4 = vector.load %arg25[%c0_3, %c0_4, %c0_5] : memref<2x8x32xf32, #tpu.memory_space<vmem>>, vector<2x8x32xf32>
    %5 = arith.addf %3, %4 : vector<2x8x32xf32>
    %c0_6 = arith.constant 0 : index
    %c0_7 = arith.constant 0 : index
    %c0_8 = arith.constant 0 : index
    %6 = vector.load %arg25[%c0_6, %c0_7, %c0_8] : memref<2x8x32xf32, #tpu.memory_space<vmem>>, vector<2x8x32xf32>
    tpu.vector_store %arg25[%c0_6, %c0_7, %c0_8], %5 {strides = array<i32>} : memref<2x8x32xf32, #tpu.memory_space<vmem>>, vector<2x8x32xf32>,
    %7 = vector.shape_cast %5 : vector<2x8x32xf32> to vector<16x32xf32>
    %c0_9 = arith.constant 0 : index
    %c0_10 = arith.constant 0 : index
    %c0_11 = arith.constant 0 : index
    %8 = vector.load %arg4[%c0_9, %c0_10, %c0_11] : memref<1x1x32xf32, #tpu.memory_space<vmem>>, vector<1x1x32xf32>
    %9 = vector.shape_cast %8 : vector<1x1x32xf32> to vector<1x32xf32>
    %c0_12 = arith.constant 0 : index
    %c0_13 = arith.constant 0 : index
    %c0_14 = arith.constant 0 : index
    %10 = vector.load %arg5[%c0_12, %c0_13, %c0_14] : memref<1x1x32xf32, #tpu.memory_space<vmem>>, vector<1x1x32xf32>
    %11 = vector.shape_cast %10 : vector<1x1x32xf32> to vector<1x32xf32>
    %cst = arith.constant dense<0.000000e+00> : vector<16xf32>
    %12 = vector.multi_reduction <add>, %7, %cst [1] : vector<16x32xf32> to vector<16xf32>
    %13 = vector.shape_cast %12 : vector<16xf32> to vector<16x1xf32>
    %cst_15 = arith.constant 3.200000e+01 : f32
    %14 = vector.broadcast %cst_15 : f32 to vector<16x1xf32>
    %15 = arith.divf %13, %14 : vector<16x1xf32>
    %16 = vector.broadcast %15 : vector<16x1xf32> to vector<16x32xf32>
    %17 = arith.subf %7, %16 : vector<16x32xf32>
    %18 = arith.mulf %17, %17 : vector<16x32xf32>
    %cst_16 = arith.constant dense<0.000000e+00> : vector<16xf32>
    %19 = vector.multi_reduction <add>, %18, %cst_16 [1] : vector<16x32xf32> to vector<16xf32>
    %20 = vector.shape_cast %19 : vector<16xf32> to vector<16x1xf32>
    %cst_17 = arith.constant 3.200000e+01 : f32
    %21 = vector.broadcast %cst_17 : f32 to vector<16x1xf32>
    %22 = arith.divf %20, %21 : vector<16x1xf32>
    %cst_18 = arith.constant 9.99999974E-6 : f32
    %23 = vector.broadcast %cst_18 : f32 to vector<16x1xf32>
    %24 = arith.addf %22, %23 : vector<16x1xf32>
    %25 = math.rsqrt %24 : vector<16x1xf32>
    %26 = vector.broadcast %25 : vector<16x1xf32> to vector<16x32xf32>
    %27 = arith.mulf %17, %26 : vector<16x32xf32>
    %28 = vector.broadcast %9 : vector<1x32xf32> to vector<16x32xf32>
    %29 = arith.mulf %27, %28 : vector<16x32xf32>
    %30 = vector.broadcast %11 : vector<1x32xf32> to vector<16x32xf32>
    %31 = arith.addf %29, %30 : vector<16x32xf32>
    %32 = arith.truncf %31 : vector<16x32xf32> to vector<16x32xbf16>
    %c0_19 = arith.constant 0 : index
    %c0_20 = arith.constant 0 : index
    %c0_21 = arith.constant 0 : index
    %33 = vector.load %arg6[%c0_19, %c0_20, %c0_21] : memref<1x32x128xbf16, #tpu.memory_space<vmem>>, vector<1x32x128xbf16>
    %34 = vector.shape_cast %33 : vector<1x32x128xbf16> to vector<32x128xbf16>
    %cst_22 = arith.constant dense<0.000000e+00> : vector<16x128xf32>
    %35 = tpu.matmul %32, %34, %cst_22 {dimension_numbers = #tpu.dot_dimension_numbers<[1], [0], [0], [1], [0, 0, 1, 1], [], []>} : vector<16x32xbf16>, vector<32x128xbf16>, vector<16x128xf32> -> vector<16x128xf32>
    %36 = vector.extract_strided_slice %35 {offsets = [0, 0], sizes = [16, 64], strides = [1, 1]} : vector<16x128xf32> to vector<16x64xf32>
    %37 = vector.extract_strided_slice %35 {offsets = [0, 64], sizes = [16, 64], strides = [1, 1]} : vector<16x128xf32> to vector<16x64xf32>
    %c0_23 = arith.constant 0 : index
    %c0_24 = arith.constant 0 : index
    %c0_25 = arith.constant 0 : index
    %38 = vector.load %arg7[%c0_23, %c0_24, %c0_25] : memref<1x4x64xf32, #tpu.memory_space<vmem>>, vector<1x4x64xf32>
    %39 = vector.shape_cast %38 : vector<1x4x64xf32> to vector<4x64xf32>
    %40 = tpu.iota {dimensions = array<i32: 1>} : vector<2x8x1xi32>
    %41 = vector.shape_cast %40 : vector<2x8x1xi32> to vector<16x1xi32>
    %42 = vector.extract_strided_slice %39 {offsets = [3, 0], sizes = [1, 64], strides = [1, 1]} : vector<4x64xf32> to vector<1x64xf32>
    %43 = vector.broadcast %42 : vector<1x64xf32> to vector<16x64xf32>
    %44 = arith.mulf %36, %43 : vector<16x64xf32>
    %c3_i32 = arith.constant 3 : i32
    %45 = tpu.dynamic_rotate %36 by %c3_i32 dim 0 : vector<16x64xf32>, i32 -> vector<16x64xf32>
    %c3_i32_26 = arith.constant 3 : i32
    %46 = vector.broadcast %c3_i32_26 : i32 to vector<16x1xi32>
    %47 = arith.cmpi sge, %41, %46 : vector<16x1xi32>
    %cst_27 = arith.constant 0.000000e+00 : f32
    %48 = vector.shape_cast %47 : vector<16x1xi1> to vector<16x1xi1>
    %49 = vector.broadcast %48 : vector<16x1xi1> to vector<16x64xi1>
    %50 = vector.broadcast %cst_27 : f32 to vector<16x64xf32>
    %51 = arith.select %49, %45, %50 : vector<16x64xi1>, vector<16x64xf32>
    %52 = vector.extract_strided_slice %39 {offsets = [0, 0], sizes = [1, 64], strides = [1, 1]} : vector<4x64xf32> to vector<1x64xf32>
    %53 = vector.broadcast %52 : vector<1x64xf32> to vector<16x64xf32>
    %54 = arith.mulf %51, %53 : vector<16x64xf32>
    %55 = arith.addf %44, %54 : vector<16x64xf32>
    %c2_i32 = arith.constant 2 : i32
    %56 = tpu.dynamic_rotate %36 by %c2_i32 dim 0 : vector<16x64xf32>, i32 -> vector<16x64xf32>
    %c2_i32_28 = arith.constant 2 : i32
    %57 = vector.broadcast %c2_i32_28 : i32 to vector<16x1xi32>
    %58 = arith.cmpi sge, %41, %57 : vector<16x1xi32>
    %cst_29 = arith.constant 0.000000e+00 : f32
    %59 = vector.shape_cast %58 : vector<16x1xi1> to vector<16x1xi1>
    %60 = vector.broadcast %59 : vector<16x1xi1> to vector<16x64xi1>
    %61 = vector.broadcast %cst_29 : f32 to vector<16x64xf32>
    %62 = arith.select %60, %56, %61 : vector<16x64xi1>, vector<16x64xf32>
    %63 = vector.extract_strided_slice %39 {offsets = [1, 0], sizes = [1, 64], strides = [1, 1]} : vector<4x64xf32> to vector<1x64xf32>
    %64 = vector.broadcast %63 : vector<1x64xf32> to vector<16x64xf32>
    %65 = arith.mulf %62, %64 : vector<16x64xf32>
    %66 = arith.addf %55, %65 : vector<16x64xf32>
    %c1_i32 = arith.constant 1 : i32
    %67 = tpu.dynamic_rotate %36 by %c1_i32 dim 0 : vector<16x64xf32>, i32 -> vector<16x64xf32>
    %c1_i32_30 = arith.constant 1 : i32
    %68 = vector.broadcast %c1_i32_30 : i32 to vector<16x1xi32>
    %69 = arith.cmpi sge, %41, %68 : vector<16x1xi32>
    %cst_31 = arith.constant 0.000000e+00 : f32
    %70 = vector.shape_cast %69 : vector<16x1xi1> to vector<16x1xi1>
    %71 = vector.broadcast %70 : vector<16x1xi1> to vector<16x64xi1>
    %72 = vector.broadcast %cst_31 : f32 to vector<16x64xf32>
    %73 = arith.select %71, %67, %72 : vector<16x64xi1>, vector<16x64xf32>
    %74 = vector.extract_strided_slice %39 {offsets = [2, 0], sizes = [1, 64], strides = [1, 1]} : vector<4x64xf32> to vector<1x64xf32>
    %75 = vector.broadcast %74 : vector<1x64xf32> to vector<16x64xf32>
    %76 = arith.mulf %73, %75 : vector<16x64xf32>
    %77 = arith.addf %66, %76 : vector<16x64xf32>
    %c0_32 = arith.constant 0 : index
    %c0_33 = arith.constant 0 : index
    %c0_34 = arith.constant 0 : index
    %78 = vector.load %arg8[%c0_32, %c0_33, %c0_34] : memref<1x1x64xf32, #tpu.memory_space<vmem>>, vector<1x1x64xf32>
    %79 = vector.shape_cast %78 : vector<1x1x64xf32> to vector<1x64xf32>
    %80 = vector.broadcast %79 : vector<1x64xf32> to vector<16x64xf32>
    %81 = arith.addf %77, %80 : vector<16x64xf32>
    %cst_35 = arith.constant 0.000000e+00 : f32
    %82 = vector.broadcast %cst_35 : f32 to vector<16x64xf32>
    %83 = arith.subf %82, %81 : vector<16x64xf32>
    %84 = math.exp %83 : vector<16x64xf32>
    %cst_36 = arith.constant 1.000000e+00 : f32
    %85 = vector.broadcast %cst_36 : f32 to vector<16x64xf32>
    %86 = arith.addf %85, %84 : vector<16x64xf32>
    %cst_37 = arith.constant 1.000000e+00 : f32
    %87 = vector.broadcast %cst_37 : f32 to vector<16x64xf32>
    %88 = arith.divf %87, %86 : vector<16x64xf32>
    %89 = arith.mulf %81, %88 : vector<16x64xf32>
    %c0_38 = arith.constant 0 : index
    %c0_39 = arith.constant 0 : index
    %c0_40 = arith.constant 0 : index
    %90 = vector.load %arg9[%c0_38, %c0_39, %c0_40] : memref<1x64x128xf32, #tpu.memory_space<vmem>>, vector<1x64x128xf32>
    %91 = vector.shape_cast %90 : vector<1x64x128xf32> to vector<64x128xf32>
    %cst_41 = arith.constant dense<0.000000e+00> : vector<16x128xf32>
    %92 = tpu.matmul %89, %91, %cst_41 {dimension_numbers = #tpu.dot_dimension_numbers<[1], [0], [0], [1], [0, 0, 1, 1], [], []>} : vector<16x64xf32>, vector<64x128xf32>, vector<16x128xf32> -> vector<16x128xf32>
    %93 = vector.extract_strided_slice %92 {offsets = [0, 0], sizes = [16, 64], strides = [1, 1]} : vector<16x128xf32> to vector<16x64xf32>
    %c0_42 = arith.constant 0 : index
    %c0_43 = arith.constant 0 : index
    %c0_44 = arith.constant 0 : index
    %94 = vector.load %arg10[%c0_42, %c0_43, %c0_44] : memref<1x1x64xf32, #tpu.memory_space<vmem>>, vector<1x1x64xf32>
    %95 = vector.shape_cast %94 : vector<1x1x64xf32> to vector<1x64xf32>
    %96 = vector.broadcast %95 : vector<1x64xf32> to vector<16x64xf32>
    %97 = arith.addf %93, %96 : vector<16x64xf32>
    %cst_45 = arith.constant 2.000000e+01 : f32
    %98 = vector.broadcast %cst_45 : f32 to vector<16x64xf32>
    %99 = arith.minimumf %97, %98 : vector<16x64xf32>
    %cst_46 = arith.constant 2.000000e+01 : f32
    %100 = vector.broadcast %cst_46 : f32 to vector<16x64xf32>
    %101 = arith.cmpf ogt, %97, %100 : vector<16x64xf32>
    %102 = math.exp %99 : vector<16x64xf32>
    %cst_47 = arith.constant 1.000000e+00 : f32
    %103 = vector.broadcast %cst_47 : f32 to vector<16x64xf32>
    %104 = arith.addf %103, %102 : vector<16x64xf32>
    %105 = math.log %104 : vector<16x64xf32>
    %106 = arith.select %101, %97, %105 : vector<16x64xi1>, vector<16x64xf32>
    %107 = vector.extract_strided_slice %92 {offsets = [0, 64], sizes = [16, 8], strides = [1, 1]} : vector<16x128xf32> to vector<16x8xf32>
    %108 = vector.extract_strided_slice %92 {offsets = [0, 72], sizes = [16, 8], strides = [1, 1]} : vector<16x128xf32> to vector<16x8xf32>
    %c0_48 = arith.constant 0 : index
    %c0_49 = arith.constant 0 : index
    %c0_50 = arith.constant 0 : index
    %109 = vector.load %arg11[%c0_48, %c0_49, %c0_50] : memref<1x1x512xf32, #tpu.memory_space<vmem>>, vector<1x1x512xf32>
    %110 = vector.shape_cast %109 : vector<1x1x512xf32> to vector<1x512xf32>
    %111 = math.exp %110 : vector<1x512xf32>
    %cst_51 = arith.constant 0.000000e+00 : f32
    %112 = vector.broadcast %cst_51 : f32 to vector<1x512xf32>
    %113 = arith.subf %112, %111 : vector<1x512xf32>
    %114 = tpu.concatenate %106, %106, %106, %106, %106, %106, %106, %106 in 1 : vector<16x64xf32>, vector<16x64xf32>, vector<16x64xf32>, vector<16x64xf32>, vector<16x64xf32>, vector<16x64xf32>, vector<16x64xf32>, vector<16x64xf32> -> vector<16x512xf32>
    %115 = vector.broadcast %113 : vector<1x512xf32> to vector<16x512xf32>
    %116 = arith.mulf %114, %115 : vector<16x512xf32>
    %117 = math.exp %116 : vector<16x512xf32>
    %118 = vector.shape_cast %117 : vector<16x512xf32> to vector<2x8x512xf32>
    %c0_52 = arith.constant 0 : index
    %c0_53 = arith.constant 0 : index
    %c0_54 = arith.constant 0 : index
    %119 = vector.load %arg26[%c0_52, %c0_53, %c0_54] : memref<2x8x512xf32, #tpu.memory_space<vmem>>, vector<2x8x512xf32>
    tpu.vector_store %arg26[%c0_52, %c0_53, %c0_54], %118 {strides = array<i32>} : memref<2x8x512xf32, #tpu.memory_space<vmem>>, vector<2x8x512xf32>,
    %120 = arith.mulf %106, %89 : vector<16x64xf32>
    %121 = vector.extract_strided_slice %107 {offsets = [0, 0], sizes = [16, 1], strides = [1, 1]} : vector<16x8xf32> to vector<16x1xf32>
    %122 = vector.broadcast %121 : vector<16x1xf32> to vector<16x64xf32>
    %123 = arith.mulf %120, %122 : vector<16x64xf32>
    %124 = vector.extract_strided_slice %107 {offsets = [0, 1], sizes = [16, 1], strides = [1, 1]} : vector<16x8xf32> to vector<16x1xf32>
    %125 = vector.broadcast %124 : vector<16x1xf32> to vector<16x64xf32>
    %126 = arith.mulf %120, %125 : vector<16x64xf32>
    %127 = vector.extract_strided_slice %107 {offsets = [0, 2], sizes = [16, 1], strides = [1, 1]} : vector<16x8xf32> to vector<16x1xf32>
    %128 = vector.broadcast %127 : vector<16x1xf32> to vector<16x64xf32>
    %129 = arith.mulf %120, %128 : vector<16x64xf32>
    %130 = vector.extract_strided_slice %107 {offsets = [0, 3], sizes = [16, 1], strides = [1, 1]} : vector<16x8xf32> to vector<16x1xf32>
    %131 = vector.broadcast %130 : vector<16x1xf32> to vector<16x64xf32>
    %132 = arith.mulf %120, %131 : vector<16x64xf32>
    %133 = vector.extract_strided_slice %107 {offsets = [0, 4], sizes = [16, 1], strides = [1, 1]} : vector<16x8xf32> to vector<16x1xf32>
    %134 = vector.broadcast %133 : vector<16x1xf32> to vector<16x64xf32>
    %135 = arith.mulf %120, %134 : vector<16x64xf32>
    %136 = vector.extract_strided_slice %107 {offsets = [0, 5], sizes = [16, 1], strides = [1, 1]} : vector<16x8xf32> to vector<16x1xf32>
    %137 = vector.broadcast %136 : vector<16x1xf32> to vector<16x64xf32>
    %138 = arith.mulf %120, %137 : vector<16x64xf32>
    %139 = vector.extract_strided_slice %107 {offsets = [0, 6], sizes = [16, 1], strides = [1, 1]} : vector<16x8xf32> to vector<16x1xf32>
    %140 = vector.broadcast %139 : vector<16x1xf32> to vector<16x64xf32>
    %141 = arith.mulf %120, %140 : vector<16x64xf32>
    %142 = vector.extract_strided_slice %107 {offsets = [0, 7], sizes = [16, 1], strides = [1, 1]} : vector<16x8xf32> to vector<16x1xf32>
    %143 = vector.broadcast %142 : vector<16x1xf32> to vector<16x64xf32>
    %144 = arith.mulf %120, %143 : vector<16x64xf32>
    %145 = tpu.concatenate %123, %126, %129, %132, %135, %138, %141, %144 in 1 : vector<16x64xf32>, vector<16x64xf32>, vector<16x64xf32>, vector<16x64xf32>, vector<16x64xf32>, vector<16x64xf32>, vector<16x64xf32>, vector<16x64xf32> -> vector<16x512xf32>
    %146 = vector.shape_cast %145 : vector<16x512xf32> to vector<2x8x512xf32>
    %c0_55 = arith.constant 0 : index
    %c0_56 = arith.constant 0 : index
    %c0_57 = arith.constant 0 : index
    %147 = vector.load %arg27[%c0_55, %c0_56, %c0_57] : memref<2x8x512xf32, #tpu.memory_space<vmem>>, vector<2x8x512xf32>
    tpu.vector_store %arg27[%c0_55, %c0_56, %c0_57], %146 {strides = array<i32>} : memref<2x8x512xf32, #tpu.memory_space<vmem>>, vector<2x8x512xf32>,
    %148 = vector.shape_cast %108 : vector<16x8xf32> to vector<2x8x8xf32>
    %c0_58 = arith.constant 0 : index
    %c0_59 = arith.constant 0 : index
    %c0_60 = arith.constant 0 : index
    %149 = vector.load %arg28[%c0_58, %c0_59, %c0_60] : memref<2x8x8xf32, #tpu.memory_space<vmem>>, vector<2x8x8xf32>
    tpu.vector_store %arg28[%c0_58, %c0_59, %c0_60], %148 {strides = array<i32>} : memref<2x8x8xf32, #tpu.memory_space<vmem>>, vector<2x8x8xf32>,
    %cst_61 = arith.constant 0.000000e+00 : f32
    %150 = vector.broadcast %cst_61 : f32 to vector<2x1x512xf32>
    %c0_i32_62 = arith.constant 0 : i32
    %c0_63 = arith.constant 0 : index
    %151 = arith.index_cast %c0_i32_62 : i32 to index
    %c0_64 = arith.constant 0 : index
    %152 = vector.load %arg26[%c0_63, %151, %c0_64] : memref<2x8x512xf32, #tpu.memory_space<vmem>>, vector<2x1x512xf32>
    %153 = arith.mulf %152, %150 : vector<2x1x512xf32>
    %c0_65 = arith.constant 0 : index
    %154 = arith.index_cast %c0_i32_62 : i32 to index
    %c0_66 = arith.constant 0 : index
    %155 = vector.load %arg27[%c0_65, %154, %c0_66] : memref<2x8x512xf32, #tpu.memory_space<vmem>>, vector<2x1x512xf32>
    %156 = arith.addf %153, %155 : vector<2x1x512xf32>
    %c0_67 = arith.constant 0 : index
    %157 = arith.index_cast %c0_i32_62 : i32 to index
    %c0_68 = arith.constant 0 : index
    %158 = vector.load %arg28[%c0_67, %157, %c0_68] : memref<2x8x8xf32, #tpu.memory_space<vmem>>, vector<2x1x8xf32>
    %159 = vector.extract_strided_slice %156 {offsets = [0, 0, 0], sizes = [2, 1, 64], strides = [1, 1, 1]} : vector<2x1x512xf32> to vector<2x1x64xf32>
    %160 = vector.extract_strided_slice %158 {offsets = [0, 0, 0], sizes = [2, 1, 1], strides = [1, 1, 1]} : vector<2x1x8xf32> to vector<2x1x1xf32>
    %161 = vector.broadcast %160 : vector<2x1x1xf32> to vector<2x1x64xf32>
    %162 = arith.mulf %159, %161 : vector<2x1x64xf32>
    %163 = vector.extract_strided_slice %156 {offsets = [0, 0, 64], sizes = [2, 1, 64], strides = [1, 1, 1]} : vector<2x1x512xf32> to vector<2x1x64xf32>
    %164 = vector.extract_strided_slice %158 {offsets = [0, 0, 1], sizes = [2, 1, 1], strides = [1, 1, 1]} : vector<2x1x8xf32> to vector<2x1x1xf32>
    %165 = vector.broadcast %164 : vector<2x1x1xf32> to vector<2x1x64xf32>
    %166 = arith.mulf %163, %165 : vector<2x1x64xf32>
    %167 = arith.addf %162, %166 : vector<2x1x64xf32>
    %168 = vector.extract_strided_slice %156 {offsets = [0, 0, 128], sizes = [2, 1, 64], strides = [1, 1, 1]} : vector<2x1x512xf32> to vector<2x1x64xf32>
    %169 = vector.extract_strided_slice %158 {offsets = [0, 0, 2], sizes = [2, 1, 1], strides = [1, 1, 1]} : vector<2x1x8xf32> to vector<2x1x1xf32>
    %170 = vector.broadcast %169 : vector<2x1x1xf32> to vector<2x1x64xf32>
    %171 = arith.mulf %168, %170 : vector<2x1x64xf32>
    %172 = arith.addf %167, %171 : vector<2x1x64xf32>
    %173 = vector.extract_strided_slice %156 {offsets = [0, 0, 192], sizes = [2, 1, 64], strides = [1, 1, 1]} : vector<2x1x512xf32> to vector<2x1x64xf32>
    %174 = vector.extract_strided_slice %158 {offsets = [0, 0, 3], sizes = [2, 1, 1], strides = [1, 1, 1]} : vector<2x1x8xf32> to vector<2x1x1xf32>
    %175 = vector.broadcast %174 : vector<2x1x1xf32> to vector<2x1x64xf32>
    %176 = arith.mulf %173, %175 : vector<2x1x64xf32>
    %177 = arith.addf %172, %176 : vector<2x1x64xf32>
    %178 = vector.extract_strided_slice %156 {offsets = [0, 0, 256], sizes = [2, 1, 64], strides = [1, 1, 1]} : vector<2x1x512xf32> to vector<2x1x64xf32>
    %179 = vector.extract_strided_slice %158 {offsets = [0, 0, 4], sizes = [2, 1, 1], strides = [1, 1, 1]} : vector<2x1x8xf32> to vector<2x1x1xf32>
    %180 = vector.broadcast %179 : vector<2x1x1xf32> to vector<2x1x64xf32>
    %181 = arith.mulf %178, %180 : vector<2x1x64xf32>
    %182 = arith.addf %177, %181 : vector<2x1x64xf32>
    %183 = vector.extract_strided_slice %156 {offsets = [0, 0, 320], sizes = [2, 1, 64], strides = [1, 1, 1]} : vector<2x1x512xf32> to vector<2x1x64xf32>
    %184 = vector.extract_strided_slice %158 {offsets = [0, 0, 5], sizes = [2, 1, 1], strides = [1, 1, 1]} : vector<2x1x8xf32> to vector<2x1x1xf32>
    %185 = vector.broadcast %184 : vector<2x1x1xf32> to vector<2x1x64xf32>
    %186 = arith.mulf %183, %185 : vector<2x1x64xf32>
    %187 = arith.addf %182, %186 : vector<2x1x64xf32>
    %188 = vector.extract_strided_slice %156 {offsets = [0, 0, 384], sizes = [2, 1, 64], strides = [1, 1, 1]} : vector<2x1x512xf32> to vector<2x1x64xf32>
    %189 = vector.extract_strided_slice %158 {offsets = [0, 0, 6], sizes = [2, 1, 1], strides = [1, 1, 1]} : vector<2x1x8xf32> to vector<2x1x1xf32>
    %190 = vector.broadcast %189 : vector<2x1x1xf32> to vector<2x1x64xf32>
    %191 = arith.mulf %188, %190 : vector<2x1x64xf32>
    %192 = arith.addf %187, %191 : vector<2x1x64xf32>
    %193 = vector.extract_strided_slice %156 {offsets = [0, 0, 448], sizes = [2, 1, 64], strides = [1, 1, 1]} : vector<2x1x512xf32> to vector<2x1x64xf32>
    %194 = vector.extract_strided_slice %158 {offsets = [0, 0, 7], sizes = [2, 1, 1], strides = [1, 1, 1]} : vector<2x1x8xf32> to vector<2x1x1xf32>
    %195 = vector.broadcast %194 : vector<2x1x1xf32> to vector<2x1x64xf32>
    %196 = arith.mulf %193, %195 : vector<2x1x64xf32>
    %197 = arith.addf %192, %196 : vector<2x1x64xf32>
    %c0_69 = arith.constant 0 : index
    %198 = arith.index_cast %c0_i32_62 : i32 to index
    %c0_70 = arith.constant 0 : index
    %199 = vector.load %arg29[%c0_69, %198, %c0_70] : memref<2x8x64xf32, #tpu.memory_space<vmem>>, vector<2x1x64xf32>
    tpu.vector_store %arg29[%c0_69, %198, %c0_70], %197 {strides = array<i32>} : memref<2x8x64xf32, #tpu.memory_space<vmem>>, vector<2x1x64xf32>,
    %c1_i32_71 = arith.constant 1 : i32
    %c0_72 = arith.constant 0 : index
    %200 = arith.index_cast %c1_i32_71 : i32 to index
    %c0_73 = arith.constant 0 : index
    %201 = vector.load %arg26[%c0_72, %200, %c0_73] : memref<2x8x512xf32, #tpu.memory_space<vmem>>, vector<2x1x512xf32>
    %202 = arith.mulf %201, %156 : vector<2x1x512xf32>
    %c0_74 = arith.constant 0 : index
    %203 = arith.index_cast %c1_i32_71 : i32 to index
    %c0_75 = arith.constant 0 : index
    %204 = vector.load %arg27[%c0_74, %203, %c0_75] : memref<2x8x512xf32, #tpu.memory_space<vmem>>, vector<2x1x512xf32>
    %205 = arith.addf %202, %204 : vector<2x1x512xf32>
    %c0_76 = arith.constant 0 : index
    %206 = arith.index_cast %c1_i32_71 : i32 to index
    %c0_77 = arith.constant 0 : index
    %207 = vector.load %arg28[%c0_76, %206, %c0_77] : memref<2x8x8xf32, #tpu.memory_space<vmem>>, vector<2x1x8xf32>
    %208 = vector.extract_strided_slice %205 {offsets = [0, 0, 0], sizes = [2, 1, 64], strides = [1, 1, 1]} : vector<2x1x512xf32> to vector<2x1x64xf32>
    %209 = vector.extract_strided_slice %207 {offsets = [0, 0, 0], sizes = [2, 1, 1], strides = [1, 1, 1]} : vector<2x1x8xf32> to vector<2x1x1xf32>
    %210 = vector.broadcast %209 : vector<2x1x1xf32> to vector<2x1x64xf32>
    %211 = arith.mulf %208, %210 : vector<2x1x64xf32>
    %212 = vector.extract_strided_slice %205 {offsets = [0, 0, 64], sizes = [2, 1, 64], strides = [1, 1, 1]} : vector<2x1x512xf32> to vector<2x1x64xf32>
    %213 = vector.extract_strided_slice %207 {offsets = [0, 0, 1], sizes = [2, 1, 1], strides = [1, 1, 1]} : vector<2x1x8xf32> to vector<2x1x1xf32>
    %214 = vector.broadcast %213 : vector<2x1x1xf32> to vector<2x1x64xf32>
    %215 = arith.mulf %212, %214 : vector<2x1x64xf32>
    %216 = arith.addf %211, %215 : vector<2x1x64xf32>
    %217 = vector.extract_strided_slice %205 {offsets = [0, 0, 128], sizes = [2, 1, 64], strides = [1, 1, 1]} : vector<2x1x512xf32> to vector<2x1x64xf32>
    %218 = vector.extract_strided_slice %207 {offsets = [0, 0, 2], sizes = [2, 1, 1], strides = [1, 1, 1]} : vector<2x1x8xf32> to vector<2x1x1xf32>
    %219 = vector.broadcast %218 : vector<2x1x1xf32> to vector<2x1x64xf32>
    %220 = arith.mulf %217, %219 : vector<2x1x64xf32>
    %221 = arith.addf %216, %220 : vector<2x1x64xf32>
    %222 = vector.extract_strided_slice %205 {offsets = [0, 0, 192], sizes = [2, 1, 64], strides = [1, 1, 1]} : vector<2x1x512xf32> to vector<2x1x64xf32>
    %223 = vector.extract_strided_slice %207 {offsets = [0, 0, 3], sizes = [2, 1, 1], strides = [1, 1, 1]} : vector<2x1x8xf32> to vector<2x1x1xf32>
    %224 = vector.broadcast %223 : vector<2x1x1xf32> to vector<2x1x64xf32>
    %225 = arith.mulf %222, %224 : vector<2x1x64xf32>
    %226 = arith.addf %221, %225 : vector<2x1x64xf32>
    %227 = vector.extract_strided_slice %205 {offsets = [0, 0, 256], sizes = [2, 1, 64], strides = [1, 1, 1]} : vector<2x1x512xf32> to vector<2x1x64xf32>
    %228 = vector.extract_strided_slice %207 {offsets = [0, 0, 4], sizes = [2, 1, 1], strides = [1, 1, 1]} : vector<2x1x8xf32> to vector<2x1x1xf32>
    %229 = vector.broadcast %228 : vector<2x1x1xf32> to vector<2x1x64xf32>
    %230 = arith.mulf %227, %229 : vector<2x1x64xf32>
    %231 = arith.addf %226, %230 : vector<2x1x64xf32>
    %232 = vector.extract_strided_slice %205 {offsets = [0, 0, 320], sizes = [2, 1, 64], strides = [1, 1, 1]} : vector<2x1x512xf32> to vector<2x1x64xf32>
    %233 = vector.extract_strided_slice %207 {offsets = [0, 0, 5], sizes = [2, 1, 1], strides = [1, 1, 1]} : vector<2x1x8xf32> to vector<2x1x1xf32>
    %234 = vector.broadcast %233 : vector<2x1x1xf32> to vector<2x1x64xf32>
    %235 = arith.mulf %232, %234 : vector<2x1x64xf32>
    %236 = arith.addf %231, %235 : vector<2x1x64xf32>
    %237 = vector.extract_strided_slice %205 {offsets = [0, 0, 384], sizes = [2, 1, 64], strides = [1, 1, 1]} : vector<2x1x512xf32> to vector<2x1x64xf32>
    %238 = vector.extract_strided_slice %207 {offsets = [0, 0, 6], sizes = [2, 1, 1], strides = [1, 1, 1]} : vector<2x1x8xf32> to vector<2x1x1xf32>
    %239 = vector.broadcast %238 : vector<2x1x1xf32> to vector<2x1x64xf32>
    %240 = arith.mulf %237, %239 : vector<2x1x64xf32>
    %241 = arith.addf %236, %240 : vector<2x1x64xf32>
    %242 = vector.extract_strided_slice %205 {offsets = [0, 0, 448], sizes = [2, 1, 64], strides = [1, 1, 1]} : vector<2x1x512xf32> to vector<2x1x64xf32>
    %243 = vector.extract_strided_slice %207 {offsets = [0, 0, 7], sizes = [2, 1, 1], strides = [1, 1, 1]} : vector<2x1x8xf32> to vector<2x1x1xf32>
    %244 = vector.broadcast %243 : vector<2x1x1xf32> to vector<2x1x64xf32>
    %245 = arith.mulf %242, %244 : vector<2x1x64xf32>
    %246 = arith.addf %241, %245 : vector<2x1x64xf32>
    %c0_78 = arith.constant 0 : index
    %247 = arith.index_cast %c1_i32_71 : i32 to index
    %c0_79 = arith.constant 0 : index
    %248 = vector.load %arg29[%c0_78, %247, %c0_79] : memref<2x8x64xf32, #tpu.memory_space<vmem>>, vector<2x1x64xf32>
    tpu.vector_store %arg29[%c0_78, %247, %c0_79], %246 {strides = array<i32>} : memref<2x8x64xf32, #tpu.memory_space<vmem>>, vector<2x1x64xf32>,
    %c2_i32_80 = arith.constant 2 : i32
    %c0_81 = arith.constant 0 : index
    %249 = arith.index_cast %c2_i32_80 : i32 to index
    %c0_82 = arith.constant 0 : index
    %250 = vector.load %arg26[%c0_81, %249, %c0_82] : memref<2x8x512xf32, #tpu.memory_space<vmem>>, vector<2x1x512xf32>
    %251 = arith.mulf %250, %205 : vector<2x1x512xf32>
    %c0_83 = arith.constant 0 : index
    %252 = arith.index_cast %c2_i32_80 : i32 to index
    %c0_84 = arith.constant 0 : index
    %253 = vector.load %arg27[%c0_83, %252, %c0_84] : memref<2x8x512xf32, #tpu.memory_space<vmem>>, vector<2x1x512xf32>
    %254 = arith.addf %251, %253 : vector<2x1x512xf32>
    %c0_85 = arith.constant 0 : index
    %255 = arith.index_cast %c2_i32_80 : i32 to index
    %c0_86 = arith.constant 0 : index
    %256 = vector.load %arg28[%c0_85, %255, %c0_86] : memref<2x8x8xf32, #tpu.memory_space<vmem>>, vector<2x1x8xf32>
    %257 = vector.extract_strided_slice %254 {offsets = [0, 0, 0], sizes = [2, 1, 64], strides = [1, 1, 1]} : vector<2x1x512xf32> to vector<2x1x64xf32>
    %258 = vector.extract_strided_slice %256 {offsets = [0, 0, 0], sizes = [2, 1, 1], strides = [1, 1, 1]} : vector<2x1x8xf32> to vector<2x1x1xf32>
    %259 = vector.broadcast %258 : vector<2x1x1xf32> to vector<2x1x64xf32>
    %260 = arith.mulf %257, %259 : vector<2x1x64xf32>
    %261 = vector.extract_strided_slice %254 {offsets = [0, 0, 64], sizes = [2, 1, 64], strides = [1, 1, 1]} : vector<2x1x512xf32> to vector<2x1x64xf32>
    %262 = vector.extract_strided_slice %256 {offsets = [0, 0, 1], sizes = [2, 1, 1], strides = [1, 1, 1]} : vector<2x1x8xf32> to vector<2x1x1xf32>
    %263 = vector.broadcast %262 : vector<2x1x1xf32> to vector<2x1x64xf32>
    %264 = arith.mulf %261, %263 : vector<2x1x64xf32>
    %265 = arith.addf %260, %264 : vector<2x1x64xf32>
    %266 = vector.extract_strided_slice %254 {offsets = [0, 0, 128], sizes = [2, 1, 64], strides = [1, 1, 1]} : vector<2x1x512xf32> to vector<2x1x64xf32>
    %267 = vector.extract_strided_slice %256 {offsets = [0, 0, 2], sizes = [2, 1, 1], strides = [1, 1, 1]} : vector<2x1x8xf32> to vector<2x1x1xf32>
    %268 = vector.broadcast %267 : vector<2x1x1xf32> to vector<2x1x64xf32>
    %269 = arith.mulf %266, %268 : vector<2x1x64xf32>
    %270 = arith.addf %265, %269 : vector<2x1x64xf32>
    %271 = vector.extract_strided_slice %254 {offsets = [0, 0, 192], sizes = [2, 1, 64], strides = [1, 1, 1]} : vector<2x1x512xf32> to vector<2x1x64xf32>
    %272 = vector.extract_strided_slice %256 {offsets = [0, 0, 3], sizes = [2, 1, 1], strides = [1, 1, 1]} : vector<2x1x8xf32> to vector<2x1x1xf32>
    %273 = vector.broadcast %272 : vector<2x1x1xf32> to vector<2x1x64xf32>
    %274 = arith.mulf %271, %273 : vector<2x1x64xf32>
    %275 = arith.addf %270, %274 : vector<2x1x64xf32>
    %276 = vector.extract_strided_slice %254 {offsets = [0, 0, 256], sizes = [2, 1, 64], strides = [1, 1, 1]} : vector<2x1x512xf32> to vector<2x1x64xf32>
    %277 = vector.extract_strided_slice %256 {offsets = [0, 0, 4], sizes = [2, 1, 1], strides = [1, 1, 1]} : vector<2x1x8xf32> to vector<2x1x1xf32>
    %278 = vector.broadcast %277 : vector<2x1x1xf32> to vector<2x1x64xf32>
    %279 = arith.mulf %276, %278 : vector<2x1x64xf32>
    %280 = arith.addf %275, %279 : vector<2x1x64xf32>
    %281 = vector.extract_strided_slice %254 {offsets = [0, 0, 320], sizes = [2, 1, 64], strides = [1, 1, 1]} : vector<2x1x512xf32> to vector<2x1x64xf32>
    %282 = vector.extract_strided_slice %256 {offsets = [0, 0, 5], sizes = [2, 1, 1], strides = [1, 1, 1]} : vector<2x1x8xf32> to vector<2x1x1xf32>
    %283 = vector.broadcast %282 : vector<2x1x1xf32> to vector<2x1x64xf32>
    %284 = arith.mulf %281, %283 : vector<2x1x64xf32>
    %285 = arith.addf %280, %284 : vector<2x1x64xf32>
    %286 = vector.extract_strided_slice %254 {offsets = [0, 0, 384], sizes = [2, 1, 64], strides = [1, 1, 1]} : vector<2x1x512xf32> to vector<2x1x64xf32>
    %287 = vector.extract_strided_slice %256 {offsets = [0, 0, 6], sizes = [2, 1, 1], strides = [1, 1, 1]} : vector<2x1x8xf32> to vector<2x1x1xf32>
    %288 = vector.broadcast %287 : vector<2x1x1xf32> to vector<2x1x64xf32>
    %289 = arith.mulf %286, %288 : vector<2x1x64xf32>
    %290 = arith.addf %285, %289 : vector<2x1x64xf32>
    %291 = vector.extract_strided_slice %254 {offsets = [0, 0, 448], sizes = [2, 1, 64], strides = [1, 1, 1]} : vector<2x1x512xf32> to vector<2x1x64xf32>
    %292 = vector.extract_strided_slice %256 {offsets = [0, 0, 7], sizes = [2, 1, 1], strides = [1, 1, 1]} : vector<2x1x8xf32> to vector<2x1x1xf32>
    %293 = vector.broadcast %292 : vector<2x1x1xf32> to vector<2x1x64xf32>
    %294 = arith.mulf %291, %293 : vector<2x1x64xf32>
    %295 = arith.addf %290, %294 : vector<2x1x64xf32>
    %c0_87 = arith.constant 0 : index
    %296 = arith.index_cast %c2_i32_80 : i32 to index
    %c0_88 = arith.constant 0 : index
    %297 = vector.load %arg29[%c0_87, %296, %c0_88] : memref<2x8x64xf32, #tpu.memory_space<vmem>>, vector<2x1x64xf32>
    tpu.vector_store %arg29[%c0_87, %296, %c0_88], %295 {strides = array<i32>} : memref<2x8x64xf32, #tpu.memory_space<vmem>>, vector<2x1x64xf32>,
    %c3_i32_89 = arith.constant 3 : i32
    %c0_90 = arith.constant 0 : index
    %298 = arith.index_cast %c3_i32_89 : i32 to index
    %c0_91 = arith.constant 0 : index
    %299 = vector.load %arg26[%c0_90, %298, %c0_91] : memref<2x8x512xf32, #tpu.memory_space<vmem>>, vector<2x1x512xf32>
    %300 = arith.mulf %299, %254 : vector<2x1x512xf32>
    %c0_92 = arith.constant 0 : index
    %301 = arith.index_cast %c3_i32_89 : i32 to index
    %c0_93 = arith.constant 0 : index
    %302 = vector.load %arg27[%c0_92, %301, %c0_93] : memref<2x8x512xf32, #tpu.memory_space<vmem>>, vector<2x1x512xf32>
    %303 = arith.addf %300, %302 : vector<2x1x512xf32>
    %c0_94 = arith.constant 0 : index
    %304 = arith.index_cast %c3_i32_89 : i32 to index
    %c0_95 = arith.constant 0 : index
    %305 = vector.load %arg28[%c0_94, %304, %c0_95] : memref<2x8x8xf32, #tpu.memory_space<vmem>>, vector<2x1x8xf32>
    %306 = vector.extract_strided_slice %303 {offsets = [0, 0, 0], sizes = [2, 1, 64], strides = [1, 1, 1]} : vector<2x1x512xf32> to vector<2x1x64xf32>
    %307 = vector.extract_strided_slice %305 {offsets = [0, 0, 0], sizes = [2, 1, 1], strides = [1, 1, 1]} : vector<2x1x8xf32> to vector<2x1x1xf32>
    %308 = vector.broadcast %307 : vector<2x1x1xf32> to vector<2x1x64xf32>
    %309 = arith.mulf %306, %308 : vector<2x1x64xf32>
    %310 = vector.extract_strided_slice %303 {offsets = [0, 0, 64], sizes = [2, 1, 64], strides = [1, 1, 1]} : vector<2x1x512xf32> to vector<2x1x64xf32>
    %311 = vector.extract_strided_slice %305 {offsets = [0, 0, 1], sizes = [2, 1, 1], strides = [1, 1, 1]} : vector<2x1x8xf32> to vector<2x1x1xf32>
    %312 = vector.broadcast %311 : vector<2x1x1xf32> to vector<2x1x64xf32>
    %313 = arith.mulf %310, %312 : vector<2x1x64xf32>
    %314 = arith.addf %309, %313 : vector<2x1x64xf32>
    %315 = vector.extract_strided_slice %303 {offsets = [0, 0, 128], sizes = [2, 1, 64], strides = [1, 1, 1]} : vector<2x1x512xf32> to vector<2x1x64xf32>
    %316 = vector.extract_strided_slice %305 {offsets = [0, 0, 2], sizes = [2, 1, 1], strides = [1, 1, 1]} : vector<2x1x8xf32> to vector<2x1x1xf32>
    %317 = vector.broadcast %316 : vector<2x1x1xf32> to vector<2x1x64xf32>
    %318 = arith.mulf %315, %317 : vector<2x1x64xf32>
    %319 = arith.addf %314, %318 : vector<2x1x64xf32>
    %320 = vector.extract_strided_slice %303 {offsets = [0, 0, 192], sizes = [2, 1, 64], strides = [1, 1, 1]} : vector<2x1x512xf32> to vector<2x1x64xf32>
    %321 = vector.extract_strided_slice %305 {offsets = [0, 0, 3], sizes = [2, 1, 1], strides = [1, 1, 1]} : vector<2x1x8xf32> to vector<2x1x1xf32>
    %322 = vector.broadcast %321 : vector<2x1x1xf32> to vector<2x1x64xf32>
    %323 = arith.mulf %320, %322 : vector<2x1x64xf32>
    %324 = arith.addf %319, %323 : vector<2x1x64xf32>
    %325 = vector.extract_strided_slice %303 {offsets = [0, 0, 256], sizes = [2, 1, 64], strides = [1, 1, 1]} : vector<2x1x512xf32> to vector<2x1x64xf32>
    %326 = vector.extract_strided_slice %305 {offsets = [0, 0, 4], sizes = [2, 1, 1], strides = [1, 1, 1]} : vector<2x1x8xf32> to vector<2x1x1xf32>
    %327 = vector.broadcast %326 : vector<2x1x1xf32> to vector<2x1x64xf32>
    %328 = arith.mulf %325, %327 : vector<2x1x64xf32>
    %329 = arith.addf %324, %328 : vector<2x1x64xf32>
    %330 = vector.extract_strided_slice %303 {offsets = [0, 0, 320], sizes = [2, 1, 64], strides = [1, 1, 1]} : vector<2x1x512xf32> to vector<2x1x64xf32>
    %331 = vector.extract_strided_slice %305 {offsets = [0, 0, 5], sizes = [2, 1, 1], strides = [1, 1, 1]} : vector<2x1x8xf32> to vector<2x1x1xf32>
    %332 = vector.broadcast %331 : vector<2x1x1xf32> to vector<2x1x64xf32>
    %333 = arith.mulf %330, %332 : vector<2x1x64xf32>
    %334 = arith.addf %329, %333 : vector<2x1x64xf32>
    %335 = vector.extract_strided_slice %303 {offsets = [0, 0, 384], sizes = [2, 1, 64], strides = [1, 1, 1]} : vector<2x1x512xf32> to vector<2x1x64xf32>
    %336 = vector.extract_strided_slice %305 {offsets = [0, 0, 6], sizes = [2, 1, 1], strides = [1, 1, 1]} : vector<2x1x8xf32> to vector<2x1x1xf32>
    %337 = vector.broadcast %336 : vector<2x1x1xf32> to vector<2x1x64xf32>
    %338 = arith.mulf %335, %337 : vector<2x1x64xf32>
    %339 = arith.addf %334, %338 : vector<2x1x64xf32>
    %340 = vector.extract_strided_slice %303 {offsets = [0, 0, 448], sizes = [2, 1, 64], strides = [1, 1, 1]} : vector<2x1x512xf32> to vector<2x1x64xf32>
    %341 = vector.extract_strided_slice %305 {offsets = [0, 0, 7], sizes = [2, 1, 1], strides = [1, 1, 1]} : vector<2x1x8xf32> to vector<2x1x1xf32>
    %342 = vector.broadcast %341 : vector<2x1x1xf32> to vector<2x1x64xf32>
    %343 = arith.mulf %340, %342 : vector<2x1x64xf32>
    %344 = arith.addf %339, %343 : vector<2x1x64xf32>
    %c0_96 = arith.constant 0 : index
    %345 = arith.index_cast %c3_i32_89 : i32 to index
    %c0_97 = arith.constant 0 : index
    %346 = vector.load %arg29[%c0_96, %345, %c0_97] : memref<2x8x64xf32, #tpu.memory_space<vmem>>, vector<2x1x64xf32>
    tpu.vector_store %arg29[%c0_96, %345, %c0_97], %344 {strides = array<i32>} : memref<2x8x64xf32, #tpu.memory_space<vmem>>, vector<2x1x64xf32>,
    %c4_i32 = arith.constant 4 : i32
    %c0_98 = arith.constant 0 : index
    %347 = arith.index_cast %c4_i32 : i32 to index
    %c0_99 = arith.constant 0 : index
    %348 = vector.load %arg26[%c0_98, %347, %c0_99] : memref<2x8x512xf32, #tpu.memory_space<vmem>>, vector<2x1x512xf32>
    %349 = arith.mulf %348, %303 : vector<2x1x512xf32>
    %c0_100 = arith.constant 0 : index
    %350 = arith.index_cast %c4_i32 : i32 to index
    %c0_101 = arith.constant 0 : index
    %351 = vector.load %arg27[%c0_100, %350, %c0_101] : memref<2x8x512xf32, #tpu.memory_space<vmem>>, vector<2x1x512xf32>
    %352 = arith.addf %349, %351 : vector<2x1x512xf32>
    %c0_102 = arith.constant 0 : index
    %353 = arith.index_cast %c4_i32 : i32 to index
    %c0_103 = arith.constant 0 : index
    %354 = vector.load %arg28[%c0_102, %353, %c0_103] : memref<2x8x8xf32, #tpu.memory_space<vmem>>, vector<2x1x8xf32>
    %355 = vector.extract_strided_slice %352 {offsets = [0, 0, 0], sizes = [2, 1, 64], strides = [1, 1, 1]} : vector<2x1x512xf32> to vector<2x1x64xf32>
    %356 = vector.extract_strided_slice %354 {offsets = [0, 0, 0], sizes = [2, 1, 1], strides = [1, 1, 1]} : vector<2x1x8xf32> to vector<2x1x1xf32>
    %357 = vector.broadcast %356 : vector<2x1x1xf32> to vector<2x1x64xf32>
    %358 = arith.mulf %355, %357 : vector<2x1x64xf32>
    %359 = vector.extract_strided_slice %352 {offsets = [0, 0, 64], sizes = [2, 1, 64], strides = [1, 1, 1]} : vector<2x1x512xf32> to vector<2x1x64xf32>
    %360 = vector.extract_strided_slice %354 {offsets = [0, 0, 1], sizes = [2, 1, 1], strides = [1, 1, 1]} : vector<2x1x8xf32> to vector<2x1x1xf32>
    %361 = vector.broadcast %360 : vector<2x1x1xf32> to vector<2x1x64xf32>
    %362 = arith.mulf %359, %361 : vector<2x1x64xf32>
    %363 = arith.addf %358, %362 : vector<2x1x64xf32>
    %364 = vector.extract_strided_slice %352 {offsets = [0, 0, 128], sizes = [2, 1, 64], strides = [1, 1, 1]} : vector<2x1x512xf32> to vector<2x1x64xf32>
    %365 = vector.extract_strided_slice %354 {offsets = [0, 0, 2], sizes = [2, 1, 1], strides = [1, 1, 1]} : vector<2x1x8xf32> to vector<2x1x1xf32>
    %366 = vector.broadcast %365 : vector<2x1x1xf32> to vector<2x1x64xf32>
    %367 = arith.mulf %364, %366 : vector<2x1x64xf32>
    %368 = arith.addf %363, %367 : vector<2x1x64xf32>
    %369 = vector.extract_strided_slice %352 {offsets = [0, 0, 192], sizes = [2, 1, 64], strides = [1, 1, 1]} : vector<2x1x512xf32> to vector<2x1x64xf32>
    %370 = vector.extract_strided_slice %354 {offsets = [0, 0, 3], sizes = [2, 1, 1], strides = [1, 1, 1]} : vector<2x1x8xf32> to vector<2x1x1xf32>
    %371 = vector.broadcast %370 : vector<2x1x1xf32> to vector<2x1x64xf32>
    %372 = arith.mulf %369, %371 : vector<2x1x64xf32>
    %373 = arith.addf %368, %372 : vector<2x1x64xf32>
    %374 = vector.extract_strided_slice %352 {offsets = [0, 0, 256], sizes = [2, 1, 64], strides = [1, 1, 1]} : vector<2x1x512xf32> to vector<2x1x64xf32>
    %375 = vector.extract_strided_slice %354 {offsets = [0, 0, 4], sizes = [2, 1, 1], strides = [1, 1, 1]} : vector<2x1x8xf32> to vector<2x1x1xf32>
    %376 = vector.broadcast %375 : vector<2x1x1xf32> to vector<2x1x64xf32>
    %377 = arith.mulf %374, %376 : vector<2x1x64xf32>
    %378 = arith.addf %373, %377 : vector<2x1x64xf32>
    %379 = vector.extract_strided_slice %352 {offsets = [0, 0, 320], sizes = [2, 1, 64], strides = [1, 1, 1]} : vector<2x1x512xf32> to vector<2x1x64xf32>
    %380 = vector.extract_strided_slice %354 {offsets = [0, 0, 5], sizes = [2, 1, 1], strides = [1, 1, 1]} : vector<2x1x8xf32> to vector<2x1x1xf32>
    %381 = vector.broadcast %380 : vector<2x1x1xf32> to vector<2x1x64xf32>
    %382 = arith.mulf %379, %381 : vector<2x1x64xf32>
    %383 = arith.addf %378, %382 : vector<2x1x64xf32>
    %384 = vector.extract_strided_slice %352 {offsets = [0, 0, 384], sizes = [2, 1, 64], strides = [1, 1, 1]} : vector<2x1x512xf32> to vector<2x1x64xf32>
    %385 = vector.extract_strided_slice %354 {offsets = [0, 0, 6], sizes = [2, 1, 1], strides = [1, 1, 1]} : vector<2x1x8xf32> to vector<2x1x1xf32>
    %386 = vector.broadcast %385 : vector<2x1x1xf32> to vector<2x1x64xf32>
    %387 = arith.mulf %384, %386 : vector<2x1x64xf32>
    %388 = arith.addf %383, %387 : vector<2x1x64xf32>
    %389 = vector.extract_strided_slice %352 {offsets = [0, 0, 448], sizes = [2, 1, 64], strides = [1, 1, 1]} : vector<2x1x512xf32> to vector<2x1x64xf32>
    %390 = vector.extract_strided_slice %354 {offsets = [0, 0, 7], sizes = [2, 1, 1], strides = [1, 1, 1]} : vector<2x1x8xf32> to vector<2x1x1xf32>
    %391 = vector.broadcast %390 : vector<2x1x1xf32> to vector<2x1x64xf32>
    %392 = arith.mulf %389, %391 : vector<2x1x64xf32>
    %393 = arith.addf %388, %392 : vector<2x1x64xf32>
    %c0_104 = arith.constant 0 : index
    %394 = arith.index_cast %c4_i32 : i32 to index
    %c0_105 = arith.constant 0 : index
    %395 = vector.load %arg29[%c0_104, %394, %c0_105] : memref<2x8x64xf32, #tpu.memory_space<vmem>>, vector<2x1x64xf32>
    tpu.vector_store %arg29[%c0_104, %394, %c0_105], %393 {strides = array<i32>} : memref<2x8x64xf32, #tpu.memory_space<vmem>>, vector<2x1x64xf32>,
    %c5_i32 = arith.constant 5 : i32
    %c0_106 = arith.constant 0 : index
    %396 = arith.index_cast %c5_i32 : i32 to index
    %c0_107 = arith.constant 0 : index
    %397 = vector.load %arg26[%c0_106, %396, %c0_107] : memref<2x8x512xf32, #tpu.memory_space<vmem>>, vector<2x1x512xf32>
    %398 = arith.mulf %397, %352 : vector<2x1x512xf32>
    %c0_108 = arith.constant 0 : index
    %399 = arith.index_cast %c5_i32 : i32 to index
    %c0_109 = arith.constant 0 : index
    %400 = vector.load %arg27[%c0_108, %399, %c0_109] : memref<2x8x512xf32, #tpu.memory_space<vmem>>, vector<2x1x512xf32>
    %401 = arith.addf %398, %400 : vector<2x1x512xf32>
    %c0_110 = arith.constant 0 : index
    %402 = arith.index_cast %c5_i32 : i32 to index
    %c0_111 = arith.constant 0 : index
    %403 = vector.load %arg28[%c0_110, %402, %c0_111] : memref<2x8x8xf32, #tpu.memory_space<vmem>>, vector<2x1x8xf32>
    %404 = vector.extract_strided_slice %401 {offsets = [0, 0, 0], sizes = [2, 1, 64], strides = [1, 1, 1]} : vector<2x1x512xf32> to vector<2x1x64xf32>
    %405 = vector.extract_strided_slice %403 {offsets = [0, 0, 0], sizes = [2, 1, 1], strides = [1, 1, 1]} : vector<2x1x8xf32> to vector<2x1x1xf32>
    %406 = vector.broadcast %405 : vector<2x1x1xf32> to vector<2x1x64xf32>
    %407 = arith.mulf %404, %406 : vector<2x1x64xf32>
    %408 = vector.extract_strided_slice %401 {offsets = [0, 0, 64], sizes = [2, 1, 64], strides = [1, 1, 1]} : vector<2x1x512xf32> to vector<2x1x64xf32>
    %409 = vector.extract_strided_slice %403 {offsets = [0, 0, 1], sizes = [2, 1, 1], strides = [1, 1, 1]} : vector<2x1x8xf32> to vector<2x1x1xf32>
    %410 = vector.broadcast %409 : vector<2x1x1xf32> to vector<2x1x64xf32>
    %411 = arith.mulf %408, %410 : vector<2x1x64xf32>
    %412 = arith.addf %407, %411 : vector<2x1x64xf32>
    %413 = vector.extract_strided_slice %401 {offsets = [0, 0, 128], sizes = [2, 1, 64], strides = [1, 1, 1]} : vector<2x1x512xf32> to vector<2x1x64xf32>
    %414 = vector.extract_strided_slice %403 {offsets = [0, 0, 2], sizes = [2, 1, 1], strides = [1, 1, 1]} : vector<2x1x8xf32> to vector<2x1x1xf32>
    %415 = vector.broadcast %414 : vector<2x1x1xf32> to vector<2x1x64xf32>
    %416 = arith.mulf %413, %415 : vector<2x1x64xf32>
    %417 = arith.addf %412, %416 : vector<2x1x64xf32>
    %418 = vector.extract_strided_slice %401 {offsets = [0, 0, 192], sizes = [2, 1, 64], strides = [1, 1, 1]} : vector<2x1x512xf32> to vector<2x1x64xf32>
    %419 = vector.extract_strided_slice %403 {offsets = [0, 0, 3], sizes = [2, 1, 1], strides = [1, 1, 1]} : vector<2x1x8xf32> to vector<2x1x1xf32>
    %420 = vector.broadcast %419 : vector<2x1x1xf32> to vector<2x1x64xf32>
    %421 = arith.mulf %418, %420 : vector<2x1x64xf32>
    %422 = arith.addf %417, %421 : vector<2x1x64xf32>
    %423 = vector.extract_strided_slice %401 {offsets = [0, 0, 256], sizes = [2, 1, 64], strides = [1, 1, 1]} : vector<2x1x512xf32> to vector<2x1x64xf32>
    %424 = vector.extract_strided_slice %403 {offsets = [0, 0, 4], sizes = [2, 1, 1], strides = [1, 1, 1]} : vector<2x1x8xf32> to vector<2x1x1xf32>
    %425 = vector.broadcast %424 : vector<2x1x1xf32> to vector<2x1x64xf32>
    %426 = arith.mulf %423, %425 : vector<2x1x64xf32>
    %427 = arith.addf %422, %426 : vector<2x1x64xf32>
    %428 = vector.extract_strided_slice %401 {offsets = [0, 0, 320], sizes = [2, 1, 64], strides = [1, 1, 1]} : vector<2x1x512xf32> to vector<2x1x64xf32>
    %429 = vector.extract_strided_slice %403 {offsets = [0, 0, 5], sizes = [2, 1, 1], strides = [1, 1, 1]} : vector<2x1x8xf32> to vector<2x1x1xf32>
    %430 = vector.broadcast %429 : vector<2x1x1xf32> to vector<2x1x64xf32>
    %431 = arith.mulf %428, %430 : vector<2x1x64xf32>
    %432 = arith.addf %427, %431 : vector<2x1x64xf32>
    %433 = vector.extract_strided_slice %401 {offsets = [0, 0, 384], sizes = [2, 1, 64], strides = [1, 1, 1]} : vector<2x1x512xf32> to vector<2x1x64xf32>
    %434 = vector.extract_strided_slice %403 {offsets = [0, 0, 6], sizes = [2, 1, 1], strides = [1, 1, 1]} : vector<2x1x8xf32> to vector<2x1x1xf32>
    %435 = vector.broadcast %434 : vector<2x1x1xf32> to vector<2x1x64xf32>
    %436 = arith.mulf %433, %435 : vector<2x1x64xf32>
    %437 = arith.addf %432, %436 : vector<2x1x64xf32>
    %438 = vector.extract_strided_slice %401 {offsets = [0, 0, 448], sizes = [2, 1, 64], strides = [1, 1, 1]} : vector<2x1x512xf32> to vector<2x1x64xf32>
    %439 = vector.extract_strided_slice %403 {offsets = [0, 0, 7], sizes = [2, 1, 1], strides = [1, 1, 1]} : vector<2x1x8xf32> to vector<2x1x1xf32>
    %440 = vector.broadcast %439 : vector<2x1x1xf32> to vector<2x1x64xf32>
    %441 = arith.mulf %438, %440 : vector<2x1x64xf32>
    %442 = arith.addf %437, %441 : vector<2x1x64xf32>
    %c0_112 = arith.constant 0 : index
    %443 = arith.index_cast %c5_i32 : i32 to index
    %c0_113 = arith.constant 0 : index
    %444 = vector.load %arg29[%c0_112, %443, %c0_113] : memref<2x8x64xf32, #tpu.memory_space<vmem>>, vector<2x1x64xf32>
    tpu.vector_store %arg29[%c0_112, %443, %c0_113], %442 {strides = array<i32>} : memref<2x8x64xf32, #tpu.memory_space<vmem>>, vector<2x1x64xf32>,
    %c6_i32 = arith.constant 6 : i32
    %c0_114 = arith.constant 0 : index
    %445 = arith.index_cast %c6_i32 : i32 to index
    %c0_115 = arith.constant 0 : index
    %446 = vector.load %arg26[%c0_114, %445, %c0_115] : memref<2x8x512xf32, #tpu.memory_space<vmem>>, vector<2x1x512xf32>
    %447 = arith.mulf %446, %401 : vector<2x1x512xf32>
    %c0_116 = arith.constant 0 : index
    %448 = arith.index_cast %c6_i32 : i32 to index
    %c0_117 = arith.constant 0 : index
    %449 = vector.load %arg27[%c0_116, %448, %c0_117] : memref<2x8x512xf32, #tpu.memory_space<vmem>>, vector<2x1x512xf32>
    %450 = arith.addf %447, %449 : vector<2x1x512xf32>
    %c0_118 = arith.constant 0 : index
    %451 = arith.index_cast %c6_i32 : i32 to index
    %c0_119 = arith.constant 0 : index
    %452 = vector.load %arg28[%c0_118, %451, %c0_119] : memref<2x8x8xf32, #tpu.memory_space<vmem>>, vector<2x1x8xf32>
    %453 = vector.extract_strided_slice %450 {offsets = [0, 0, 0], sizes = [2, 1, 64], strides = [1, 1, 1]} : vector<2x1x512xf32> to vector<2x1x64xf32>
    %454 = vector.extract_strided_slice %452 {offsets = [0, 0, 0], sizes = [2, 1, 1], strides = [1, 1, 1]} : vector<2x1x8xf32> to vector<2x1x1xf32>
    %455 = vector.broadcast %454 : vector<2x1x1xf32> to vector<2x1x64xf32>
    %456 = arith.mulf %453, %455 : vector<2x1x64xf32>
    %457 = vector.extract_strided_slice %450 {offsets = [0, 0, 64], sizes = [2, 1, 64], strides = [1, 1, 1]} : vector<2x1x512xf32> to vector<2x1x64xf32>
    %458 = vector.extract_strided_slice %452 {offsets = [0, 0, 1], sizes = [2, 1, 1], strides = [1, 1, 1]} : vector<2x1x8xf32> to vector<2x1x1xf32>
    %459 = vector.broadcast %458 : vector<2x1x1xf32> to vector<2x1x64xf32>
    %460 = arith.mulf %457, %459 : vector<2x1x64xf32>
    %461 = arith.addf %456, %460 : vector<2x1x64xf32>
    %462 = vector.extract_strided_slice %450 {offsets = [0, 0, 128], sizes = [2, 1, 64], strides = [1, 1, 1]} : vector<2x1x512xf32> to vector<2x1x64xf32>
    %463 = vector.extract_strided_slice %452 {offsets = [0, 0, 2], sizes = [2, 1, 1], strides = [1, 1, 1]} : vector<2x1x8xf32> to vector<2x1x1xf32>
    %464 = vector.broadcast %463 : vector<2x1x1xf32> to vector<2x1x64xf32>
    %465 = arith.mulf %462, %464 : vector<2x1x64xf32>
    %466 = arith.addf %461, %465 : vector<2x1x64xf32>
    %467 = vector.extract_strided_slice %450 {offsets = [0, 0, 192], sizes = [2, 1, 64], strides = [1, 1, 1]} : vector<2x1x512xf32> to vector<2x1x64xf32>
    %468 = vector.extract_strided_slice %452 {offsets = [0, 0, 3], sizes = [2, 1, 1], strides = [1, 1, 1]} : vector<2x1x8xf32> to vector<2x1x1xf32>
    %469 = vector.broadcast %468 : vector<2x1x1xf32> to vector<2x1x64xf32>
    %470 = arith.mulf %467, %469 : vector<2x1x64xf32>
    %471 = arith.addf %466, %470 : vector<2x1x64xf32>
    %472 = vector.extract_strided_slice %450 {offsets = [0, 0, 256], sizes = [2, 1, 64], strides = [1, 1, 1]} : vector<2x1x512xf32> to vector<2x1x64xf32>
    %473 = vector.extract_strided_slice %452 {offsets = [0, 0, 4], sizes = [2, 1, 1], strides = [1, 1, 1]} : vector<2x1x8xf32> to vector<2x1x1xf32>
    %474 = vector.broadcast %473 : vector<2x1x1xf32> to vector<2x1x64xf32>
    %475 = arith.mulf %472, %474 : vector<2x1x64xf32>
    %476 = arith.addf %471, %475 : vector<2x1x64xf32>
    %477 = vector.extract_strided_slice %450 {offsets = [0, 0, 320], sizes = [2, 1, 64], strides = [1, 1, 1]} : vector<2x1x512xf32> to vector<2x1x64xf32>
    %478 = vector.extract_strided_slice %452 {offsets = [0, 0, 5], sizes = [2, 1, 1], strides = [1, 1, 1]} : vector<2x1x8xf32> to vector<2x1x1xf32>
    %479 = vector.broadcast %478 : vector<2x1x1xf32> to vector<2x1x64xf32>
    %480 = arith.mulf %477, %479 : vector<2x1x64xf32>
    %481 = arith.addf %476, %480 : vector<2x1x64xf32>
    %482 = vector.extract_strided_slice %450 {offsets = [0, 0, 384], sizes = [2, 1, 64], strides = [1, 1, 1]} : vector<2x1x512xf32> to vector<2x1x64xf32>
    %483 = vector.extract_strided_slice %452 {offsets = [0, 0, 6], sizes = [2, 1, 1], strides = [1, 1, 1]} : vector<2x1x8xf32> to vector<2x1x1xf32>
    %484 = vector.broadcast %483 : vector<2x1x1xf32> to vector<2x1x64xf32>
    %485 = arith.mulf %482, %484 : vector<2x1x64xf32>
    %486 = arith.addf %481, %485 : vector<2x1x64xf32>
    %487 = vector.extract_strided_slice %450 {offsets = [0, 0, 448], sizes = [2, 1, 64], strides = [1, 1, 1]} : vector<2x1x512xf32> to vector<2x1x64xf32>
    %488 = vector.extract_strided_slice %452 {offsets = [0, 0, 7], sizes = [2, 1, 1], strides = [1, 1, 1]} : vector<2x1x8xf32> to vector<2x1x1xf32>
    %489 = vector.broadcast %488 : vector<2x1x1xf32> to vector<2x1x64xf32>
    %490 = arith.mulf %487, %489 : vector<2x1x64xf32>
    %491 = arith.addf %486, %490 : vector<2x1x64xf32>
    %c0_120 = arith.constant 0 : index
    %492 = arith.index_cast %c6_i32 : i32 to index
    %c0_121 = arith.constant 0 : index
    %493 = vector.load %arg29[%c0_120, %492, %c0_121] : memref<2x8x64xf32, #tpu.memory_space<vmem>>, vector<2x1x64xf32>
    tpu.vector_store %arg29[%c0_120, %492, %c0_121], %491 {strides = array<i32>} : memref<2x8x64xf32, #tpu.memory_space<vmem>>, vector<2x1x64xf32>,
    %c7_i32 = arith.constant 7 : i32
    %c0_122 = arith.constant 0 : index
    %494 = arith.index_cast %c7_i32 : i32 to index
    %c0_123 = arith.constant 0 : index
    %495 = vector.load %arg26[%c0_122, %494, %c0_123] : memref<2x8x512xf32, #tpu.memory_space<vmem>>, vector<2x1x512xf32>
    %496 = arith.mulf %495, %450 : vector<2x1x512xf32>
    %c0_124 = arith.constant 0 : index
    %497 = arith.index_cast %c7_i32 : i32 to index
    %c0_125 = arith.constant 0 : index
    %498 = vector.load %arg27[%c0_124, %497, %c0_125] : memref<2x8x512xf32, #tpu.memory_space<vmem>>, vector<2x1x512xf32>
    %499 = arith.addf %496, %498 : vector<2x1x512xf32>
    %c0_126 = arith.constant 0 : index
    %500 = arith.index_cast %c7_i32 : i32 to index
    %c0_127 = arith.constant 0 : index
    %501 = vector.load %arg28[%c0_126, %500, %c0_127] : memref<2x8x8xf32, #tpu.memory_space<vmem>>, vector<2x1x8xf32>
    %502 = vector.extract_strided_slice %499 {offsets = [0, 0, 0], sizes = [2, 1, 64], strides = [1, 1, 1]} : vector<2x1x512xf32> to vector<2x1x64xf32>
    %503 = vector.extract_strided_slice %501 {offsets = [0, 0, 0], sizes = [2, 1, 1], strides = [1, 1, 1]} : vector<2x1x8xf32> to vector<2x1x1xf32>
    %504 = vector.broadcast %503 : vector<2x1x1xf32> to vector<2x1x64xf32>
    %505 = arith.mulf %502, %504 : vector<2x1x64xf32>
    %506 = vector.extract_strided_slice %499 {offsets = [0, 0, 64], sizes = [2, 1, 64], strides = [1, 1, 1]} : vector<2x1x512xf32> to vector<2x1x64xf32>
    %507 = vector.extract_strided_slice %501 {offsets = [0, 0, 1], sizes = [2, 1, 1], strides = [1, 1, 1]} : vector<2x1x8xf32> to vector<2x1x1xf32>
    %508 = vector.broadcast %507 : vector<2x1x1xf32> to vector<2x1x64xf32>
    %509 = arith.mulf %506, %508 : vector<2x1x64xf32>
    %510 = arith.addf %505, %509 : vector<2x1x64xf32>
    %511 = vector.extract_strided_slice %499 {offsets = [0, 0, 128], sizes = [2, 1, 64], strides = [1, 1, 1]} : vector<2x1x512xf32> to vector<2x1x64xf32>
    %512 = vector.extract_strided_slice %501 {offsets = [0, 0, 2], sizes = [2, 1, 1], strides = [1, 1, 1]} : vector<2x1x8xf32> to vector<2x1x1xf32>
    %513 = vector.broadcast %512 : vector<2x1x1xf32> to vector<2x1x64xf32>
    %514 = arith.mulf %511, %513 : vector<2x1x64xf32>
    %515 = arith.addf %510, %514 : vector<2x1x64xf32>
    %516 = vector.extract_strided_slice %499 {offsets = [0, 0, 192], sizes = [2, 1, 64], strides = [1, 1, 1]} : vector<2x1x512xf32> to vector<2x1x64xf32>
    %517 = vector.extract_strided_slice %501 {offsets = [0, 0, 3], sizes = [2, 1, 1], strides = [1, 1, 1]} : vector<2x1x8xf32> to vector<2x1x1xf32>
    %518 = vector.broadcast %517 : vector<2x1x1xf32> to vector<2x1x64xf32>
    %519 = arith.mulf %516, %518 : vector<2x1x64xf32>
    %520 = arith.addf %515, %519 : vector<2x1x64xf32>
    %521 = vector.extract_strided_slice %499 {offsets = [0, 0, 256], sizes = [2, 1, 64], strides = [1, 1, 1]} : vector<2x1x512xf32> to vector<2x1x64xf32>
    %522 = vector.extract_strided_slice %501 {offsets = [0, 0, 4], sizes = [2, 1, 1], strides = [1, 1, 1]} : vector<2x1x8xf32> to vector<2x1x1xf32>
    %523 = vector.broadcast %522 : vector<2x1x1xf32> to vector<2x1x64xf32>
    %524 = arith.mulf %521, %523 : vector<2x1x64xf32>
    %525 = arith.addf %520, %524 : vector<2x1x64xf32>
    %526 = vector.extract_strided_slice %499 {offsets = [0, 0, 320], sizes = [2, 1, 64], strides = [1, 1, 1]} : vector<2x1x512xf32> to vector<2x1x64xf32>
    %527 = vector.extract_strided_slice %501 {offsets = [0, 0, 5], sizes = [2, 1, 1], strides = [1, 1, 1]} : vector<2x1x8xf32> to vector<2x1x1xf32>
    %528 = vector.broadcast %527 : vector<2x1x1xf32> to vector<2x1x64xf32>
    %529 = arith.mulf %526, %528 : vector<2x1x64xf32>
    %530 = arith.addf %525, %529 : vector<2x1x64xf32>
    %531 = vector.extract_strided_slice %499 {offsets = [0, 0, 384], sizes = [2, 1, 64], strides = [1, 1, 1]} : vector<2x1x512xf32> to vector<2x1x64xf32>
    %532 = vector.extract_strided_slice %501 {offsets = [0, 0, 6], sizes = [2, 1, 1], strides = [1, 1, 1]} : vector<2x1x8xf32> to vector<2x1x1xf32>
    %533 = vector.broadcast %532 : vector<2x1x1xf32> to vector<2x1x64xf32>
    %534 = arith.mulf %531, %533 : vector<2x1x64xf32>
    %535 = arith.addf %530, %534 : vector<2x1x64xf32>
    %536 = vector.extract_strided_slice %499 {offsets = [0, 0, 448], sizes = [2, 1, 64], strides = [1, 1, 1]} : vector<2x1x512xf32> to vector<2x1x64xf32>
    %537 = vector.extract_strided_slice %501 {offsets = [0, 0, 7], sizes = [2, 1, 1], strides = [1, 1, 1]} : vector<2x1x8xf32> to vector<2x1x1xf32>
    %538 = vector.broadcast %537 : vector<2x1x1xf32> to vector<2x1x64xf32>
    %539 = arith.mulf %536, %538 : vector<2x1x64xf32>
    %540 = arith.addf %535, %539 : vector<2x1x64xf32>
    %c0_128 = arith.constant 0 : index
    %541 = arith.index_cast %c7_i32 : i32 to index
    %c0_129 = arith.constant 0 : index
    %542 = vector.load %arg29[%c0_128, %541, %c0_129] : memref<2x8x64xf32, #tpu.memory_space<vmem>>, vector<2x1x64xf32>
    tpu.vector_store %arg29[%c0_128, %541, %c0_129], %540 {strides = array<i32>} : memref<2x8x64xf32, #tpu.memory_space<vmem>>, vector<2x1x64xf32>,
    %c8_i32 = arith.constant 8 : i32
    %c0_130 = arith.constant 0 : index
    %c0_131 = arith.constant 0 : index
    %c0_132 = arith.constant 0 : index
    %543 = vector.load %arg29[%c0_130, %c0_131, %c0_132] : memref<2x8x64xf32, #tpu.memory_space<vmem>>, vector<2x8x64xf32>
    %544 = vector.shape_cast %543 : vector<2x8x64xf32> to vector<16x64xf32>
    %c0_133 = arith.constant 0 : index
    %c0_134 = arith.constant 0 : index
    %c0_135 = arith.constant 0 : index
    %545 = vector.load %arg12[%c0_133, %c0_134, %c0_135] : memref<1x1x64xf32, #tpu.memory_space<vmem>>, vector<1x1x64xf32>
    %546 = vector.shape_cast %545 : vector<1x1x64xf32> to vector<1x64xf32>
    %547 = vector.broadcast %546 : vector<1x64xf32> to vector<16x64xf32>
    %548 = arith.mulf %547, %89 : vector<16x64xf32>
    %549 = arith.addf %544, %548 : vector<16x64xf32>
    %cst_136 = arith.constant 0.000000e+00 : f32
    %550 = vector.broadcast %cst_136 : f32 to vector<16x64xf32>
    %551 = arith.subf %550, %37 : vector<16x64xf32>
    %552 = math.exp %551 : vector<16x64xf32>
    %cst_137 = arith.constant 1.000000e+00 : f32
    %553 = vector.broadcast %cst_137 : f32 to vector<16x64xf32>
    %554 = arith.addf %553, %552 : vector<16x64xf32>
    %cst_138 = arith.constant 1.000000e+00 : f32
    %555 = vector.broadcast %cst_138 : f32 to vector<16x64xf32>
    %556 = arith.divf %555, %554 : vector<16x64xf32>
    %557 = arith.mulf %37, %556 : vector<16x64xf32>
    %558 = arith.mulf %549, %557 : vector<16x64xf32>
    %559 = arith.truncf %558 : vector<16x64xf32> to vector<16x64xbf16>
    %c0_139 = arith.constant 0 : index
    %c0_140 = arith.constant 0 : index
    %c0_141 = arith.constant 0 : index
    %560 = vector.load %arg13[%c0_139, %c0_140, %c0_141] : memref<1x64x32xbf16, #tpu.memory_space<vmem>>, vector<1x64x32xbf16>
    %561 = vector.shape_cast %560 : vector<1x64x32xbf16> to vector<64x32xbf16>
    %cst_142 = arith.constant dense<0.000000e+00> : vector<16x32xf32>
    %562 = tpu.matmul %559, %561, %cst_142 {dimension_numbers = #tpu.dot_dimension_numbers<[1], [0], [0], [1], [0, 0, 1, 1], [], []>} : vector<16x64xbf16>, vector<64x32xbf16>, vector<16x32xf32> -> vector<16x32xf32>
    %563 = vector.shape_cast %562 : vector<16x32xf32> to vector<2x8x32xf32>
    %c0_143 = arith.constant 0 : index
    %c0_144 = arith.constant 0 : index
    %c0_145 = arith.constant 0 : index
    %564 = vector.load %arg24[%c0_143, %c0_144, %c0_145] : memref<2x8x32xf32, #tpu.memory_space<vmem>>, vector<2x8x32xf32>
    tpu.vector_store %arg24[%c0_143, %c0_144, %c0_145], %563 {strides = array<i32>} : memref<2x8x32xf32, #tpu.memory_space<vmem>>, vector<2x8x32xf32>,
    %c1_i32_146 = arith.constant 1 : i32
    %565 = arith.cmpi eq, %arg1, %c1_i32_146 : i32
    %566 = arith.extui %565 : i1 to i32
    %c0_i32_147 = arith.constant 0 : i32
    %567 = arith.cmpi ne, %566, %c0_i32_147 : i32
    scf.if %567 {
      %c0_148 = arith.constant 0 : index
      %c0_149 = arith.constant 0 : index
      %c0_150 = arith.constant 0 : index
      %568 = vector.load %arg24[%c0_148, %c0_149, %c0_150] : memref<2x8x32xf32, #tpu.memory_space<vmem>>, vector<2x8x32xf32>
      %c0_151 = arith.constant 0 : index
      %c0_152 = arith.constant 0 : index
      %c0_153 = arith.constant 0 : index
      %569 = vector.load %arg25[%c0_151, %c0_152, %c0_153] : memref<2x8x32xf32, #tpu.memory_space<vmem>>, vector<2x8x32xf32>
      %570 = arith.addf %568, %569 : vector<2x8x32xf32>
      %571 = vector.shape_cast %570 : vector<2x8x32xf32> to vector<16x32xf32>
      %c0_154 = arith.constant 0 : index
      %c0_155 = arith.constant 0 : index
      %572 = vector.load %arg14[%c0_154, %c0_155] : memref<1x32xf32, #tpu.memory_space<vmem>>, vector<1x32xf32>
      %c0_156 = arith.constant 0 : index
      %c0_157 = arith.constant 0 : index
      %573 = vector.load %arg15[%c0_156, %c0_157] : memref<1x32xf32, #tpu.memory_space<vmem>>, vector<1x32xf32>
      %cst_158 = arith.constant dense<0.000000e+00> : vector<16xf32>
      %574 = vector.multi_reduction <add>, %571, %cst_158 [1] : vector<16x32xf32> to vector<16xf32>
      %575 = vector.shape_cast %574 : vector<16xf32> to vector<16x1xf32>
      %cst_159 = arith.constant 3.200000e+01 : f32
      %576 = vector.broadcast %cst_159 : f32 to vector<16x1xf32>
      %577 = arith.divf %575, %576 : vector<16x1xf32>
      %578 = vector.broadcast %577 : vector<16x1xf32> to vector<16x32xf32>
      %579 = arith.subf %571, %578 : vector<16x32xf32>
      %580 = arith.mulf %579, %579 : vector<16x32xf32>
      %cst_160 = arith.constant dense<0.000000e+00> : vector<16xf32>
      %581 = vector.multi_reduction <add>, %580, %cst_160 [1] : vector<16x32xf32> to vector<16xf32>
      %582 = vector.shape_cast %581 : vector<16xf32> to vector<16x1xf32>
      %cst_161 = arith.constant 3.200000e+01 : f32
      %583 = vector.broadcast %cst_161 : f32 to vector<16x1xf32>
      %584 = arith.divf %582, %583 : vector<16x1xf32>
      %cst_162 = arith.constant 9.99999974E-6 : f32
      %585 = vector.broadcast %cst_162 : f32 to vector<16x1xf32>
      %586 = arith.addf %584, %585 : vector<16x1xf32>
      %587 = math.rsqrt %586 : vector<16x1xf32>
      %588 = vector.broadcast %587 : vector<16x1xf32> to vector<16x32xf32>
      %589 = arith.mulf %579, %588 : vector<16x32xf32>
      %590 = vector.broadcast %572 : vector<1x32xf32> to vector<16x32xf32>
      %591 = arith.mulf %589, %590 : vector<16x32xf32>
      %592 = vector.broadcast %573 : vector<1x32xf32> to vector<16x32xf32>
      %593 = arith.addf %591, %592 : vector<16x32xf32>
      %594 = vector.shape_cast %593 : vector<16x32xf32> to vector<2x8x32xf32>
      %c0_163 = arith.constant 0 : index
      %c0_164 = arith.constant 0 : index
      %c0_165 = arith.constant 0 : index
      %595 = vector.load %arg22[%c0_163, %c0_164, %c0_165] : memref<2x8x32xf32, #tpu.memory_space<vmem>>, vector<2x8x32xf32>
      tpu.vector_store %arg22[%c0_163, %c0_164, %c0_165], %594 {strides = array<i32>} : memref<2x8x32xf32, #tpu.memory_space<vmem>>, vector<2x8x32xf32>,
      %c0_166 = arith.constant 0 : index
      %c0_167 = arith.constant 0 : index
      %c0_168 = arith.constant 0 : index
      %596 = vector.load %arg3[%c0_166, %c0_167, %c0_168] : memref<2x8x1xf32, #tpu.memory_space<vmem>>, vector<2x8x1xf32>
      %597 = vector.broadcast %596 : vector<2x8x1xf32> to vector<2x8x32xf32>
      %598 = arith.mulf %594, %597 : vector<2x8x32xf32>
      %cst_169 = arith.constant dense<0.000000e+00> : vector<2x32xf32>
      %599 = vector.multi_reduction <add>, %598, %cst_169 [1] : vector<2x8x32xf32> to vector<2x32xf32>
      %600 = vector.shape_cast %599 : vector<2x32xf32> to vector<2x1x32xf32>
      %cst_170 = arith.constant dense<0.000000e+00> : vector<2x1xf32>
      %601 = vector.multi_reduction <add>, %596, %cst_170 [1] : vector<2x8x1xf32> to vector<2x1xf32>
      %602 = vector.shape_cast %601 : vector<2x1xf32> to vector<2x1x1xf32>
      %cst_171 = arith.constant 9.99999971E-10 : f32
      %603 = vector.broadcast %cst_171 : f32 to vector<2x1x1xf32>
      %604 = arith.maximumf %602, %603 : vector<2x1x1xf32>
      %605 = tpu.reciprocal %604 {approx = true} : vector<2x1x1xf32> -> vector<2x1x1xf32>
      %606 = vector.broadcast %605 : vector<2x1x1xf32> to vector<2x1x32xf32>
      %607 = arith.mulf %600, %606 : vector<2x1x32xf32>
      %c0_172 = arith.constant 0 : index
      %c0_173 = arith.constant 0 : index
      %c0_174 = arith.constant 0 : index
      %608 = vector.load %arg23[%c0_172, %c0_173, %c0_174] : memref<2x1x32xf32, #tpu.memory_space<vmem>>, vector<2x1x32xf32>
      tpu.vector_store %arg23[%c0_172, %c0_173, %c0_174], %607 {strides = array<i32>} : memref<2x1x32xf32, #tpu.memory_space<vmem>>, vector<2x1x32xf32>,
      %609 = arith.truncf %593 : vector<16x32xf32> to vector<16x32xbf16>
      %c0_175 = arith.constant 0 : index
      %c0_176 = arith.constant 0 : index
      %610 = vector.load %arg16[%c0_175, %c0_176] : memref<32x32xbf16, #tpu.memory_space<vmem>>, vector<32x32xbf16>
      %cst_177 = arith.constant dense<0.000000e+00> : vector<16x32xf32>
      %611 = tpu.matmul %609, %610, %cst_177 {dimension_numbers = #tpu.dot_dimension_numbers<[1], [0], [0], [1], [0, 0, 1, 1], [], []>} : vector<16x32xbf16>, vector<32x32xbf16>, vector<16x32xf32> -> vector<16x32xf32>
      %c0_178 = arith.constant 0 : index
      %c0_179 = arith.constant 0 : index
      %612 = vector.load %arg17[%c0_178, %c0_179] : memref<1x32xf32, #tpu.memory_space<vmem>>, vector<1x32xf32>
      %613 = vector.broadcast %612 : vector<1x32xf32> to vector<16x32xf32>
      %614 = arith.addf %611, %613 : vector<16x32xf32>
      %cst_180 = arith.constant 5.000000e-01 : f32
      %615 = vector.broadcast %cst_180 : f32 to vector<16x32xf32>
      %616 = arith.mulf %615, %614 : vector<16x32xf32>
      %cst_181 = arith.constant 0.707106769 : f32
      %617 = vector.broadcast %cst_181 : f32 to vector<16x32xf32>
      %618 = arith.mulf %614, %617 : vector<16x32xf32>
      %cst_182 = arith.constant 0.000000e+00 : f32
      %619 = vector.broadcast %cst_182 : f32 to vector<16x32xf32>
      %620 = arith.cmpf oge, %618, %619 : vector<16x32xf32>
      %cst_183 = arith.constant 1.000000e+00 : f32
      %cst_184 = arith.constant -1.000000e+00 : f32
      %621 = vector.broadcast %cst_183 : f32 to vector<16x32xf32>
      %622 = vector.broadcast %cst_184 : f32 to vector<16x32xf32>
      %623 = arith.select %620, %621, %622 : vector<16x32xi1>, vector<16x32xf32>
      %624 = math.absf %618 : vector<16x32xf32>
      %cst_185 = arith.constant 0.327591091 : f32
      %625 = vector.broadcast %cst_185 : f32 to vector<16x32xf32>
      %626 = arith.mulf %625, %624 : vector<16x32xf32>
      %cst_186 = arith.constant 1.000000e+00 : f32
      %627 = vector.broadcast %cst_186 : f32 to vector<16x32xf32>
      %628 = arith.addf %627, %626 : vector<16x32xf32>
      %cst_187 = arith.constant 1.000000e+00 : f32
      %629 = vector.broadcast %cst_187 : f32 to vector<16x32xf32>
      %630 = arith.divf %629, %628 : vector<16x32xf32>
      %cst_188 = arith.constant 1.06140542 : f32
      %631 = vector.broadcast %cst_188 : f32 to vector<16x32xf32>
      %632 = arith.mulf %631, %630 : vector<16x32xf32>
      %cst_189 = arith.constant -1.45315206 : f32
      %633 = vector.broadcast %cst_189 : f32 to vector<16x32xf32>
      %634 = arith.addf %632, %633 : vector<16x32xf32>
      %635 = arith.mulf %634, %630 : vector<16x32xf32>
      %cst_190 = arith.constant 1.42141378 : f32
      %636 = vector.broadcast %cst_190 : f32 to vector<16x32xf32>
      %637 = arith.addf %635, %636 : vector<16x32xf32>
      %638 = arith.mulf %637, %630 : vector<16x32xf32>
      %cst_191 = arith.constant -0.284496725 : f32
      %639 = vector.broadcast %cst_191 : f32 to vector<16x32xf32>
      %640 = arith.addf %638, %639 : vector<16x32xf32>
      %641 = arith.mulf %640, %630 : vector<16x32xf32>
      %cst_192 = arith.constant 0.254829586 : f32
      %642 = vector.broadcast %cst_192 : f32 to vector<16x32xf32>
      %643 = arith.addf %641, %642 : vector<16x32xf32>
      %644 = arith.mulf %643, %630 : vector<16x32xf32>
      %cst_193 = arith.constant 0.000000e+00 : f32
      %645 = vector.broadcast %cst_193 : f32 to vector<16x32xf32>
      %646 = arith.subf %645, %624 : vector<16x32xf32>
      %647 = arith.mulf %646, %624 : vector<16x32xf32>
      %648 = math.exp %647 : vector<16x32xf32>
      %649 = arith.mulf %644, %648 : vector<16x32xf32>
      %cst_194 = arith.constant 1.000000e+00 : f32
      %650 = vector.broadcast %cst_194 : f32 to vector<16x32xf32>
      %651 = arith.subf %650, %649 : vector<16x32xf32>
      %652 = arith.mulf %623, %651 : vector<16x32xf32>
      %cst_195 = arith.constant 1.000000e+00 : f32
      %653 = vector.broadcast %cst_195 : f32 to vector<16x32xf32>
      %654 = arith.addf %653, %652 : vector<16x32xf32>
      %655 = arith.mulf %616, %654 : vector<16x32xf32>
      %c0_196 = arith.constant 0 : index
      %c0_197 = arith.constant 0 : index
      %656 = vector.load %arg18[%c0_196, %c0_197] : memref<1x32xf32, #tpu.memory_space<vmem>>, vector<1x32xf32>
      %c0_198 = arith.constant 0 : index
      %c0_199 = arith.constant 0 : index
      %657 = vector.load %arg19[%c0_198, %c0_199] : memref<1x32xf32, #tpu.memory_space<vmem>>, vector<1x32xf32>
      %cst_200 = arith.constant dense<0.000000e+00> : vector<16xf32>
      %658 = vector.multi_reduction <add>, %655, %cst_200 [1] : vector<16x32xf32> to vector<16xf32>
      %659 = vector.shape_cast %658 : vector<16xf32> to vector<16x1xf32>
      %cst_201 = arith.constant 3.200000e+01 : f32
      %660 = vector.broadcast %cst_201 : f32 to vector<16x1xf32>
      %661 = arith.divf %659, %660 : vector<16x1xf32>
      %662 = vector.broadcast %661 : vector<16x1xf32> to vector<16x32xf32>
      %663 = arith.subf %655, %662 : vector<16x32xf32>
      %664 = arith.mulf %663, %663 : vector<16x32xf32>
      %cst_202 = arith.constant dense<0.000000e+00> : vector<16xf32>
      %665 = vector.multi_reduction <add>, %664, %cst_202 [1] : vector<16x32xf32> to vector<16xf32>
      %666 = vector.shape_cast %665 : vector<16xf32> to vector<16x1xf32>
      %cst_203 = arith.constant 3.200000e+01 : f32
      %667 = vector.broadcast %cst_203 : f32 to vector<16x1xf32>
      %668 = arith.divf %666, %667 : vector<16x1xf32>
      %cst_204 = arith.constant 9.99999974E-6 : f32
      %669 = vector.broadcast %cst_204 : f32 to vector<16x1xf32>
      %670 = arith.addf %668, %669 : vector<16x1xf32>
      %671 = math.rsqrt %670 : vector<16x1xf32>
      %672 = vector.broadcast %671 : vector<16x1xf32> to vector<16x32xf32>
      %673 = arith.mulf %663, %672 : vector<16x32xf32>
      %674 = vector.broadcast %656 : vector<1x32xf32> to vector<16x32xf32>
      %675 = arith.mulf %673, %674 : vector<16x32xf32>
      %676 = vector.broadcast %657 : vector<1x32xf32> to vector<16x32xf32>
      %677 = arith.addf %675, %676 : vector<16x32xf32>
      %678 = arith.truncf %677 : vector<16x32xf32> to vector<16x32xbf16>
      %c0_205 = arith.constant 0 : index
      %c0_206 = arith.constant 0 : index
      %679 = vector.load %arg20[%c0_205, %c0_206] : memref<32x64xbf16, #tpu.memory_space<vmem>>, vector<32x64xbf16>
      %cst_207 = arith.constant dense<0.000000e+00> : vector<16x64xf32>
      %680 = tpu.matmul %678, %679, %cst_207 {dimension_numbers = #tpu.dot_dimension_numbers<[1], [0], [0], [1], [0, 0, 1, 1], [], []>} : vector<16x32xbf16>, vector<32x64xbf16>, vector<16x64xf32> -> vector<16x64xf32>
      %681 = vector.shape_cast %680 : vector<16x64xf32> to vector<2x8x64xf32>
      %c0_208 = arith.constant 0 : index
      %c0_209 = arith.constant 0 : index
      %c0_210 = arith.constant 0 : index
      %682 = vector.load %arg21[%c0_208, %c0_209, %c0_210] : memref<2x8x64xf32, #tpu.memory_space<vmem>>, vector<2x8x64xf32>
      tpu.vector_store %arg21[%c0_208, %c0_209, %c0_210], %681 {strides = array<i32>} : memref<2x8x64xf32, #tpu.memory_space<vmem>>, vector<2x8x64xf32>,
    } else {
    }
    return
  }
  func.func @transform_0(%arg0: i32, %arg1: i32) -> (i32, i32, i32) {
    %c0_i32 = arith.constant 0 : i32
    %c0_i32_0 = arith.constant 0 : i32
    %c0_i32_1 = arith.constant 0 : i32
    return %arg0, %c0_i32, %c0_i32_0 : i32, i32, i32
  }
  func.func @transform_1(%arg0: i32, %arg1: i32) -> (i32, i32, i32) {
    %c0_i32 = arith.constant 0 : i32
    %c0_i32_0 = arith.constant 0 : i32
    %c0_i32_1 = arith.constant 0 : i32
    return %arg0, %c0_i32, %c0_i32_0 : i32, i32, i32
  }
  func.func @transform_2(%arg0: i32, %arg1: i32) -> (i32, i32, i32) {
    %c0_i32 = arith.constant 0 : i32
    %c0_i32_0 = arith.constant 0 : i32
    %c0_i32_1 = arith.constant 0 : i32
    return %arg1, %c0_i32, %c0_i32_0 : i32, i32, i32
  }
  func.func @transform_3(%arg0: i32, %arg1: i32) -> (i32, i32, i32) {
    %c0_i32 = arith.constant 0 : i32
    %c0_i32_0 = arith.constant 0 : i32
    %c0_i32_1 = arith.constant 0 : i32
    return %arg1, %c0_i32, %c0_i32_0 : i32, i32, i32
  }
  func.func @transform_4(%arg0: i32, %arg1: i32) -> (i32, i32, i32) {
    %c0_i32 = arith.constant 0 : i32
    %c0_i32_0 = arith.constant 0 : i32
    %c0_i32_1 = arith.constant 0 : i32
    return %arg1, %c0_i32, %c0_i32_0 : i32, i32, i32
  }
  func.func @transform_5(%arg0: i32, %arg1: i32) -> (i32, i32, i32) {
    %c0_i32 = arith.constant 0 : i32
    %c0_i32_0 = arith.constant 0 : i32
    %c0_i32_1 = arith.constant 0 : i32
    return %arg1, %c0_i32, %c0_i32_0 : i32, i32, i32
  }
  func.func @transform_6(%arg0: i32, %arg1: i32) -> (i32, i32, i32) {
    %c0_i32 = arith.constant 0 : i32
    %c0_i32_0 = arith.constant 0 : i32
    %c0_i32_1 = arith.constant 0 : i32
    return %arg1, %c0_i32, %c0_i32_0 : i32, i32, i32
  }
  func.func @transform_7(%arg0: i32, %arg1: i32) -> (i32, i32, i32) {
    %c0_i32 = arith.constant 0 : i32
    %c0_i32_0 = arith.constant 0 : i32
    %c0_i32_1 = arith.constant 0 : i32
    return %arg1, %c0_i32, %c0_i32_0 : i32, i32, i32
  }
  func.func @transform_8(%arg0: i32, %arg1: i32) -> (i32, i32, i32) {
    %c0_i32 = arith.constant 0 : i32
    %c0_i32_0 = arith.constant 0 : i32
    %c0_i32_1 = arith.constant 0 : i32
    return %arg1, %c0_i32, %c0_i32_0 : i32, i32, i32
  }
  func.func @transform_9(%arg0: i32, %arg1: i32) -> (i32, i32, i32) {
    %c0_i32 = arith.constant 0 : i32
    %c0_i32_0 = arith.constant 0 : i32
    %c0_i32_1 = arith.constant 0 : i32
    return %arg1, %c0_i32, %c0_i32_0 : i32, i32, i32
  }
  func.func @transform_10(%arg0: i32, %arg1: i32) -> (i32, i32, i32) {
    %c0_i32 = arith.constant 0 : i32
    %c0_i32_0 = arith.constant 0 : i32
    %c0_i32_1 = arith.constant 0 : i32
    return %arg1, %c0_i32, %c0_i32_0 : i32, i32, i32
  }
  func.func @transform_11(%arg0: i32, %arg1: i32) -> (i32, i32, i32) {
    %c0_i32 = arith.constant 0 : i32
    %c0_i32_0 = arith.constant 0 : i32
    %c0_i32_1 = arith.constant 0 : i32
    return %arg1, %c0_i32, %c0_i32_0 : i32, i32, i32
  }
  func.func @transform_12(%arg0: i32, %arg1: i32) -> (i32, i32) {
    %c0_i32 = arith.constant 0 : i32
    %c0_i32_0 = arith.constant 0 : i32
    %c0_i32_1 = arith.constant 0 : i32
    return %c0_i32, %c0_i32_0 : i32, i32
  }
  func.func @transform_13(%arg0: i32, %arg1: i32) -> (i32, i32) {
    %c0_i32 = arith.constant 0 : i32
    %c0_i32_0 = arith.constant 0 : i32
    %c0_i32_1 = arith.constant 0 : i32
    return %c0_i32, %c0_i32_0 : i32, i32
  }
  func.func @transform_14(%arg0: i32, %arg1: i32) -> (i32, i32) {
    %c0_i32 = arith.constant 0 : i32
    %c0_i32_0 = arith.constant 0 : i32
    %c0_i32_1 = arith.constant 0 : i32
    return %c0_i32, %c0_i32_0 : i32, i32
  }
  func.func @transform_15(%arg0: i32, %arg1: i32) -> (i32, i32) {
    %c0_i32 = arith.constant 0 : i32
    %c0_i32_0 = arith.constant 0 : i32
    %c0_i32_1 = arith.constant 0 : i32
    return %c0_i32, %c0_i32_0 : i32, i32
  }
  func.func @transform_16(%arg0: i32, %arg1: i32) -> (i32, i32) {
    %c0_i32 = arith.constant 0 : i32
    %c0_i32_0 = arith.constant 0 : i32
    %c0_i32_1 = arith.constant 0 : i32
    return %c0_i32, %c0_i32_0 : i32, i32
  }
  func.func @transform_17(%arg0: i32, %arg1: i32) -> (i32, i32) {
    %c0_i32 = arith.constant 0 : i32
    %c0_i32_0 = arith.constant 0 : i32
    %c0_i32_1 = arith.constant 0 : i32
    return %c0_i32, %c0_i32_0 : i32, i32
  }
  func.func @transform_18(%arg0: i32, %arg1: i32) -> (i32, i32) {
    %c0_i32 = arith.constant 0 : i32
    %c0_i32_0 = arith.constant 0 : i32
    %c0_i32_1 = arith.constant 0 : i32
    return %c0_i32, %c0_i32_0 : i32, i32
  }
  func.func @transform_19(%arg0: i32, %arg1: i32) -> (i32, i32, i32) {
    %c0_i32 = arith.constant 0 : i32
    %c0_i32_0 = arith.constant 0 : i32
    %c0_i32_1 = arith.constant 0 : i32
    return %arg0, %c0_i32, %c0_i32_0 : i32, i32, i32
  }
  func.func @transform_20(%arg0: i32, %arg1: i32) -> (i32, i32, i32) {
    %c0_i32 = arith.constant 0 : i32
    %c0_i32_0 = arith.constant 0 : i32
    %c0_i32_1 = arith.constant 0 : i32
    return %arg0, %c0_i32, %c0_i32_0 : i32, i32, i32
  }
  func.func @transform_21(%arg0: i32, %arg1: i32) -> (i32, i32, i32) {
    %c0_i32 = arith.constant 0 : i32
    %c0_i32_0 = arith.constant 0 : i32
    %c0_i32_1 = arith.constant 0 : i32
    return %arg0, %c0_i32, %c0_i32_0 : i32, i32, i32
  }
}

</mosaic_0001>

<llo_original>
// kernel: tpu_custom_call.1
$region0: #{tpu_custom_call.1}
  #allocation0 [shape = 'u32[]', space=smem, size = 0x4, offset = 0x4, fixed_abs, tag = 'smem constant byte address 0x4 - core index']
  #allocation1 [shape = 'u32[144,128]{1,0:T(1,128)}', space=vmem, size = 0x12000, scoped, tag = 'internal scratch']
  #allocation2 [shape = 'f32[2,8,32]{2,1,0:T(8,128)}', space=vmem, size = 0x2000, scoped, tag = 'scratch operand']
  #allocation3 [shape = 'f32[2,8,32]{2,1,0:T(8,128)}', space=vmem, size = 0x2000, scoped, tag = 'scratch operand']
  #allocation4 [shape = 'f32[2,8,512]{2,1,0:T(8,128)}', space=vmem, size = 0x8000, scoped, tag = 'scratch operand']
  #allocation5 [shape = 'f32[2,8,512]{2,1,0:T(8,128)}', space=vmem, size = 0x8000, scoped, tag = 'scratch operand']
  #allocation6 [shape = 'f32[2,8,8]{2,1,0:T(8,128)}', space=vmem, size = 0x2000, scoped, tag = 'scratch operand']
  #allocation7 [shape = 'f32[2,8,64]{2,1,0:T(8,128)}', space=vmem, size = 0x2000, scoped, tag = 'scratch operand']
  %s0 = inlined_call_operand.hbm [shape: f32[2,8,32], index: 0, kind: input, shape index: {}]
  %s1 = inlined_call_operand.vmem [shape: f32[2,8,1], index: 1, kind: input, shape index: {}]
  %s2 = inlined_call_operand.hbm [shape: f32[2,1,32], index: 2, kind: input, shape index: {}]
  %s3 = inlined_call_operand.hbm [shape: f32[2,1,32], index: 3, kind: input, shape index: {}]
  %s4 = inlined_call_operand.hbm [shape: bf16[2,32,128], index: 4, kind: input, shape index: {}]
  %s5 = inlined_call_operand.hbm [shape: f32[2,4,64], index: 5, kind: input, shape index: {}]
  %s6 = inlined_call_operand.hbm [shape: f32[2,1,64], index: 6, kind: input, shape index: {}]
  %s7 = inlined_call_operand.vmem [shape: f32[2,64,128], index: 7, kind: input, shape index: {}]
  %s8 = inlined_call_operand.hbm [shape: f32[2,1,64], index: 8, kind: input, shape index: {}]
  %s9 = inlined_call_operand.hbm [shape: f32[2,1,512], index: 9, kind: input, shape index: {}]
  %s10 = inlined_call_operand.vmem [shape: f32[2,1,64], index: 10, kind: input, shape index: {}]
  %s11 = inlined_call_operand.vmem [shape: bf16[2,64,32], index: 11, kind: input, shape index: {}]
  %s12 = inlined_call_operand.vmem [shape: f32[1,32], index: 12, kind: input, shape index: {}]
  %s13 = inlined_call_operand.hbm [shape: f32[1,32], index: 13, kind: input, shape index: {}]
  %s14 = inlined_call_operand.vmem [shape: bf16[32,32], index: 14, kind: input, shape index: {}]
  %s15 = inlined_call_operand.vmem [shape: f32[1,32], index: 15, kind: input, shape index: {}]
  %s16 = inlined_call_operand.vmem [shape: f32[1,32], index: 16, kind: input, shape index: {}]
  %s17 = inlined_call_operand.vmem [shape: f32[1,32], index: 17, kind: input, shape index: {}]
  %s18 = inlined_call_operand.vmem [shape: bf16[32,64], index: 18, kind: input, shape index: {}]
  %s19 = inlined_call_operand.hbm [shape: f32[2,8,64], index: 19, kind: output, shape index: {0}]
  %s20 = inlined_call_operand.hbm [shape: f32[2,8,32], index: 20, kind: output, shape index: {1}]
  %s21 = inlined_call_operand.hbm [shape: f32[2,1,32], index: 21, kind: output, shape index: {2}]
  %22 = xla_tuple %s19, %s20, %s21
  %s23 = sld [smem:[#allocation0]]
  $region169: #{tpu_custom_call.1} parent=0
    _
  %s25 = ssub.s32 1, %s23
  %s26 = scalar_select 0, %s25, %s23
  $region1: #{tpu_custom_call.1} parent=0
    #allocation8 [shape = 'u8[8192]{0}', space=vmem, size = 0x2000, scoped, tag = 'input window, operand 0, single buffered']
    #allocation9 [shape = 's32[2]{0}', space=sflag, size = 0x8, scoped, tag = 'scoped memory for tpu_custom_call.1']
    #allocation10 [shape = 's32[2]{0}', space=sflag, size = 0x8, scoped, tag = 'scoped memory for tpu_custom_call.1']
    #allocation11 [shape = 'u8[1024]{0}', space=vmem, size = 0x400, scoped, tag = 'input window, operand 2']
    #allocation12 [shape = 's32[2]{0}', space=sflag, size = 0x8, scoped, tag = 'scoped memory for tpu_custom_call.1']
    #allocation13 [shape = 'u8[1024]{0}', space=vmem, size = 0x400, scoped, tag = 'input window, operand 3']
    #allocation14 [shape = 'u8[16384]{0}', space=vmem, size = 0x4000, scoped, tag = 'input window, operand 4']
    #allocation15 [shape = 's32[2]{0}', space=sflag, size = 0x8, scoped, tag = 'scoped memory for tpu_custom_call.1']
    #allocation16 [shape = 'u8[4096]{0}', space=vmem, size = 0x1000, scoped, tag = 'input window, operand 5']
    #allocation17 [shape = 'u8[1024]{0}', space=vmem, size = 0x400, scoped, tag = 'input window, operand 6']
    #allocation18 [shape = 's32[2]{0}', space=sflag, size = 0x8, scoped, tag = 'scoped memory for tpu_custom_call.1']
    #allocation19 [shape = 'u8[1024]{0}', space=vmem, size = 0x400, scoped, tag = 'input window, operand 8']
    #allocation20 [shape = 'u8[4096]{0}', space=vmem, size = 0x1000, scoped, tag = 'input window, operand 9']
    #allocation21 [shape = 's32[2]{0}', space=sflag, size = 0x8, scoped, tag = 'scoped memory for tpu_custom_call.1']
    #allocation22 [shape = 'u8[512]{0}', space=vmem, size = 0x400, scoped, tag = 'input window, operand 13, single buffered']
    #allocation23 [shape = 'u8[8192]{0}', space=vmem, size = 0x2000, scoped, tag = 'output window, operand 0, single buffered']
    #allocation24 [shape = 'u8[8192]{0}', space=vmem, size = 0x2000, scoped, tag = 'output window, operand 1, single buffered']
    #allocation25 [shape = 's32[1]{0}', space=sflag, size = 0x4, scoped, tag = 'scoped memory for tpu_custom_call.1']
    #allocation26 [shape = 'u8[1024]{0}', space=vmem, size = 0x400, scoped, tag = 'output window, operand 2, single buffered']
    %27 = vsyncpa [#allocation9], 0
    %28 = vsyncpa [#allocation12], 0
    %s29 = scalar_lea.sflag [#allocation12], 1
    %30 = vsyncpa %s29, 0
    %31 = vsyncpa [#allocation15], 0
    %s32 = scalar_lea.sflag [#allocation15], 1
    %33 = vsyncpa %s32, 0
    %34 = vsyncpa [#allocation18], 0
    %s35 = scalar_lea.sflag [#allocation18], 1
    %36 = vsyncpa %s35, 0
    %37 = vsyncpa [#allocation21], 0
    %s38 = scalar_lea.sflag [#allocation21], 1
    %39 = vsyncpa %s38, 0
    %40 = vsyncpa [#allocation10], 0
    %41 = vsyncpa [#allocation25], 0
    loop: start=0, step=1, limit=4
    $region2: #{tpu_custom_call.1} parent=1 // loop_pre_header
      _
    $region3: #{tpu_custom_call.1} parent=1 // loop_header
      %s43 = sphi 0, %s47
      %p44 = scmp.ge.s32.totalorder %s43, 4
      %s50 = sphi 0, %s62
      %s51 = sphi 0, %s58
      %s52 = sphi 0, %s50
      %s53 = sphi 0, %s51
      %s54 = sphi 0, %s52
      %s55 = sphi 0, %s53
      %s65 = sphi 0, %s67
      %s68 = sphi 0, %s65
      %s69 = sphi 0, %s68
      %s85 = sphi 0, %s69
      %s91 = sphi 0, %s93
      %s94 = sphi 0, %s91
      %s95 = sphi 0, %s94
      %s111 = sphi 0, %s95
      %s117 = sphi 0, %s119
      %s120 = sphi 0, %s117
      %s121 = sphi 0, %s120
      %s137 = sphi 0, %s121
      %s143 = sphi 0, %s145
      %s146 = sphi 0, %s143
      %s147 = sphi 0, %s146
      %s163 = sphi 0, %s147
      %s169 = sphi 0, %s171
      %s172 = sphi 0, %s169
      %s173 = sphi 0, %s172
      %s189 = sphi 0, %s173
      %s195 = sphi 0, %s197
      %s198 = sphi 0, %s195
      %s199 = sphi 0, %s198
      %s215 = sphi 0, %s199
      %s221 = sphi 0, %s223
      %s224 = sphi 0, %s221
      %s225 = sphi 0, %s224
      %s241 = sphi 0, %s225
      %s247 = sphi 0, %s249
      %s250 = sphi 0, %s247
      %s251 = sphi 0, %s250
      %s267 = sphi 0, %s251
      %s273 = sphi 0, %s275
      %s276 = sphi 0, %s273
      %s277 = sphi 0, %s276
      %s293 = sphi 0, %s277
      %s299 = sphi 0, %s301
      %s302 = sphi 0, %s299
      %s303 = sphi 0, %s302
      %s319 = sphi 0, %s303
      %s325 = sphi 0, %s327
      %s328 = sphi 0, %s325
      %s329 = sphi 0, %s328
      %s345 = sphi 0, %s329
      %s351 = sphi 0, %s353
      %s354 = sphi 0, %s351
      %s355 = sphi 0, %s354
      %s371 = sphi 0, %s355
      %s375 = sphi 0, %s375
      %s377 = sphi 0, %s375
      %s378 = sphi 0, %s377
      %s392 = sphi 0, %s378
      %s396 = sphi 0, %s396
      %s398 = sphi 0, %s396
      %s399 = sphi 0, %s398
      %s413 = sphi 0, %s399
      %s417 = sphi 0, %s417
      %s419 = sphi 0, %s417
      %s420 = sphi 0, %s419
      %s434 = sphi 0, %s420
      %s438 = sphi 0, %s438
      %s440 = sphi 0, %s438
      %s441 = sphi 0, %s440
      %s455 = sphi 0, %s441
      %s459 = sphi 0, %s459
      %s461 = sphi 0, %s459
      %s462 = sphi 0, %s461
      %s476 = sphi 0, %s462
      %s480 = sphi 0, %s480
      %s482 = sphi 0, %s480
      %s483 = sphi 0, %s482
      %s497 = sphi 0, %s483
      %s501 = sphi 0, %s501
      %s503 = sphi 0, %s501
      %s504 = sphi 0, %s503
      %s518 = sphi 0, %s504
      %s524 = sphi 0, %s526
      %s527 = sphi 0, %s524
      %s528 = sphi 0, %s527
      %s544 = sphi 0, %s528
      %s550 = sphi 0, %s552
      %s553 = sphi 0, %s550
      %s554 = sphi 0, %s553
      %s570 = sphi 0, %s554
      %s576 = sphi 0, %s578
      %s579 = sphi 0, %s576
      %s580 = sphi 0, %s579
      %s596 = sphi 0, %s580
    $region4: #{tpu_custom_call.1} parent=1 // loop_header_branch
      %46 = sbr.rel (%p44) target = $region8
    $region5: #{tpu_custom_call.1} parent=1 // loop_body
      %s48 = ssub.s32 %s43, 1
      %s49 = ssub.s32 %s43, 2
      %s56 = sadd.s32 1, %s51
      %p57 = scmp.ge.s32.totalorder %s56, 2
      %s58 = scalar_select %p57, 0, %s56
      %s59 = sadd.s32 1, %s50
      %s60 = scalar_select %p57, %s59, %s50
      %p61 = scmp.ge.s32.totalorder %s60, 1
      %s62 = scalar_select %p61, 0, %s60
      %s63 = ssub.s32 %s50, %s62
      %p64 = scmp.eq.s32.totalorder %s63, 0
      %s66 = sadd.s32 %s65, 1
      %s67 = scalar_select %p64, %s65, %s66
      %p70 = pneg %p64
      %p71 = scmp.eq.s32.totalorder %s43, 1
      %p72 = por %p70, %p71
      %p73 = scmp.ne.s32.totalorder %s65, %s68
      %p74 = scmp.eq.s32.totalorder %s43, 0
      %p75 = por %p73, %p74
      %p76 = scmp.ne.s32.totalorder %s65, %s68
      %p77 = scmp.eq.s32.totalorder %s48, 1
      %p78 = por %p76, %p77
      %p79 = scmp.ne.s32.totalorder %s68, %s69
      %p80 = scmp.eq.s32.totalorder %s48, 0
      %p81 = por %p79, %p80
      %p82 = scmp.ne.s32.totalorder %s68, %s69
      %p83 = scmp.eq.s32.totalorder %s49, 1
      %p84 = por %p82, %p83
      %p86 = scmp.ne.s32.totalorder %s69, %s85
      %p87 = scmp.eq.s32.totalorder %s49, 0
      %p88 = por %p86, %p87
      %s89 = ssub.s32 %s50, %s62
      %p90 = scmp.eq.s32.totalorder %s89, 0
      %s92 = sadd.s32 %s91, 1
      %s93 = scalar_select %p90, %s91, %s92
      %p96 = pneg %p90
      %p97 = scmp.eq.s32.totalorder %s43, 1
      %p98 = por %p96, %p97
      %p99 = scmp.ne.s32.totalorder %s91, %s94
      %p100 = scmp.eq.s32.totalorder %s43, 0
      %p101 = por %p99, %p100
      %p102 = scmp.ne.s32.totalorder %s91, %s94
      %p103 = scmp.eq.s32.totalorder %s48, 1
      %p104 = por %p102, %p103
      %p105 = scmp.ne.s32.totalorder %s94, %s95
      %p106 = scmp.eq.s32.totalorder %s48, 0
      %p107 = por %p105, %p106
      %p108 = scmp.ne.s32.totalorder %s94, %s95
      %p109 = scmp.eq.s32.totalorder %s49, 1
      %p110 = por %p108, %p109
      %p112 = scmp.ne.s32.totalorder %s95, %s111
      %p113 = scmp.eq.s32.totalorder %s49, 0
      %p114 = por %p112, %p113
      %s115 = ssub.s32 %s51, %s58
      %p116 = scmp.eq.s32.totalorder %s115, 0
      %s118 = sadd.s32 %s117, 1
      %s119 = scalar_select %p116, %s117, %s118
      %p122 = pneg %p116
      %p123 = scmp.eq.s32.totalorder %s43, 1
      %p124 = por %p122, %p123
      %p125 = scmp.ne.s32.totalorder %s117, %s120
      %p126 = scmp.eq.s32.totalorder %s43, 0
      %p127 = por %p125, %p126
      %p128 = scmp.ne.s32.totalorder %s117, %s120
      %p129 = scmp.eq.s32.totalorder %s48, 1
      %p130 = por %p128, %p129
      %p131 = scmp.ne.s32.totalorder %s120, %s121
      %p132 = scmp.eq.s32.totalorder %s48, 0
      %p133 = por %p131, %p132
      %p134 = scmp.ne.s32.totalorder %s120, %s121
      %p135 = scmp.eq.s32.totalorder %s49, 1
      %p136 = por %p134, %p135
      %p138 = scmp.ne.s32.totalorder %s121, %s137
      %p139 = scmp.eq.s32.totalorder %s49, 0
      %p140 = por %p138, %p139
      %s141 = ssub.s32 %s51, %s58
      %p142 = scmp.eq.s32.totalorder %s141, 0
      %s144 = sadd.s32 %s143, 1
      %s145 = scalar_select %p142, %s143, %s144
      %p148 = pneg %p142
      %p149 = scmp.eq.s32.totalorder %s43, 1
      %p150 = por %p148, %p149
      %p151 = scmp.ne.s32.totalorder %s143, %s146
      %p152 = scmp.eq.s32.totalorder %s43, 0
      %p153 = por %p151, %p152
      %p154 = scmp.ne.s32.totalorder %s143, %s146
      %p155 = scmp.eq.s32.totalorder %s48, 1
      %p156 = por %p154, %p155
      %p157 = scmp.ne.s32.totalorder %s146, %s147
      %p158 = scmp.eq.s32.totalorder %s48, 0
      %p159 = por %p157, %p158
      %p160 = scmp.ne.s32.totalorder %s146, %s147
      %p161 = scmp.eq.s32.totalorder %s49, 1
      %p162 = por %p160, %p161
      %p164 = scmp.ne.s32.totalorder %s147, %s163
      %p165 = scmp.eq.s32.totalorder %s49, 0
      %p166 = por %p164, %p165
      %s167 = ssub.s32 %s51, %s58
      %p168 = scmp.eq.s32.totalorder %s167, 0
      %s170 = sadd.s32 %s169, 1
      %s171 = scalar_select %p168, %s169, %s170
      %p174 = pneg %p168
      %p175 = scmp.eq.s32.totalorder %s43, 1
      %p176 = por %p174, %p175
      %p177 = scmp.ne.s32.totalorder %s169, %s172
      %p178 = scmp.eq.s32.totalorder %s43, 0
      %p179 = por %p177, %p178
      %p180 = scmp.ne.s32.totalorder %s169, %s172
      %p181 = scmp.eq.s32.totalorder %s48, 1
      %p182 = por %p180, %p181
      %p183 = scmp.ne.s32.totalorder %s172, %s173
      %p184 = scmp.eq.s32.totalorder %s48, 0
      %p185 = por %p183, %p184
      %p186 = scmp.ne.s32.totalorder %s172, %s173
      %p187 = scmp.eq.s32.totalorder %s49, 1
      %p188 = por %p186, %p187
      %p190 = scmp.ne.s32.totalorder %s173, %s189
      %p191 = scmp.eq.s32.totalorder %s49, 0
      %p192 = por %p190, %p191
      %s193 = ssub.s32 %s51, %s58
      %p194 = scmp.eq.s32.totalorder %s193, 0
      %s196 = sadd.s32 %s195, 1
      %s197 = scalar_select %p194, %s195, %s196
      %p200 = pneg %p194
      %p201 = scmp.eq.s32.totalorder %s43, 1
      %p202 = por %p200, %p201
      %p203 = scmp.ne.s32.totalorder %s195, %s198
      %p204 = scmp.eq.s32.totalorder %s43, 0
      %p205 = por %p203, %p204
      %p206 = scmp.ne.s32.totalorder %s195, %s198
      %p207 = scmp.eq.s32.totalorder %s48, 1
      %p208 = por %p206, %p207
      %p209 = scmp.ne.s32.totalorder %s198, %s199
      %p210 = scmp.eq.s32.totalorder %s48, 0
      %p211 = por %p209, %p210
      %p212 = scmp.ne.s32.totalorder %s198, %s199
      %p213 = scmp.eq.s32.totalorder %s49, 1
      %p214 = por %p212, %p213
      %p216 = scmp.ne.s32.totalorder %s199, %s215
      %p217 = scmp.eq.s32.totalorder %s49, 0
      %p218 = por %p216, %p217
      %s219 = ssub.s32 %s51, %s58
      %p220 = scmp.eq.s32.totalorder %s219, 0
      %s222 = sadd.s32 %s221, 1
      %s223 = scalar_select %p220, %s221, %s222
      %p226 = pneg %p220
      %p227 = scmp.eq.s32.totalorder %s43, 1
      %p228 = por %p226, %p227
      %p229 = scmp.ne.s32.totalorder %s221, %s224
      %p230 = scmp.eq.s32.totalorder %s43, 0
      %p231 = por %p229, %p230
      %p232 = scmp.ne.s32.totalorder %s221, %s224
      %p233 = scmp.eq.s32.totalorder %s48, 1
      %p234 = por %p232, %p233
      %p235 = scmp.ne.s32.totalorder %s224, %s225
      %p236 = scmp.eq.s32.totalorder %s48, 0
      %p237 = por %p235, %p236
      %p238 = scmp.ne.s32.totalorder %s224, %s225
      %p239 = scmp.eq.s32.totalorder %s49, 1
      %p240 = por %p238, %p239
      %p242 = scmp.ne.s32.totalorder %s225, %s241
      %p243 = scmp.eq.s32.totalorder %s49, 0
      %p244 = por %p242, %p243
      %s245 = ssub.s32 %s51, %s58
      %p246 = scmp.eq.s32.totalorder %s245, 0
      %s248 = sadd.s32 %s247, 1
      %s249 = scalar_select %p246, %s247, %s248
      %p252 = pneg %p246
      %p253 = scmp.eq.s32.totalorder %s43, 1
      %p254 = por %p252, %p253
      %p255 = scmp.ne.s32.totalorder %s247, %s250
      %p256 = scmp.eq.s32.totalorder %s43, 0
      %p257 = por %p255, %p256
      %p258 = scmp.ne.s32.totalorder %s247, %s250
      %p259 = scmp.eq.s32.totalorder %s48, 1
      %p260 = por %p258, %p259
      %p261 = scmp.ne.s32.totalorder %s250, %s251
      %p262 = scmp.eq.s32.totalorder %s48, 0
      %p263 = por %p261, %p262
      %p264 = scmp.ne.s32.totalorder %s250, %s251
      %p265 = scmp.eq.s32.totalorder %s49, 1
      %p266 = por %p264, %p265
      %p268 = scmp.ne.s32.totalorder %s251, %s267
      %p269 = scmp.eq.s32.totalorder %s49, 0
      %p270 = por %p268, %p269
      %s271 = ssub.s32 %s51, %s58
      %p272 = scmp.eq.s32.totalorder %s271, 0
      %s274 = sadd.s32 %s273, 1
      %s275 = scalar_select %p272, %s273, %s274
      %p278 = pneg %p272
      %p279 = scmp.eq.s32.totalorder %s43, 1
      %p280 = por %p278, %p279
      %p281 = scmp.ne.s32.totalorder %s273, %s276
      %p282 = scmp.eq.s32.totalorder %s43, 0
      %p283 = por %p281, %p282
      %p284 = scmp.ne.s32.totalorder %s273, %s276
      %p285 = scmp.eq.s32.totalorder %s48, 1
      %p286 = por %p284, %p285
      %p287 = scmp.ne.s32.totalorder %s276, %s277
      %p288 = scmp.eq.s32.totalorder %s48, 0
      %p289 = por %p287, %p288
      %p290 = scmp.ne.s32.totalorder %s276, %s277
      %p291 = scmp.eq.s32.totalorder %s49, 1
      %p292 = por %p290, %p291
      %p294 = scmp.ne.s32.totalorder %s277, %s293
      %p295 = scmp.eq.s32.totalorder %s49, 0
      %p296 = por %p294, %p295
      %s297 = ssub.s32 %s51, %s58
      %p298 = scmp.eq.s32.totalorder %s297, 0
      %s300 = sadd.s32 %s299, 1
      %s301 = scalar_select %p298, %s299, %s300
      %p304 = pneg %p298
      %p305 = scmp.eq.s32.totalorder %s43, 1
      %p306 = por %p304, %p305
      %p307 = scmp.ne.s32.totalorder %s299, %s302
      %p308 = scmp.eq.s32.totalorder %s43, 0
      %p309 = por %p307, %p308
      %p310 = scmp.ne.s32.totalorder %s299, %s302
      %p311 = scmp.eq.s32.totalorder %s48, 1
      %p312 = por %p310, %p311
      %p313 = scmp.ne.s32.totalorder %s302, %s303
      %p314 = scmp.eq.s32.totalorder %s48, 0
      %p315 = por %p313, %p314
      %p316 = scmp.ne.s32.totalorder %s302, %s303
      %p317 = scmp.eq.s32.totalorder %s49, 1
      %p318 = por %p316, %p317
      %p320 = scmp.ne.s32.totalorder %s303, %s319
      %p321 = scmp.eq.s32.totalorder %s49, 0
      %p322 = por %p320, %p321
      %s323 = ssub.s32 %s51, %s58
      %p324 = scmp.eq.s32.totalorder %s323, 0
      %s326 = sadd.s32 %s325, 1
      %s327 = scalar_select %p324, %s325, %s326
      %p330 = pneg %p324
      %p331 = scmp.eq.s32.totalorder %s43, 1
      %p332 = por %p330, %p331
      %p333 = scmp.ne.s32.totalorder %s325, %s328
      %p334 = scmp.eq.s32.totalorder %s43, 0
      %p335 = por %p333, %p334
      %p336 = scmp.ne.s32.totalorder %s325, %s328
      %p337 = scmp.eq.s32.totalorder %s48, 1
      %p338 = por %p336, %p337
      %p339 = scmp.ne.s32.totalorder %s328, %s329
      %p340 = scmp.eq.s32.totalorder %s48, 0
      %p341 = por %p339, %p340
      %p342 = scmp.ne.s32.totalorder %s328, %s329
      %p343 = scmp.eq.s32.totalorder %s49, 1
      %p344 = por %p342, %p343
      %p346 = scmp.ne.s32.totalorder %s329, %s345
      %p347 = scmp.eq.s32.totalorder %s49, 0
      %p348 = por %p346, %p347
      %s349 = ssub.s32 %s51, %s58
      %p350 = scmp.eq.s32.totalorder %s349, 0
      %s352 = sadd.s32 %s351, 1
      %s353 = scalar_select %p350, %s351, %s352
      %p356 = pneg %p350
      %p357 = scmp.eq.s32.totalorder %s43, 1
      %p358 = por %p356, %p357
      %p359 = scmp.ne.s32.totalorder %s351, %s354
      %p360 = scmp.eq.s32.totalorder %s43, 0
      %p361 = por %p359, %p360
      %p362 = scmp.ne.s32.totalorder %s351, %s354
      %p363 = scmp.eq.s32.totalorder %s48, 1
      %p364 = por %p362, %p363
      %p365 = scmp.ne.s32.totalorder %s354, %s355
      %p366 = scmp.eq.s32.totalorder %s48, 0
      %p367 = por %p365, %p366
      %p368 = scmp.ne.s32.totalorder %s354, %s355
      %p369 = scmp.eq.s32.totalorder %s49, 1
      %p370 = por %p368, %p369
      %p372 = scmp.ne.s32.totalorder %s355, %s371
      %p373 = scmp.eq.s32.totalorder %s49, 0
      %p374 = por %p372, %p373
      %s376 = sadd.s32 %s375, 1
      %p379 = scmp.eq.s32.totalorder %s43, 1
      %p380 = scmp.ne.s32.totalorder %s375, %s377
      %p381 = scmp.eq.s32.totalorder %s43, 0
      %p382 = por %p380, %p381
      %p383 = scmp.ne.s32.totalorder %s375, %s377
      %p384 = scmp.eq.s32.totalorder %s48, 1
      %p385 = por %p383, %p384
      %p386 = scmp.ne.s32.totalorder %s377, %s378
      %p387 = scmp.eq.s32.totalorder %s48, 0
      %p388 = por %p386, %p387
      %p389 = scmp.ne.s32.totalorder %s377, %s378
      %p390 = scmp.eq.s32.totalorder %s49, 1
      %p391 = por %p389, %p390
      %p393 = scmp.ne.s32.totalorder %s378, %s392
      %p394 = scmp.eq.s32.totalorder %s49, 0
      %p395 = por %p393, %p394
      %s397 = sadd.s32 %s396, 1
      %p400 = scmp.eq.s32.totalorder %s43, 1
      %p401 = scmp.ne.s32.totalorder %s396, %s398
      %p402 = scmp.eq.s32.totalorder %s43, 0
      %p403 = por %p401, %p402
      %p404 = scmp.ne.s32.totalorder %s396, %s398
      %p405 = scmp.eq.s32.totalorder %s48, 1
      %p406 = por %p404, %p405
      %p407 = scmp.ne.s32.totalorder %s398, %s399
      %p408 = scmp.eq.s32.totalorder %s48, 0
      %p409 = por %p407, %p408
      %p410 = scmp.ne.s32.totalorder %s398, %s399
      %p411 = scmp.eq.s32.totalorder %s49, 1
      %p412 = por %p410, %p411
      %p414 = scmp.ne.s32.totalorder %s399, %s413
      %p415 = scmp.eq.s32.totalorder %s49, 0
      %p416 = por %p414, %p415
      %s418 = sadd.s32 %s417, 1
      %p421 = scmp.eq.s32.totalorder %s43, 1
      %p422 = scmp.ne.s32.totalorder %s417, %s419
      %p423 = scmp.eq.s32.totalorder %s43, 0
      %p424 = por %p422, %p423
      %p425 = scmp.ne.s32.totalorder %s417, %s419
      %p426 = scmp.eq.s32.totalorder %s48, 1
      %p427 = por %p425, %p426
      %p428 = scmp.ne.s32.totalorder %s419, %s420
      %p429 = scmp.eq.s32.totalorder %s48, 0
      %p430 = por %p428, %p429
      %p431 = scmp.ne.s32.totalorder %s419, %s420
      %p432 = scmp.eq.s32.totalorder %s49, 1
      %p433 = por %p431, %p432
      %p435 = scmp.ne.s32.totalorder %s420, %s434
      %p436 = scmp.eq.s32.totalorder %s49, 0
      %p437 = por %p435, %p436
      %s439 = sadd.s32 %s438, 1
      %p442 = scmp.eq.s32.totalorder %s43, 1
      %p443 = scmp.ne.s32.totalorder %s438, %s440
      %p444 = scmp.eq.s32.totalorder %s43, 0
      %p445 = por %p443, %p444
      %p446 = scmp.ne.s32.totalorder %s438, %s440
      %p447 = scmp.eq.s32.totalorder %s48, 1
      %p448 = por %p446, %p447
      %p449 = scmp.ne.s32.totalorder %s440, %s441
      %p450 = scmp.eq.s32.totalorder %s48, 0
      %p451 = por %p449, %p450
      %p452 = scmp.ne.s32.totalorder %s440, %s441
      %p453 = scmp.eq.s32.totalorder %s49, 1
      %p454 = por %p452, %p453
      %p456 = scmp.ne.s32.totalorder %s441, %s455
      %p457 = scmp.eq.s32.totalorder %s49, 0
      %p458 = por %p456, %p457
      %s460 = sadd.s32 %s459, 1
      %p463 = scmp.eq.s32.totalorder %s43, 1
      %p464 = scmp.ne.s32.totalorder %s459, %s461
      %p465 = scmp.eq.s32.totalorder %s43, 0
      %p466 = por %p464, %p465
      %p467 = scmp.ne.s32.totalorder %s459, %s461
      %p468 = scmp.eq.s32.totalorder %s48, 1
      %p469 = por %p467, %p468
      %p470 = scmp.ne.s32.totalorder %s461, %s462
      %p471 = scmp.eq.s32.totalorder %s48, 0
      %p472 = por %p470, %p471
      %p473 = scmp.ne.s32.totalorder %s461, %s462
      %p474 = scmp.eq.s32.totalorder %s49, 1
      %p475 = por %p473, %p474
      %p477 = scmp.ne.s32.totalorder %s462, %s476
      %p478 = scmp.eq.s32.totalorder %s49, 0
      %p479 = por %p477, %p478
      %s481 = sadd.s32 %s480, 1
      %p484 = scmp.eq.s32.totalorder %s43, 1
      %p485 = scmp.ne.s32.totalorder %s480, %s482
      %p486 = scmp.eq.s32.totalorder %s43, 0
      %p487 = por %p485, %p486
      %p488 = scmp.ne.s32.totalorder %s480, %s482
      %p489 = scmp.eq.s32.totalorder %s48, 1
      %p490 = por %p488, %p489
      %p491 = scmp.ne.s32.totalorder %s482, %s483
      %p492 = scmp.eq.s32.totalorder %s48, 0
      %p493 = por %p491, %p492
      %p494 = scmp.ne.s32.totalorder %s482, %s483
      %p495 = scmp.eq.s32.totalorder %s49, 1
      %p496 = por %p494, %p495
      %p498 = scmp.ne.s32.totalorder %s483, %s497
      %p499 = scmp.eq.s32.totalorder %s49, 0
      %p500 = por %p498, %p499
      %s502 = sadd.s32 %s501, 1
      %p505 = scmp.eq.s32.totalorder %s43, 1
      %p506 = scmp.ne.s32.totalorder %s501, %s503
      %p507 = scmp.eq.s32.totalorder %s43, 0
      %p508 = por %p506, %p507
      %p509 = scmp.ne.s32.totalorder %s501, %s503
      %p510 = scmp.eq.s32.totalorder %s48, 1
      %p511 = por %p509, %p510
      %p512 = scmp.ne.s32.totalorder %s503, %s504
      %p513 = scmp.eq.s32.totalorder %s48, 0
      %p514 = por %p512, %p513
      %p515 = scmp.ne.s32.totalorder %s503, %s504
      %p516 = scmp.eq.s32.totalorder %s49, 1
      %p517 = por %p515, %p516
      %p519 = scmp.ne.s32.totalorder %s504, %s518
      %p520 = scmp.eq.s32.totalorder %s49, 0
      %p521 = por %p519, %p520
      %s522 = ssub.s32 %s50, %s62
      %p523 = scmp.eq.s32.totalorder %s522, 0
      %s525 = sadd.s32 %s524, 1
      %s526 = scalar_select %p523, %s524, %s525
      %p529 = pneg %p523
      %p530 = scmp.eq.s32.totalorder %s43, 1
      %p531 = por %p529, %p530
      %p532 = scmp.ne.s32.totalorder %s524, %s527
      %p533 = scmp.eq.s32.totalorder %s43, 0
      %p534 = por %p532, %p533
      %p535 = scmp.ne.s32.totalorder %s524, %s527
      %p536 = scmp.eq.s32.totalorder %s48, 1
      %p537 = por %p535, %p536
      %p538 = scmp.ne.s32.totalorder %s527, %s528
      %p539 = scmp.eq.s32.totalorder %s48, 0
      %p540 = por %p538, %p539
      %p541 = scmp.ne.s32.totalorder %s527, %s528
      %p542 = scmp.eq.s32.totalorder %s49, 1
      %p543 = por %p541, %p542
      %p545 = scmp.ne.s32.totalorder %s528, %s544
      %p546 = scmp.eq.s32.totalorder %s49, 0
      %p547 = por %p545, %p546
      %s548 = ssub.s32 %s50, %s62
      %p549 = scmp.eq.s32.totalorder %s548, 0
      %s551 = sadd.s32 %s550, 1
      %s552 = scalar_select %p549, %s550, %s551
      %p555 = pneg %p549
      %p556 = scmp.eq.s32.totalorder %s43, 1
      %p557 = por %p555, %p556
      %p558 = scmp.ne.s32.totalorder %s550, %s553
      %p559 = scmp.eq.s32.totalorder %s43, 0
      %p560 = por %p558, %p559
      %p561 = scmp.ne.s32.totalorder %s550, %s553
      %p562 = scmp.eq.s32.totalorder %s48, 1
      %p563 = por %p561, %p562
      %p564 = scmp.ne.s32.totalorder %s553, %s554
      %p565 = scmp.eq.s32.totalorder %s48, 0
      %p566 = por %p564, %p565
      %p567 = scmp.ne.s32.totalorder %s553, %s554
      %p568 = scmp.eq.s32.totalorder %s49, 1
      %p569 = por %p567, %p568
      %p571 = scmp.ne.s32.totalorder %s554, %s570
      %p572 = scmp.eq.s32.totalorder %s49, 0
      %p573 = por %p571, %p572
      %s574 = ssub.s32 %s50, %s62
      %p575 = scmp.eq.s32.totalorder %s574, 0
      %s577 = sadd.s32 %s576, 1
      %s578 = scalar_select %p575, %s576, %s577
      %p581 = pneg %p575
      %p582 = scmp.eq.s32.totalorder %s43, 1
      %p583 = por %p581, %p582
      %p584 = scmp.ne.s32.totalorder %s576, %s579
      %p585 = scmp.eq.s32.totalorder %s43, 0
      %p586 = por %p584, %p585
      %p587 = scmp.ne.s32.totalorder %s576, %s579
      %p588 = scmp.eq.s32.totalorder %s48, 1
      %p589 = por %p587, %p588
      %p590 = scmp.ne.s32.totalorder %s579, %s580
      %p591 = scmp.eq.s32.totalorder %s48, 0
      %p592 = por %p590, %p591
      %p593 = scmp.ne.s32.totalorder %s579, %s580
      %p594 = scmp.eq.s32.totalorder %s49, 1
      %p595 = por %p593, %p594
      %p597 = scmp.ne.s32.totalorder %s580, %s596
      %p598 = scmp.eq.s32.totalorder %s49, 0
      %p599 = por %p597, %p598
      %p600 = scmp.le.s32.totalorder 1, %s43
      %p601 = scmp.lt.s32.totalorder %s43, 3
      %p602 = pnand %p600, %p601
      %p603 = pneg %p602
      // Predicated region
      $region9: #{tpu_custom_call.1} parent=5 // pred_check
        _
      $region10: #{tpu_custom_call.1} parent=5 // pred_check_branch
        %605 = sbr.rel (%p602) target = $region12
      $region11: #{tpu_custom_call.1} parent=5 // pred_region
        %s606 = ssub.s32 %s43, 1
        // Predicated region
        $region13: #{tpu_custom_call.1} parent=11 // pred_check
          %p607 = pneg %p81
        $region14: #{tpu_custom_call.1} parent=11 // pred_check_branch
          %609 = sbr.rel (%p607) target = $region16
        $region15: #{tpu_custom_call.1} parent=11 // pred_region
          %s610 = smul.u32 2, %s52
          %s612 = ssub.s32 256, 256
          %613 = vsyncadd [#allocation9], %s612
          %s614 = smul.addr %s610, 128
          %s615 = scalar_lea.hbm %s0, %s614
          %s616 = sshll.u32 [#allocation8], 4
          %s617 = int_to_ptr.vmem [resolvable:$true] %s616
          %622 = dma.hbm_to_vmem [thread:$0]  %s615, 256, %s617, [#allocation9], 128, 128, 8
        $region16: #{tpu_custom_call.1} parent=11 // pred_fallthru
          _
        // Predicated region
        $region17: #{tpu_custom_call.1} parent=11 // pred_check
          %p623 = pneg %p107
        $region18: #{tpu_custom_call.1} parent=11 // pred_check_branch
          %625 = sbr.rel (%p623) target = $region20
        $region19: #{tpu_custom_call.1} parent=11 // pred_region
          %s626 = smul.u32 2, %s52
          %p627 = scmp.lt.s32.totalorder %s626, 1
          %s628 = scalar_select %p627, %s626, 1
          %s629 = smul.addr %s628, 8
          %s630 = scalar_lea.vmem %s1, %s629
          %s631 = smul.u32 2, %s52
        $region20: #{tpu_custom_call.1} parent=11 // pred_fallthru
          _
        // Predicated region
        $region21: #{tpu_custom_call.1} parent=11 // pred_check
          %p632 = pneg %p388
        $region22: #{tpu_custom_call.1} parent=11 // pred_check_branch
          %634 = sbr.rel (%p632) target = $region24
        $region23: #{tpu_custom_call.1} parent=11 // pred_region
          _
        $region24: #{tpu_custom_call.1} parent=11 // pred_fallthru
          _
        // Predicated region
        $region25: #{tpu_custom_call.1} parent=11 // pred_check
          %p635 = pneg %p409
        $region26: #{tpu_custom_call.1} parent=11 // pred_check_branch
          %637 = sbr.rel (%p635) target = $region28
        $region27: #{tpu_custom_call.1} parent=11 // pred_region
          %s639 = ssub.s32 16, 16
          %640 = vsyncadd [#allocation21], %s639
          %s642 = sshll.u32 [#allocation22], 4
          %s643 = int_to_ptr.vmem [resolvable:$true] %s642
          %645 = dma.hbm_to_vmem [thread:$0]  %s13, 16, %s643, [#allocation21]
        $region28: #{tpu_custom_call.1} parent=11 // pred_fallthru
          _
        // Predicated region
        $region29: #{tpu_custom_call.1} parent=11 // pred_check
          %p646 = pneg %p430
        $region30: #{tpu_custom_call.1} parent=11 // pred_check_branch
          %648 = sbr.rel (%p646) target = $region32
        $region31: #{tpu_custom_call.1} parent=11 // pred_region
          _
        $region32: #{tpu_custom_call.1} parent=11 // pred_fallthru
          _
        // Predicated region
        $region33: #{tpu_custom_call.1} parent=11 // pred_check
          %p649 = pneg %p451
        $region34: #{tpu_custom_call.1} parent=11 // pred_check_branch
          %651 = sbr.rel (%p649) target = $region36
        $region35: #{tpu_custom_call.1} parent=11 // pred_region
          _
        $region36: #{tpu_custom_call.1} parent=11 // pred_fallthru
          _
        // Predicated region
        $region37: #{tpu_custom_call.1} parent=11 // pred_check
          %p652 = pneg %p472
        $region38: #{tpu_custom_call.1} parent=11 // pred_check_branch
          %654 = sbr.rel (%p652) target = $region40
        $region39: #{tpu_custom_call.1} parent=11 // pred_region
          _
        $region40: #{tpu_custom_call.1} parent=11 // pred_fallthru
          _
        // Predicated region
        $region41: #{tpu_custom_call.1} parent=11 // pred_check
          %p655 = pneg %p493
        $region42: #{tpu_custom_call.1} parent=11 // pred_check_branch
          %657 = sbr.rel (%p655) target = $region44
        $region43: #{tpu_custom_call.1} parent=11 // pred_region
          _
        $region44: #{tpu_custom_call.1} parent=11 // pred_fallthru
          _
        // Predicated region
        $region45: #{tpu_custom_call.1} parent=11 // pred_check
          %p658 = pneg %p514
        $region46: #{tpu_custom_call.1} parent=11 // pred_check_branch
          %660 = sbr.rel (%p658) target = $region48
        $region47: #{tpu_custom_call.1} parent=11 // pred_region
          _
        $region48: #{tpu_custom_call.1} parent=11 // pred_fallthru
          _
      $region12: #{tpu_custom_call.1} parent=5 // pred_fallthru
        _
      %p661 = scmp.lt.s32.totalorder %s43, 2
      // Predicated region
      $region49: #{tpu_custom_call.1} parent=5 // pred_check
        %p662 = pneg %p661
      $region50: #{tpu_custom_call.1} parent=5 // pred_check_branch
        %664 = sbr.rel (%p662) target = $region52
      $region51: #{tpu_custom_call.1} parent=5 // pred_region
        // Predicated region
        $region53: #{tpu_custom_call.1} parent=51 // pred_check
          %p665 = pneg %p127
        $region54: #{tpu_custom_call.1} parent=51 // pred_check_branch
          %667 = sbr.rel (%p665) target = $region56
        $region55: #{tpu_custom_call.1} parent=51 // pred_region
          %s668 = sand.u32 %s43, 1
          %s669 = scalar_lea.sflag [#allocation12], %s668
          %s670 = sand.u32 %s117, 1
          %s671 = scalar_lea.vmem [#allocation11], %s670
          %s673 = ssub.s32 16, 16
          %674 = vsyncadd %s669, %s673
          %s675 = smul.addr %s51, 16
          %s676 = scalar_lea.hbm %s2, %s675
          %s678 = sshll.u32 %s671, 4
          %s679 = int_to_ptr.vmem [resolvable:$true] %s678
          %681 = dma.hbm_to_vmem [thread:$0]  %s676, 16, %s679, %s669
        $region56: #{tpu_custom_call.1} parent=51 // pred_fallthru
          _
        // Predicated region
        $region57: #{tpu_custom_call.1} parent=51 // pred_check
          %p682 = pneg %p153
        $region58: #{tpu_custom_call.1} parent=51 // pred_check_branch
          %684 = sbr.rel (%p682) target = $region60
        $region59: #{tpu_custom_call.1} parent=51 // pred_region
          %s685 = sand.u32 %s43, 1
          %s686 = scalar_lea.sflag [#allocation12], %s685
          %s687 = sand.u32 %s143, 1
          %s688 = scalar_lea.vmem [#allocation13], %s687
          %s690 = ssub.s32 16, 16
          %691 = vsyncadd %s686, %s690
          %s692 = smul.addr %s51, 16
          %s693 = scalar_lea.hbm %s3, %s692
          %s695 = sshll.u32 %s688, 4
          %s696 = int_to_ptr.vmem [resolvable:$true] %s695
          %698 = dma.hbm_to_vmem [thread:$0]  %s693, 16, %s696, %s686
        $region60: #{tpu_custom_call.1} parent=51 // pred_fallthru
          _
        // Predicated region
        $region61: #{tpu_custom_call.1} parent=51 // pred_check
          %p699 = pneg %p179
        $region62: #{tpu_custom_call.1} parent=51 // pred_check_branch
          %701 = sbr.rel (%p699) target = $region64
        $region63: #{tpu_custom_call.1} parent=51 // pred_region
          %s702 = sand.u32 %s43, 1
          %s703 = scalar_lea.sflag [#allocation15], %s702
          %s704 = sand.u32 %s169, 1
          %s705 = smul.addr %s704, 16
          %s706 = scalar_lea.vmem [#allocation14], %s705
          %s708 = ssub.s32 256, 256
          %709 = vsyncadd %s703, %s708
          %s710 = smul.addr %s51, 4
          %s711 = smul.addr %s710, 64
          %s712 = scalar_lea.hbm %s4, %s711
          %s713 = sshll.u32 %s706, 4
          %s714 = int_to_ptr.vmem [resolvable:$true] %s713
          %719 = dma.hbm_to_vmem [thread:$0]  %s712, 256, %s714, %s703, 64, 64, 4
        $region64: #{tpu_custom_call.1} parent=51 // pred_fallthru
          _
        // Predicated region
        $region65: #{tpu_custom_call.1} parent=51 // pred_check
          %p720 = pneg %p205
        $region66: #{tpu_custom_call.1} parent=51 // pred_check_branch
          %722 = sbr.rel (%p720) target = $region68
        $region67: #{tpu_custom_call.1} parent=51 // pred_region
          %s723 = sand.u32 %s43, 1
          %s724 = scalar_lea.sflag [#allocation15], %s723
          %s725 = sand.u32 %s195, 1
          %s726 = smul.addr %s725, 4
          %s727 = scalar_lea.vmem [#allocation16], %s726
          %s729 = ssub.s32 64, 64
          %730 = vsyncadd %s724, %s729
          %s731 = smul.addr %s51, 64
          %s732 = scalar_lea.hbm %s5, %s731
          %s734 = sshll.u32 %s727, 4
          %s735 = int_to_ptr.vmem [resolvable:$true] %s734
          %737 = dma.hbm_to_vmem [thread:$0]  %s732, 64, %s735, %s724
        $region68: #{tpu_custom_call.1} parent=51 // pred_fallthru
          _
        // Predicated region
        $region69: #{tpu_custom_call.1} parent=51 // pred_check
          %p738 = pneg %p231
        $region70: #{tpu_custom_call.1} parent=51 // pred_check_branch
          %740 = sbr.rel (%p738) target = $region72
        $region71: #{tpu_custom_call.1} parent=51 // pred_region
          %s741 = sand.u32 %s43, 1
          %s742 = scalar_lea.sflag [#allocation18], %s741
          %s743 = sand.u32 %s221, 1
          %s744 = scalar_lea.vmem [#allocation17], %s743
          %s746 = ssub.s32 16, 16
          %747 = vsyncadd %s742, %s746
          %s748 = smul.addr %s51, 16
          %s749 = scalar_lea.hbm %s6, %s748
          %s751 = sshll.u32 %s744, 4
          %s752 = int_to_ptr.vmem [resolvable:$true] %s751
          %754 = dma.hbm_to_vmem [thread:$0]  %s749, 16, %s752, %s742
        $region72: #{tpu_custom_call.1} parent=51 // pred_fallthru
          _
        // Predicated region
        $region73: #{tpu_custom_call.1} parent=51 // pred_check
          %p755 = pneg %p257
        $region74: #{tpu_custom_call.1} parent=51 // pred_check_branch
          %757 = sbr.rel (%p755) target = $region76
        $region75: #{tpu_custom_call.1} parent=51 // pred_region
          %p758 = scmp.lt.s32.totalorder %s51, 1
          %s759 = scalar_select %p758, %s51, 1
          %s760 = smul.addr %s759, 8
          %s761 = smul.addr %s760, 8
          %s762 = scalar_lea.vmem %s7, %s761
        $region76: #{tpu_custom_call.1} parent=51 // pred_fallthru
          _
        // Predicated region
        $region77: #{tpu_custom_call.1} parent=51 // pred_check
          %p763 = pneg %p283
        $region78: #{tpu_custom_call.1} parent=51 // pred_check_branch
          %765 = sbr.rel (%p763) target = $region80
        $region79: #{tpu_custom_call.1} parent=51 // pred_region
          %s766 = sand.u32 %s43, 1
          %s767 = scalar_lea.sflag [#allocation18], %s766
          %s768 = sand.u32 %s273, 1
          %s769 = scalar_lea.vmem [#allocation19], %s768
          %s771 = ssub.s32 16, 16
          %772 = vsyncadd %s767, %s771
          %s773 = smul.addr %s51, 16
          %s774 = scalar_lea.hbm %s8, %s773
          %s776 = sshll.u32 %s769, 4
          %s777 = int_to_ptr.vmem [resolvable:$true] %s776
          %779 = dma.hbm_to_vmem [thread:$0]  %s774, 16, %s777, %s767
        $region80: #{tpu_custom_call.1} parent=51 // pred_fallthru
          _
        // Predicated region
        $region81: #{tpu_custom_call.1} parent=51 // pred_check
          %p780 = pneg %p309
        $region82: #{tpu_custom_call.1} parent=51 // pred_check_branch
          %782 = sbr.rel (%p780) target = $region84
        $region83: #{tpu_custom_call.1} parent=51 // pred_region
          %s783 = sand.u32 %s43, 1
          %s784 = scalar_lea.sflag [#allocation21], %s783
          %s785 = sand.u32 %s299, 1
          %s786 = smul.addr %s785, 4
          %s787 = scalar_lea.vmem [#allocation20], %s786
          %s789 = ssub.s32 64, 64
          %790 = vsyncadd %s784, %s789
          %s791 = smul.addr %s51, 4
          %s792 = smul.addr %s791, 16
          %s793 = scalar_lea.hbm %s9, %s792
          %s795 = sshll.u32 %s787, 4
          %s796 = int_to_ptr.vmem [resolvable:$true] %s795
          %798 = dma.hbm_to_vmem [thread:$0]  %s793, 64, %s796, %s784
        $region84: #{tpu_custom_call.1} parent=51 // pred_fallthru
          _
        // Predicated region
        $region85: #{tpu_custom_call.1} parent=51 // pred_check
          %p799 = pneg %p335
        $region86: #{tpu_custom_call.1} parent=51 // pred_check_branch
          %801 = sbr.rel (%p799) target = $region88
        $region87: #{tpu_custom_call.1} parent=51 // pred_region
          %p802 = scmp.lt.s32.totalorder %s51, 1
          %s803 = scalar_select %p802, %s51, 1
          %s804 = scalar_lea.vmem %s10, %s803
        $region88: #{tpu_custom_call.1} parent=51 // pred_fallthru
          _
        // Predicated region
        $region89: #{tpu_custom_call.1} parent=51 // pred_check
          %p805 = pneg %p361
        $region90: #{tpu_custom_call.1} parent=51 // pred_check_branch
          %807 = sbr.rel (%p805) target = $region92
        $region91: #{tpu_custom_call.1} parent=51 // pred_region
          %p808 = scmp.lt.s32.totalorder %s51, 1
          %s809 = scalar_select %p808, %s51, 1
          %s810 = smul.addr %s809, 8
          %s811 = smul.addr %s810, 4
          %s812 = scalar_lea.vmem %s11, %s811
        $region92: #{tpu_custom_call.1} parent=51 // pred_fallthru
          _
      $region52: #{tpu_custom_call.1} parent=5 // pred_fallthru
        _
      %p813 = scmp.le.s32.totalorder 1, %s43
      %p814 = scmp.lt.s32.totalorder %s43, 3
      %p815 = pnand %p813, %p814
      %p816 = pneg %p815
      // Predicated region
      $region93: #{tpu_custom_call.1} parent=5 // pred_check
        _
      $region94: #{tpu_custom_call.1} parent=5 // pred_check_branch
        %818 = sbr.rel (%p815) target = $region96
      $region95: #{tpu_custom_call.1} parent=5 // pred_region
        %s819 = ssub.s32 %s43, 1
        // Predicated region
        $region97: #{tpu_custom_call.1} parent=95 // pred_check
          %p820 = pneg %p81
        $region98: #{tpu_custom_call.1} parent=95 // pred_check_branch
          %822 = sbr.rel (%p820) target = $region100
        $region99: #{tpu_custom_call.1} parent=95 // pred_region
          %823 = dma.done [#allocation9], 256
        $region100: #{tpu_custom_call.1} parent=95 // pred_fallthru
          _
        %s824 = sand.u32 %s48, 1
        %s825 = scalar_lea.sflag [#allocation12], %s824
        %s826 = sand.u32 %s120, 1
        %s827 = scalar_lea.vmem [#allocation11], %s826
        // Predicated region
        $region101: #{tpu_custom_call.1} parent=95 // pred_check
          %p828 = pneg %p133
        $region102: #{tpu_custom_call.1} parent=95 // pred_check_branch
          %830 = sbr.rel (%p828) target = $region104
        $region103: #{tpu_custom_call.1} parent=95 // pred_region
          %831 = dma.done %s825, 16
        $region104: #{tpu_custom_call.1} parent=95 // pred_fallthru
          _
        %s832 = sand.u32 %s48, 1
        %s833 = scalar_lea.sflag [#allocation12], %s832
        %s834 = sand.u32 %s146, 1
        %s835 = scalar_lea.vmem [#allocation13], %s834
        // Predicated region
        $region105: #{tpu_custom_call.1} parent=95 // pred_check
          %p836 = pneg %p159
        $region106: #{tpu_custom_call.1} parent=95 // pred_check_branch
          %838 = sbr.rel (%p836) target = $region108
        $region107: #{tpu_custom_call.1} parent=95 // pred_region
          %839 = dma.done %s833, 16
        $region108: #{tpu_custom_call.1} parent=95 // pred_fallthru
          _
        %s840 = sand.u32 %s48, 1
        %s841 = scalar_lea.sflag [#allocation15], %s840
        %s842 = sand.u32 %s172, 1
        %s843 = smul.addr %s842, 16
        %s844 = scalar_lea.vmem [#allocation14], %s843
        // Predicated region
        $region109: #{tpu_custom_call.1} parent=95 // pred_check
          %p845 = pneg %p185
        $region110: #{tpu_custom_call.1} parent=95 // pred_check_branch
          %847 = sbr.rel (%p845) target = $region112
        $region111: #{tpu_custom_call.1} parent=95 // pred_region
          %848 = dma.done %s841, 256
        $region112: #{tpu_custom_call.1} parent=95 // pred_fallthru
          _
        %s849 = sand.u32 %s48, 1
        %s850 = scalar_lea.sflag [#allocation15], %s849
        %s851 = sand.u32 %s198, 1
        %s852 = smul.addr %s851, 4
        %s853 = scalar_lea.vmem [#allocation16], %s852
        // Predicated region
        $region113: #{tpu_custom_call.1} parent=95 // pred_check
          %p854 = pneg %p211
        $region114: #{tpu_custom_call.1} parent=95 // pred_check_branch
          %856 = sbr.rel (%p854) target = $region116
        $region115: #{tpu_custom_call.1} parent=95 // pred_region
          %857 = dma.done %s850, 64
        $region116: #{tpu_custom_call.1} parent=95 // pred_fallthru
          _
        %s858 = sand.u32 %s48, 1
        %s859 = scalar_lea.sflag [#allocation18], %s858
        %s860 = sand.u32 %s224, 1
        %s861 = scalar_lea.vmem [#allocation17], %s860
        // Predicated region
        $region117: #{tpu_custom_call.1} parent=95 // pred_check
          %p862 = pneg %p237
        $region118: #{tpu_custom_call.1} parent=95 // pred_check_branch
          %864 = sbr.rel (%p862) target = $region120
        $region119: #{tpu_custom_call.1} parent=95 // pred_region
          %865 = dma.done %s859, 16
        $region120: #{tpu_custom_call.1} parent=95 // pred_fallthru
          _
        %s866 = sand.u32 %s48, 1
        %s867 = scalar_lea.sflag [#allocation18], %s866
        %s868 = sand.u32 %s276, 1
        %s869 = scalar_lea.vmem [#allocation19], %s868
        // Predicated region
        $region121: #{tpu_custom_call.1} parent=95 // pred_check
          %p870 = pneg %p289
        $region122: #{tpu_custom_call.1} parent=95 // pred_check_branch
          %872 = sbr.rel (%p870) target = $region124
        $region123: #{tpu_custom_call.1} parent=95 // pred_region
          %873 = dma.done %s867, 16
        $region124: #{tpu_custom_call.1} parent=95 // pred_fallthru
          _
        %s874 = sand.u32 %s48, 1
        %s875 = scalar_lea.sflag [#allocation21], %s874
        %s876 = sand.u32 %s302, 1
        %s877 = smul.addr %s876, 4
        %s878 = scalar_lea.vmem [#allocation20], %s877
        // Predicated region
        $region125: #{tpu_custom_call.1} parent=95 // pred_check
          %p879 = pneg %p315
        $region126: #{tpu_custom_call.1} parent=95 // pred_check_branch
          %881 = sbr.rel (%p879) target = $region128
        $region127: #{tpu_custom_call.1} parent=95 // pred_region
          %882 = dma.done %s875, 64
        $region128: #{tpu_custom_call.1} parent=95 // pred_fallthru
          _
        // Predicated region
        $region129: #{tpu_custom_call.1} parent=95 // pred_check
          %p883 = pneg %p409
        $region130: #{tpu_custom_call.1} parent=95 // pred_check_branch
          %885 = sbr.rel (%p883) target = $region132
        $region131: #{tpu_custom_call.1} parent=95 // pred_region
          %886 = dma.done [#allocation21], 16
        $region132: #{tpu_custom_call.1} parent=95 // pred_fallthru
          _
        %p887 = pneg %p81
        %p888 = pneg %p78
        %s889 = smul.u32 2, %s52
        %p890 = scmp.lt.s32.totalorder %s889, 1
        %s891 = scalar_select %p890, %s889, 1
        %s892 = smul.addr %s891, 8
        %s893 = scalar_lea.vmem %s1, %s892
        %p894 = pneg %p107
        %p895 = pneg %p104
        %s896 = sand.u32 %s48, 1
        %s897 = scalar_lea.sflag [#allocation12], %s896
        %s898 = sand.u32 %s120, 1
        %s899 = scalar_lea.vmem [#allocation11], %s898
        %p900 = pneg %p133
        %p901 = pneg %p130
        %s902 = sand.u32 %s48, 1
        %s903 = scalar_lea.sflag [#allocation12], %s902
        %s904 = sand.u32 %s146, 1
        %s905 = scalar_lea.vmem [#allocation13], %s904
        %p906 = pneg %p159
        %p907 = pneg %p156
        %s908 = sand.u32 %s48, 1
        %s909 = scalar_lea.sflag [#allocation15], %s908
        %s910 = sand.u32 %s172, 1
        %s911 = smul.addr %s910, 16
        %s912 = scalar_lea.vmem [#allocation14], %s911
        %p913 = pneg %p185
        %p914 = pneg %p182
        %s915 = sand.u32 %s48, 1
        %s916 = scalar_lea.sflag [#allocation15], %s915
        %s917 = sand.u32 %s198, 1
        %s918 = smul.addr %s917, 4
        %s919 = scalar_lea.vmem [#allocation16], %s918
        %p920 = pneg %p211
        %p921 = pneg %p208
        %s922 = sand.u32 %s48, 1
        %s923 = scalar_lea.sflag [#allocation18], %s922
        %s924 = sand.u32 %s224, 1
        %s925 = scalar_lea.vmem [#allocation17], %s924
        %p926 = pneg %p237
        %p927 = pneg %p234
        %p928 = scmp.lt.s32.totalorder %s53, 1
        %s929 = scalar_select %p928, %s53, 1
        %s930 = smul.addr %s929, 8
        %s931 = smul.addr %s930, 8
        %s932 = scalar_lea.vmem %s7, %s931
        %p933 = pneg %p263
        %p934 = pneg %p260
        %s935 = sand.u32 %s48, 1
        %s936 = scalar_lea.sflag [#allocation18], %s935
        %s937 = sand.u32 %s276, 1
        %s938 = scalar_lea.vmem [#allocation19], %s937
        %p939 = pneg %p289
        %p940 = pneg %p286
        %s941 = sand.u32 %s48, 1
        %s942 = scalar_lea.sflag [#allocation21], %s941
        %s943 = sand.u32 %s302, 1
        %s944 = smul.addr %s943, 4
        %s945 = scalar_lea.vmem [#allocation20], %s944
        %p946 = pneg %p315
        %p947 = pneg %p312
        %p948 = scmp.lt.s32.totalorder %s53, 1
        %s949 = scalar_select %p948, %s53, 1
        %s950 = scalar_lea.vmem %s10, %s949
        %p951 = pneg %p341
        %p952 = pneg %p338
        %p953 = scmp.lt.s32.totalorder %s53, 1
        %s954 = scalar_select %p953, %s53, 1
        %s955 = smul.addr %s954, 8
        %s956 = smul.addr %s955, 4
        %s957 = scalar_lea.vmem %s11, %s956
        %p958 = pneg %p367
        %p959 = pneg %p364
        %p960 = pneg %p388
        %p961 = pneg %p385
        %p962 = pneg %p409
        %p963 = pneg %p406
        %p964 = pneg %p430
        %p965 = pneg %p427
        %p966 = pneg %p451
        %p967 = pneg %p448
        %p968 = pneg %p472
        %p969 = pneg %p469
        %p970 = pneg %p493
        %p971 = pneg %p490
        %p972 = pneg %p514
        %p973 = pneg %p511
        %p974 = pneg %p540
        %p975 = pneg %p537
        %p976 = pneg %p566
        %p977 = pneg %p563
        %p978 = pneg %p592
        %p979 = pneg %p589
        %s980 = smul.u32 2, %s52
        %s981 = smul.u32 2, %s52
        %p982 = scmp.lt.s32.totalorder %s981, 1
        %s983 = scalar_select %p982, %s981, 1
        %s984 = smul.addr %s983, 8
        %s985 = scalar_lea.vmem %s1, %s984
        %s986 = smul.u32 2, %s52
        %p987 = scmp.lt.s32.totalorder %s53, 1
        %s988 = scalar_select %p987, %s53, 1
        %s989 = smul.addr %s988, 8
        %s990 = smul.addr %s989, 8
        %s991 = scalar_lea.vmem %s7, %s990
        %p992 = scmp.lt.s32.totalorder %s53, 1
        %s993 = scalar_select %p992, %s53, 1
        %s994 = scalar_lea.vmem %s10, %s993
        %p995 = scmp.lt.s32.totalorder %s53, 1
        %s996 = scalar_select %p995, %s53, 1
        %s997 = smul.addr %s996, 8
        %s998 = smul.addr %s997, 4
        %s999 = scalar_lea.vmem %s11, %s998
        %s1000 = smul.u32 2, %s52
        %s1001 = smul.u32 2, %s52
        %s1002 = smul.u32 2, %s52
        %p1004 = scmp.eq.s32.totalorder %s53, 0
        // Predicated region
        $region133: #{tpu_custom_call.1} parent=95 // pred_check
          %p1005 = pneg %p1004
        $region134: #{tpu_custom_call.1} parent=95 // pred_check_branch
          %1007 = sbr.rel (%p1005) target = $region136
        $region135: #{tpu_custom_call.1} parent=95 // pred_region
          %v1008 = vld [vmem:[#allocation8] sm:$0xff]
          %v1009 = vld [vmem:[#allocation8 + $0x8] sm:$0xff]
          %vm1010 = vcmask 261120
          %1011 = vst.msk [vmem:[#allocation2] sm:$0xff] %vm1010, %v1008
          %1012 = vst.msk [vmem:[#allocation2 + $0x8] sm:$0xff] %vm1010, %v1009
          %1013 = vst.msk [vmem:[#allocation3] sm:$0xff] %vm1010, 0.0
          %1014 = vst.msk [vmem:[#allocation3 + $0x8] sm:$0xff] %vm1010, 0.0
        $region136: #{tpu_custom_call.1} parent=95 // pred_fallthru
          _
        %v1015 = vld [vmem:[#allocation2] sm:$0xff]
        %v1016 = vld [vmem:[#allocation2 + $0x8] sm:$0xff]
        %v1017 = vld [vmem:[#allocation3] sm:$0xff]
        %v1018 = vld [vmem:[#allocation3 + $0x8] sm:$0xff]
        %v1019 = vadd.f32 %v1015, %v1017
        %v1020 = vadd.f32 %v1016, %v1018
        %vm1021 = vcmask 261120
        %1022 = vst.msk [vmem:[#allocation3] sm:$0xff] %vm1021, %v1019
        %1023 = vst.msk [vmem:[#allocation3 + $0x8] sm:$0xff] %vm1021, %v1020
        %v1024 = vld [vmem:[%s827] sm:$0x1]
        %v1025 = vld [vmem:[%s835] sm:$0x1]
        %v1026 = vsel %vm1021, %v1019, 0.0
        %1027 = vadd.xlane.f32.xlu0 %v1026
        %v1028 = vpop.xlane.xlu0 %1027
        %v1029 = vsel %vm1021, %v1020, 0.0
        %1030 = vadd.xlane.f32.xlu0 %v1029
        %v1031 = vpop.xlane.xlu0 %1030
        %v1032 = vrcp.pop 32.0
        %v1033 = vmul.f32 %v1028, %v1032
        %v1034 = vmul.f32 %v1031, %v1032
        %v1035 = vsub.f32 %v1019, %v1033
        %v1036 = vsub.f32 %v1020, %v1034
        %v1037 = vmul.f32 %v1035, %v1035
        %v1038 = vmul.f32 %v1036, %v1036
        %v1039 = vsel %vm1021, %v1037, 0.0
        %1040 = vadd.xlane.f32.xlu0 %v1039
        %v1041 = vpop.xlane.xlu0 %1040
        %v1042 = vsel %vm1021, %v1038, 0.0
        %1043 = vadd.xlane.f32.xlu0 %v1042
        %v1044 = vpop.xlane.xlu0 %1043
        %v1045 = vmul.f32 %v1041, %v1032
        %v1046 = vmul.f32 %v1044, %v1032
        %v1047 = vadd.f32 %v1045, 1e-05
        %v1048 = vadd.f32 %v1046, 1e-05
        %v1049 = vrsqrt.pop %v1047
        %v1050 = vrsqrt.pop %v1048
        %v1051 = vmul.f32 %v1035, %v1049
        %v1052 = vmul.f32 %v1036, %v1050
        %v1054 = vlaneseq
        %v1055 = vshrl.u32 %v1054, 7
        %v1056 = vsub.s32 0, %v1055
        %v1057 = vrot.slane %v1024, %v1056
        %v1059 = vmul.f32 %v1051, %v1057
        %v1060 = vmul.f32 %v1052, %v1057
        %v1062 = vlaneseq
        %v1063 = vshrl.u32 %v1062, 7
        %v1064 = vsub.s32 0, %v1063
        %v1065 = vrot.slane %v1025, %v1064
        %v1067 = vadd.f32 %v1059, %v1065
        %v1068 = vadd.f32 %v1060, %v1065
        %v1069 = vpack.c.bf16 %v1068, %v1067
        %v1070 = vld [vmem:[%s844] sm:$0xf]
        %v1071 = vld [vmem:[%s844 + $0x4] sm:$0xf]
        %v1072 = vld [vmem:[%s844 + $0x8] sm:$0xf]
        %v1073 = vld [vmem:[%s844 + $0xc] sm:$0xf]
        %v1078 = vunpack.c.l.b16 %v1070
        %v1079 = vunpack.c.l.b16 %v1071
        %v1080 = vunpack.c.l.b16 %v1072
        %v1081 = vunpack.c.l.b16 %v1073
        %v1082 = vpack.c.b16 %v1079, %v1078
        %v1083 = vpack.c.b16 %v1081, %v1080
        %v1087 = vsel %vm1021, %v1069, 0
        %1089 = vmatprep.subr.bf16.mxu0 0
        %1090 = vmatpush1.bf16.msra.mxu0 %v1082
        %1091 = vmatprep.subr.bf16.mxu0 0
        %1092 = vmatpush1.bf16.msra.mxu0 %v1083
        %1093 = vmatprep.subr.bf16.mxu0 0
        %1094 = vmatpush1.bf16.msra.mxu0 0
        %1095 = vmatprep.subr.bf16.mxu0 0
        %1096 = vmatpush1.bf16.msra.mxu0 0
        %1097 = vmatprep.subr.bf16.mxu0 0
        %1098 = vmatpush1.bf16.msra.mxu0 0
        %1099 = vmatprep.subr.bf16.mxu0 0
        %1100 = vmatpush1.bf16.msra.mxu0 0
        %1101 = vmatprep.subr.bf16.mxu0 0
        %1102 = vmatpush1.bf16.msra.mxu0 0
        %1103 = vmatprep.subr.bf16.mxu0 0
        %1104 = vmatpush1.bf16.msra.mxu0 0
        %1105 = vmatprep.subr.bf16.mxu0 0
        %1106 = vmatpush1.bf16.msra.mxu0 0
        %1107 = vmatprep.subr.bf16.mxu0 0
        %1108 = vmatpush1.bf16.msra.mxu0 0
        %1109 = vmatprep.subr.bf16.mxu0 0
        %1110 = vmatpush1.bf16.msra.mxu0 0
        %1111 = vmatprep.subr.bf16.mxu0 0
        %1112 = vmatpush1.bf16.msra.mxu0 0
        %1113 = vmatprep.subr.bf16.mxu0 0
        %1114 = vmatpush1.bf16.msra.mxu0 0
        %1115 = vmatprep.subr.bf16.mxu0 0
        %1116 = vmatpush1.bf16.msra.mxu0 0
        %1117 = vmatprep.subr.bf16.mxu0 0
        %1118 = vmatpush1.bf16.msra.mxu0 0
        %1119 = vmatprep.subr.bf16.mxu0 0
        %1120 = vmatpush1.bf16.msra.mxu0 0
        %1121 = vmatprep.mubr.bf16.mxu0 0
        %1122 = vmatmul.mubr.bf16.gmra.mrb[0].mxu0 %v1087
        %v1123 = vpop.f32.mrb[0].mxu0
        %v1124 = vadd.f32 0.0, %v1123
        %v1125 = vpop.f32.mrb[0].mxu0
        %v1126 = vpop.f32.mrb[0].mxu0
        %v1127 = vadd.f32 0.0, %v1126
        %v1128 = vpop.f32.mrb[0].mxu0
        %1129 = vdwg.mxu0
        %v1130 = vld [vmem:[%s853] sm:$0xf]
        %v1131 = vlaneseq
        %v1132 = vshrl.u32 %v1131, 7
        %v1133 = vlaneseq
        %v1134 = vshrl.u32 %v1133, 7
        %v1135 = vsub.s32 3, %v1134
        %v1136 = vrot.slane %v1130, %v1135
        %v1137 = vmul.f32 %v1124, %v1136
        %v1138 = vmul.f32 %v1127, %v1136
        %v1139 = vrot.slane %v1124, 5
        %v1140 = vrot.slane %v1127, 5
        %vm1141 = vcmp.lt.s32.totalorder %v1132, 3
        %v1142 = vsel %vm1141, %v1139, %v1140
        %v1143 = vsel %vm1141, %v1140, %v1139
        %vm1144 = vcmp.ge.s32.totalorder %v1132, 3
        %v1145 = vsel %vm1144, 1, 0
        %vm1146 = vcmp.eq.s32.totalorder %v1145, 1
        %v1147 = vsel %vm1146, %v1143, 0.0
        %v1148 = vsel %vm1146, %v1142, 0.0
        %v1149 = vlaneseq
        %v1150 = vshrl.u32 %v1149, 7
        %v1151 = vsub.s32 0, %v1150
        %v1152 = vrot.slane %v1130, %v1151
        %v1153 = vmul.f32 %v1147, %v1152
        %v1154 = vmul.f32 %v1148, %v1152
        %v1155 = vadd.f32 %v1137, %v1153
        %v1156 = vadd.f32 %v1138, %v1154
        %v1157 = vrot.slane %v1124, 6
        %v1158 = vrot.slane %v1127, 6
        %vm1159 = vcmp.lt.s32.totalorder %v1132, 2
        %v1160 = vsel %vm1159, %v1157, %v1158
        %v1161 = vsel %vm1159, %v1158, %v1157
        %vm1162 = vcmp.ge.s32.totalorder %v1132, 2
        %v1163 = vsel %vm1162, 1, 0
        %vm1164 = vcmp.eq.s32.totalorder %v1163, 1
        %v1165 = vsel %vm1164, %v1161, 0.0
        %v1166 = vsel %vm1164, %v1160, 0.0
        %v1167 = vlaneseq
        %v1168 = vshrl.u32 %v1167, 7
        %v1169 = vsub.s32 1, %v1168
        %v1170 = vrot.slane %v1130, %v1169
        %v1171 = vmul.f32 %v1165, %v1170
        %v1172 = vmul.f32 %v1166, %v1170
        %v1173 = vadd.f32 %v1155, %v1171
        %v1174 = vadd.f32 %v1156, %v1172
        %v1175 = vrot.slane %v1124, 7
        %v1176 = vrot.slane %v1127, 7
        %vm1177 = vcmp.lt.s32.totalorder %v1132, 1
        %v1178 = vsel %vm1177, %v1175, %v1176
        %v1179 = vsel %vm1177, %v1176, %v1175
        %vm1180 = vcmp.ge.s32.totalorder %v1132, 1
        %v1181 = vsel %vm1180, 1, 0
        %vm1182 = vcmp.eq.s32.totalorder %v1181, 1
        %v1183 = vsel %vm1182, %v1179, 0.0
        %v1184 = vsel %vm1182, %v1178, 0.0
        %v1185 = vlaneseq
        %v1186 = vshrl.u32 %v1185, 7
        %v1187 = vsub.s32 2, %v1186
        %v1188 = vrot.slane %v1130, %v1187
        %v1189 = vmul.f32 %v1183, %v1188
        %v1190 = vmul.f32 %v1184, %v1188
        %v1191 = vadd.f32 %v1173, %v1189
        %v1192 = vadd.f32 %v1174, %v1190
        %v1193 = vld [vmem:[%s861] sm:$0x1]
        %v1195 = vlaneseq
        %v1196 = vshrl.u32 %v1195, 7
        %v1197 = vsub.s32 0, %v1196
        %v1198 = vrot.slane %v1193, %v1197
        %v1200 = vadd.f32 %v1191, %v1198
        %v1201 = vadd.f32 %v1192, %v1198
        %v1202 = vsub.f32 0.0, %v1200
        %v1203 = vsub.f32 0.0, %v1201
        %v1204 = vmul.f32 %v1202, 1.442695
        %v1205 = vpow.pop %v1204
        %v1206 = vmul.f32 %v1203, 1.442695
        %v1207 = vpow.pop %v1206
        %v1208 = vadd.f32 %v1205, 1.0
        %v1209 = vadd.f32 %v1207, 1.0
        %v1210 = vrcp.pop %v1208
        %v1211 = vmul.f32 1.0, %v1210
        %v1212 = vrcp.pop %v1209
        %v1213 = vmul.f32 1.0, %v1212
        %v1214 = vmul.f32 %v1200, %v1211
        %v1215 = vmul.f32 %v1201, %v1213
        %v1216 = vld [vmem:[%s991] sm:$0xff]
        %v1217 = vld [vmem:[%s991 + $0x8] sm:$0xff]
        %v1218 = vld [vmem:[%s991 + $0x10] sm:$0xff]
        %v1219 = vld [vmem:[%s991 + $0x18] sm:$0xff]
        %v1220 = vld [vmem:[%s991 + $0x20] sm:$0xff]
        %v1221 = vld [vmem:[%s991 + $0x28] sm:$0xff]
        %v1222 = vld [vmem:[%s991 + $0x30] sm:$0xff]
        %v1223 = vld [vmem:[%s991 + $0x38] sm:$0xff]
        %vm1224 = vcmask 523264
        %v1226 = vsel %vm1224, %v1214, 0
        %v1229 = vsel %vm1224, %v1215, 0
        %1231 = vmatprep.subr.mxu0 0.0
        %1232 = vmatpush1.msra.mxu0 %v1216
        %1233 = vmatprep.subr.mxu0 0.0
        %1234 = vmatpush1.msra.mxu0 %v1217
        %1235 = vmatprep.subr.mxu0 0.0
        %1236 = vmatpush1.msra.mxu0 %v1218
        %1237 = vmatprep.subr.mxu0 0.0
        %1238 = vmatpush1.msra.mxu0 %v1219
        %1239 = vmatprep.subr.mxu0 0.0
        %1240 = vmatpush1.msra.mxu0 %v1220
        %1241 = vmatprep.subr.mxu0 0.0
        %1242 = vmatpush1.msra.mxu0 %v1221
        %1243 = vmatprep.subr.mxu0 0.0
        %1244 = vmatpush1.msra.mxu0 %v1222
        %1245 = vmatprep.subr.mxu0 0.0
        %1246 = vmatpush1.msra.mxu0 %v1223
        %1247 = vmatprep.subr.mxu0 0.0
        %1248 = vmatpush1.msra.mxu0 0.0
        %1249 = vmatprep.subr.mxu0 0.0
        %1250 = vmatpush1.msra.mxu0 0.0
        %1251 = vmatprep.subr.mxu0 0.0
        %1252 = vmatpush1.msra.mxu0 0.0
        %1253 = vmatprep.subr.mxu0 0.0
        %1254 = vmatpush1.msra.mxu0 0.0
        %1255 = vmatprep.subr.mxu0 0.0
        %1256 = vmatpush1.msra.mxu0 0.0
        %1257 = vmatprep.subr.mxu0 0.0
        %1258 = vmatpush1.msra.mxu0 0.0
        %1259 = vmatprep.subr.mxu0 0.0
        %1260 = vmatpush1.msra.mxu0 0.0
        %1261 = vmatprep.subr.mxu0 0.0
        %1262 = vmatpush1.msra.mxu0 0.0
        %1263 = vmatprep.subr.mxu0 0.0
        %1264 = vmatpush1.msra.mxu0 0.0
        %1265 = vmatprep.subr.mxu0 0.0
        %1266 = vmatpush1.msra.mxu0 0.0
        %1267 = vmatprep.subr.mxu0 0.0
        %1268 = vmatpush1.msra.mxu0 0.0
        %1269 = vmatprep.subr.mxu0 0.0
        %1270 = vmatpush1.msra.mxu0 0.0
        %1271 = vmatprep.subr.mxu0 0.0
        %1272 = vmatpush1.msra.mxu0 0.0
        %1273 = vmatprep.subr.mxu0 0.0
        %1274 = vmatpush1.msra.mxu0 0.0
        %1275 = vmatprep.subr.mxu0 0.0
        %1276 = vmatpush1.msra.mxu0 0.0
        %1277 = vmatprep.subr.mxu0 0.0
        %1278 = vmatpush1.msra.mxu0 0.0
        %1279 = vmatprep.subr.mxu0 0.0
        %1280 = vmatpush1.msra.mxu0 0.0
        %1281 = vmatprep.subr.mxu0 0.0
        %1282 = vmatpush1.msra.mxu0 0.0
        %1283 = vmatprep.subr.mxu0 0.0
        %1284 = vmatpush1.msra.mxu0 0.0
        %1285 = vmatprep.subr.mxu0 0.0
        %1286 = vmatpush1.msra.mxu0 0.0
        %1287 = vmatprep.subr.mxu0 0.0
        %1288 = vmatpush1.msra.mxu0 0.0
        %1289 = vmatprep.subr.mxu0 0.0
        %1290 = vmatpush1.msra.mxu0 0.0
        %1291 = vmatprep.subr.mxu0 0.0
        %1292 = vmatpush1.msra.mxu0 0.0
        %1293 = vmatprep.subr.mxu0 0.0
        %1294 = vmatpush1.msra.mxu0 0.0
        %1295 = vmatprep.mubr.f32.mxu0 0.0
        %1296 = vmatmul.mubr.f32.gmra.mrb[0].mxu0 %v1226
        %v1297 = vpop.f32.mrb[0].mxu0
        %v1298 = vadd.f32 0.0, %v1297
        %v1299 = vpop.f32.mrb[0].mxu0
        %1300 = vmatprep.mubr.f32.mxu0 0.0
        %1301 = vmatmul.mubr.f32.gmra.mrb[0].mxu0 %v1229
        %v1302 = vpop.f32.mrb[0].mxu0
        %v1303 = vadd.f32 0.0, %v1302
        %v1304 = vpop.f32.mrb[0].mxu0
        %1305 = vdwg.mxu0
        %v1306 = vld [vmem:[%s869] sm:$0x1]
        %v1308 = vlaneseq
        %v1309 = vshrl.u32 %v1308, 7
        %v1310 = vsub.s32 0, %v1309
        %v1311 = vrot.slane %v1306, %v1310
        %v1313 = vadd.f32 %v1298, %v1311
        %v1314 = vadd.f32 %v1303, %v1311
        %v1315 = vmin.f32 %v1313, 20.0
        %v1316 = vmin.f32 %v1314, 20.0
        %vm1317 = vcmp.gt.f32.partialorder %v1313, 20.0
        %vm1318 = vcmp.gt.f32.partialorder %v1314, 20.0
        %v1319 = vmul.f32 %v1315, 1.442695
        %v1320 = vpow.pop %v1319
        %v1321 = vmul.f32 %v1316, 1.442695
        %v1322 = vpow.pop %v1321
        %v1323 = vadd.f32 %v1320, 1.0
        %v1324 = vadd.f32 %v1322, 1.0
        %v1325 = vlog2.pop %v1323
        %v1326 = vmul.f32 %v1325, 0.6931472
        %v1327 = vlog2.pop %v1324
        %v1328 = vmul.f32 %v1327, 0.6931472
        %v1329 = vsel %vm1317, %v1313, %v1326
        %v1330 = vsel %vm1318, %v1314, %v1328
        %v1331 = vld [vmem:[%s878] sm:$0xf]
        %v1332 = vmul.f32 %v1331, 1.442695
        %v1333 = vpow.pop %v1332
        %v1334 = vsub.f32 0.0, %v1333
        %1337 = vrot.lane.b32.xlu0 %v1329, 64
        %v1338 = vpop.permute.xlu0 %1337
        %1339 = vrot.lane.b32.xlu0 %v1330, 64
        %v1340 = vpop.permute.xlu0 %1339
        %v1343 = vsel %vm1224, %v1329, %v1338
        %v1344 = vsel %vm1224, %v1330, %v1340
        %v1346 = vlaneseq
        %v1347 = vshrl.u32 %v1346, 7
        %v1348 = vsub.s32 0, %v1347
        %v1349 = vrot.slane %v1334, %v1348
        %v1350 = vlaneseq
        %v1351 = vshrl.u32 %v1350, 7
        %v1352 = vsub.s32 1, %v1351
        %v1353 = vrot.slane %v1334, %v1352
        %v1354 = vlaneseq
        %v1355 = vshrl.u32 %v1354, 7
        %v1356 = vsub.s32 2, %v1355
        %v1357 = vrot.slane %v1334, %v1356
        %v1358 = vlaneseq
        %v1359 = vshrl.u32 %v1358, 7
        %v1360 = vsub.s32 3, %v1359
        %v1361 = vrot.slane %v1334, %v1360
        %v1366 = vmul.f32 %v1343, %v1349
        %v1367 = vmul.f32 %v1343, %v1353
        %v1368 = vmul.f32 %v1343, %v1357
        %v1369 = vmul.f32 %v1343, %v1361
        %v1370 = vmul.f32 %v1344, %v1349
        %v1371 = vmul.f32 %v1344, %v1353
        %v1372 = vmul.f32 %v1344, %v1357
        %v1373 = vmul.f32 %v1344, %v1361
        %v1374 = vmul.f32 %v1366, 1.442695
        %v1375 = vpow.pop %v1374
        %v1376 = vmul.f32 %v1367, 1.442695
        %v1377 = vpow.pop %v1376
        %v1378 = vmul.f32 %v1368, 1.442695
        %v1379 = vpow.pop %v1378
        %v1380 = vmul.f32 %v1369, 1.442695
        %v1381 = vpow.pop %v1380
        %v1382 = vmul.f32 %v1370, 1.442695
        %v1383 = vpow.pop %v1382
        %v1384 = vmul.f32 %v1371, 1.442695
        %v1385 = vpow.pop %v1384
        %v1386 = vmul.f32 %v1372, 1.442695
        %v1387 = vpow.pop %v1386
        %v1388 = vmul.f32 %v1373, 1.442695
        %v1389 = vpow.pop %v1388
        %1390 = vst [vmem:[#allocation4] sm:$0xff] %v1375
        %1391 = vst [vmem:[#allocation4 + $0x8] sm:$0xff] %v1377
        %1392 = vst [vmem:[#allocation4 + $0x10] sm:$0xff] %v1379
        %1393 = vst [vmem:[#allocation4 + $0x18] sm:$0xff] %v1381
        %1394 = vst [vmem:[#allocation4 + $0x20] sm:$0xff] %v1383
        %1395 = vst [vmem:[#allocation4 + $0x28] sm:$0xff] %v1385
        %1396 = vst [vmem:[#allocation4 + $0x30] sm:$0xff] %v1387
        %1397 = vst [vmem:[#allocation4 + $0x38] sm:$0xff] %v1389
        %v1398 = vmul.f32 %v1329, %v1214
        %v1399 = vmul.f32 %v1330, %v1215
        %1401 = vset.pattern.permute.xlu0 64
        %1402 = vperm.xlu0 %1401, %v1298
        %v1403 = vpop.permute.xlu0 %1402
        %1406 = vset.pattern.permute.xlu0 64
        %1407 = vperm.xlu0 %1406, %v1303
        %v1408 = vpop.permute.xlu0 %1407
        %v1410 = vmul.f32 %v1398, %v1403
        %v1411 = vmul.f32 %v1399, %v1408
        %1412 = vset.pattern.permute.xlu0 65
        %1413 = vperm.xlu0 %1412, %v1298
        %v1414 = vpop.permute.xlu0 %1413
        %1416 = vset.pattern.permute.xlu0 65
        %1417 = vperm.xlu0 %1416, %v1303
        %v1418 = vpop.permute.xlu0 %1417
        %v1420 = vmul.f32 %v1398, %v1414
        %v1421 = vmul.f32 %v1399, %v1418
        %1422 = vset.pattern.permute.xlu0 66
        %1423 = vperm.xlu0 %1422, %v1298
        %v1424 = vpop.permute.xlu0 %1423
        %1426 = vset.pattern.permute.xlu0 66
        %1427 = vperm.xlu0 %1426, %v1303
        %v1428 = vpop.permute.xlu0 %1427
        %v1430 = vmul.f32 %v1398, %v1424
        %v1431 = vmul.f32 %v1399, %v1428
        %1432 = vset.pattern.permute.xlu0 67
        %1433 = vperm.xlu0 %1432, %v1298
        %v1434 = vpop.permute.xlu0 %1433
        %1436 = vset.pattern.permute.xlu0 67
        %1437 = vperm.xlu0 %1436, %v1303
        %v1438 = vpop.permute.xlu0 %1437
        %v1440 = vmul.f32 %v1398, %v1434
        %v1441 = vmul.f32 %v1399, %v1438
        %1442 = vset.pattern.permute.xlu0 68
        %1443 = vperm.xlu0 %1442, %v1298
        %v1444 = vpop.permute.xlu0 %1443
        %1446 = vset.pattern.permute.xlu0 68
        %1447 = vperm.xlu0 %1446, %v1303
        %v1448 = vpop.permute.xlu0 %1447
        %v1450 = vmul.f32 %v1398, %v1444
        %v1451 = vmul.f32 %v1399, %v1448
        %1452 = vset.pattern.permute.xlu0 69
        %1453 = vperm.xlu0 %1452, %v1298
        %v1454 = vpop.permute.xlu0 %1453
        %1456 = vset.pattern.permute.xlu0 69
        %1457 = vperm.xlu0 %1456, %v1303
        %v1458 = vpop.permute.xlu0 %1457
        %v1460 = vmul.f32 %v1398, %v1454
        %v1461 = vmul.f32 %v1399, %v1458
        %1462 = vset.pattern.permute.xlu0 70
        %1463 = vperm.xlu0 %1462, %v1298
        %v1464 = vpop.permute.xlu0 %1463
        %1466 = vset.pattern.permute.xlu0 70
        %1467 = vperm.xlu0 %1466, %v1303
        %v1468 = vpop.permute.xlu0 %1467
        %v1470 = vmul.f32 %v1398, %v1464
        %v1471 = vmul.f32 %v1399, %v1468
        %1472 = vset.pattern.permute.xlu0 71
        %1473 = vperm.xlu0 %1472, %v1298
        %v1474 = vpop.permute.xlu0 %1473
        %1476 = vset.pattern.permute.xlu0 71
        %1477 = vperm.xlu0 %1476, %v1303
        %v1478 = vpop.permute.xlu0 %1477
        %v1480 = vmul.f32 %v1398, %v1474
        %v1481 = vmul.f32 %v1399, %v1478
        %1484 = vrot.lane.b32.xlu0 %v1420, 64
        %v1485 = vpop.permute.xlu0 %1484
        %1486 = vrot.lane.b32.xlu0 %v1421, 64
        %v1487 = vpop.permute.xlu0 %1486
        %1492 = vrot.lane.b32.xlu0 %v1440, 64
        %v1493 = vpop.permute.xlu0 %1492
        %1494 = vrot.lane.b32.xlu0 %v1441, 64
        %v1495 = vpop.permute.xlu0 %1494
        %1500 = vrot.lane.b32.xlu0 %v1460, 64
        %v1501 = vpop.permute.xlu0 %1500
        %1502 = vrot.lane.b32.xlu0 %v1461, 64
        %v1503 = vpop.permute.xlu0 %1502
        %1508 = vrot.lane.b32.xlu0 %v1480, 64
        %v1509 = vpop.permute.xlu0 %1508
        %1510 = vrot.lane.b32.xlu0 %v1481, 64
        %v1511 = vpop.permute.xlu0 %1510
        %v1514 = vsel %vm1224, %v1410, %v1485
        %v1515 = vsel %vm1224, %v1411, %v1487
        %v1516 = vsel %vm1224, %v1430, %v1493
        %v1517 = vsel %vm1224, %v1431, %v1495
        %v1518 = vsel %vm1224, %v1450, %v1501
        %v1519 = vsel %vm1224, %v1451, %v1503
        %v1520 = vsel %vm1224, %v1470, %v1509
        %v1521 = vsel %vm1224, %v1471, %v1511
        %1522 = vst [vmem:[#allocation5] sm:$0xff] %v1514
        %1523 = vst [vmem:[#allocation5 + $0x8] sm:$0xff] %v1516
        %1524 = vst [vmem:[#allocation5 + $0x10] sm:$0xff] %v1518
        %1525 = vst [vmem:[#allocation5 + $0x18] sm:$0xff] %v1520
        %1526 = vst [vmem:[#allocation5 + $0x20] sm:$0xff] %v1515
        %1527 = vst [vmem:[#allocation5 + $0x28] sm:$0xff] %v1517
        %1528 = vst [vmem:[#allocation5 + $0x30] sm:$0xff] %v1519
        %1529 = vst [vmem:[#allocation5 + $0x38] sm:$0xff] %v1521
        %1530 = vrot.lane.b32.xlu0 %v1298, 56
        %v1531 = vpop.permute.xlu0 %1530
        %1532 = vrot.lane.b32.xlu0 %v1303, 56
        %v1533 = vpop.permute.xlu0 %1532
        %vm1536 = vcmask 64512
        %1537 = vst.msk [vmem:[#allocation6] sm:$0xff] %vm1536, %v1531
        %1538 = vst.msk [vmem:[#allocation6 + $0x8] sm:$0xff] %vm1536, %v1533
        %v1539 = vld [vmem:[#allocation4] ss:$8 sm:$0xf]
        %s1540 = scalar_lea.vmem [#allocation4], 32
        %v1541 = vld [vmem:[%s1540] ss:$8 sm:$0xf]
        %v1542 = vmul.f32 %v1539, 0.0
        %v1543 = vmul.f32 %v1541, 0.0
        %v1544 = vld [vmem:[#allocation5] ss:$8 sm:$0xf]
        %s1545 = scalar_lea.vmem [#allocation5], 32
        %v1546 = vld [vmem:[%s1545] ss:$8 sm:$0xf]
        %v1547 = vadd.f32 %v1542, %v1544
        %v1548 = vadd.f32 %v1543, %v1546
        %v1549 = vld [vmem:[#allocation6] sm:$0x1]
        %v1550 = vld [vmem:[#allocation6 + $0x8] sm:$0x1]
        %1552 = vset.pattern.permute.xlu0 0
        %1553 = vperm.xlu0 %1552, %v1549
        %v1554 = vpop.permute.xlu0 %1553
        %1557 = vset.pattern.permute.xlu0 0
        %1558 = vperm.xlu0 %1557, %v1550
        %v1559 = vpop.permute.xlu0 %1558
        %v1561 = vmul.f32 %v1547, %v1554
        %v1562 = vmul.f32 %v1548, %v1559
        %1563 = vset.pattern.permute.xlu0 1
        %1564 = vperm.xlu0 %1563, %v1549
        %v1565 = vpop.permute.xlu0 %1564
        %1567 = vset.pattern.permute.xlu0 1
        %1568 = vperm.xlu0 %1567, %v1550
        %v1569 = vpop.permute.xlu0 %1568
        %v1571 = vmul.f32 %v1547, %v1565
        %v1572 = vmul.f32 %v1548, %v1569
        %1575 = vrot.lane.b32.xlu0 %v1571, 64
        %v1576 = vpop.permute.xlu0 %1575
        %1577 = vrot.lane.b32.xlu0 %v1572, 64
        %v1578 = vpop.permute.xlu0 %1577
        %v1581 = vadd.f32 %v1561, %v1576
        %v1582 = vadd.f32 %v1562, %v1578
        %1583 = vset.pattern.permute.xlu0 2
        %1584 = vperm.xlu0 %1583, %v1549
        %v1585 = vpop.permute.xlu0 %1584
        %1587 = vset.pattern.permute.xlu0 2
        %1588 = vperm.xlu0 %1587, %v1550
        %v1589 = vpop.permute.xlu0 %1588
        %v1593 = vrot.slane %v1547, 1
        %v1594 = vrot.slane %v1548, 1
        %v1597 = vmul.f32 %v1593, %v1585
        %v1598 = vmul.f32 %v1594, %v1589
        %v1599 = vadd.f32 %v1581, %v1597
        %v1600 = vadd.f32 %v1582, %v1598
        %1601 = vset.pattern.permute.xlu0 3
        %1602 = vperm.xlu0 %1601, %v1549
        %v1603 = vpop.permute.xlu0 %1602
        %1605 = vset.pattern.permute.xlu0 3
        %1606 = vperm.xlu0 %1605, %v1550
        %v1607 = vpop.permute.xlu0 %1606
        %1609 = vrot.lane.b32.xlu0 %v1547, 64
        %v1610 = vpop.permute.xlu0 %1609
        %1611 = vrot.lane.b32.xlu0 %v1548, 64
        %v1612 = vpop.permute.xlu0 %1611
        %v1613 = vrot.slane %v1610, 1
        %v1614 = vrot.slane %v1612, 1
        %v1617 = vmul.f32 %v1613, %v1603
        %v1618 = vmul.f32 %v1614, %v1607
        %v1619 = vadd.f32 %v1599, %v1617
        %v1620 = vadd.f32 %v1600, %v1618
        %1621 = vset.pattern.permute.xlu0 4
        %1622 = vperm.xlu0 %1621, %v1549
        %v1623 = vpop.permute.xlu0 %1622
        %1625 = vset.pattern.permute.xlu0 4
        %1626 = vperm.xlu0 %1625, %v1550
        %v1627 = vpop.permute.xlu0 %1626
        %v1629 = vrot.slane %v1547, 2
        %v1630 = vrot.slane %v1548, 2
        %v1633 = vmul.f32 %v1629, %v1623
        %v1634 = vmul.f32 %v1630, %v1627
        %v1635 = vadd.f32 %v1619, %v1633
        %v1636 = vadd.f32 %v1620, %v1634
        %1637 = vset.pattern.permute.xlu0 5
        %1638 = vperm.xlu0 %1637, %v1549
        %v1639 = vpop.permute.xlu0 %1638
        %1641 = vset.pattern.permute.xlu0 5
        %1642 = vperm.xlu0 %1641, %v1550
        %v1643 = vpop.permute.xlu0 %1642
        %v1645 = vrot.slane %v1610, 2
        %v1646 = vrot.slane %v1612, 2
        %v1649 = vmul.f32 %v1645, %v1639
        %v1650 = vmul.f32 %v1646, %v1643
        %v1651 = vadd.f32 %v1635, %v1649
        %v1652 = vadd.f32 %v1636, %v1650
        %1653 = vset.pattern.permute.xlu0 6
        %1654 = vperm.xlu0 %1653, %v1549
        %v1655 = vpop.permute.xlu0 %1654
        %1657 = vset.pattern.permute.xlu0 6
        %1658 = vperm.xlu0 %1657, %v1550
        %v1659 = vpop.permute.xlu0 %1658
        %v1661 = vrot.slane %v1547, 3
        %v1662 = vrot.slane %v1548, 3
        %v1665 = vmul.f32 %v1661, %v1655
        %v1666 = vmul.f32 %v1662, %v1659
        %v1667 = vadd.f32 %v1651, %v1665
        %v1668 = vadd.f32 %v1652, %v1666
        %1669 = vset.pattern.permute.xlu0 7
        %1670 = vperm.xlu0 %1669, %v1549
        %v1671 = vpop.permute.xlu0 %1670
        %1673 = vset.pattern.permute.xlu0 7
        %1674 = vperm.xlu0 %1673, %v1550
        %v1675 = vpop.permute.xlu0 %1674
        %v1677 = vrot.slane %v1610, 3
        %v1678 = vrot.slane %v1612, 3
        %v1681 = vmul.f32 %v1677, %v1671
        %v1682 = vmul.f32 %v1678, %v1675
        %v1683 = vadd.f32 %v1667, %v1681
        %v1684 = vadd.f32 %v1668, %v1682
        %vm1685 = vcmask 516096
        %1686 = vst.msk [vmem:[#allocation7] sm:$0x1] %vm1685, %v1683
        %1687 = vst.msk [vmem:[#allocation7 + $0x8] sm:$0x1] %vm1685, %v1684
        %s1688 = scalar_lea.vmem [#allocation4], 1
        %v1689 = vld [vmem:[%s1688] ss:$8 sm:$0xf]
        %s1690 = scalar_lea.vmem [#allocation4], 33
        %v1691 = vld [vmem:[%s1690] ss:$8 sm:$0xf]
        %v1692 = vmul.f32 %v1689, %v1547
        %v1693 = vmul.f32 %v1691, %v1548
        %s1694 = scalar_lea.vmem [#allocation5], 1
        %v1695 = vld [vmem:[%s1694] ss:$8 sm:$0xf]
        %s1696 = scalar_lea.vmem [#allocation5], 33
        %v1697 = vld [vmem:[%s1696] ss:$8 sm:$0xf]
        %v1698 = vadd.f32 %v1692, %v1695
        %v1699 = vadd.f32 %v1693, %v1697
        %v1700 = vld [vmem:[#allocation6 + $0x1] sm:$0x1]
        %v1701 = vld [vmem:[#allocation6 + $0x9] sm:$0x1]
        %1703 = vset.pattern.permute.xlu0 0
        %1704 = vperm.xlu0 %1703, %v1700
        %v1705 = vpop.permute.xlu0 %1704
        %1708 = vset.pattern.permute.xlu0 0
        %1709 = vperm.xlu0 %1708, %v1701
        %v1710 = vpop.permute.xlu0 %1709
        %v1712 = vmul.f32 %v1698, %v1705
        %v1713 = vmul.f32 %v1699, %v1710
        %1714 = vset.pattern.permute.xlu0 1
        %1715 = vperm.xlu0 %1714, %v1700
        %v1716 = vpop.permute.xlu0 %1715
        %1718 = vset.pattern.permute.xlu0 1
        %1719 = vperm.xlu0 %1718, %v1701
        %v1720 = vpop.permute.xlu0 %1719
        %v1722 = vmul.f32 %v1698, %v1716
        %v1723 = vmul.f32 %v1699, %v1720
        %1726 = vrot.lane.b32.xlu0 %v1722, 64
        %v1727 = vpop.permute.xlu0 %1726
        %1728 = vrot.lane.b32.xlu0 %v1723, 64
        %v1729 = vpop.permute.xlu0 %1728
        %v1732 = vadd.f32 %v1712, %v1727
        %v1733 = vadd.f32 %v1713, %v1729
        %1734 = vset.pattern.permute.xlu0 2
        %1735 = vperm.xlu0 %1734, %v1700
        %v1736 = vpop.permute.xlu0 %1735
        %1738 = vset.pattern.permute.xlu0 2
        %1739 = vperm.xlu0 %1738, %v1701
        %v1740 = vpop.permute.xlu0 %1739
        %v1744 = vrot.slane %v1698, 1
        %v1745 = vrot.slane %v1699, 1
        %v1748 = vmul.f32 %v1744, %v1736
        %v1749 = vmul.f32 %v1745, %v1740
        %v1750 = vadd.f32 %v1732, %v1748
        %v1751 = vadd.f32 %v1733, %v1749
        %1752 = vset.pattern.permute.xlu0 3
        %1753 = vperm.xlu0 %1752, %v1700
        %v1754 = vpop.permute.xlu0 %1753
        %1756 = vset.pattern.permute.xlu0 3
        %1757 = vperm.xlu0 %1756, %v1701
        %v1758 = vpop.permute.xlu0 %1757
        %1760 = vrot.lane.b32.xlu0 %v1698, 64
        %v1761 = vpop.permute.xlu0 %1760
        %1762 = vrot.lane.b32.xlu0 %v1699, 64
        %v1763 = vpop.permute.xlu0 %1762
        %v1764 = vrot.slane %v1761, 1
        %v1765 = vrot.slane %v1763, 1
        %v1768 = vmul.f32 %v1764, %v1754
        %v1769 = vmul.f32 %v1765, %v1758
        %v1770 = vadd.f32 %v1750, %v1768
        %v1771 = vadd.f32 %v1751, %v1769
        %1772 = vset.pattern.permute.xlu0 4
        %1773 = vperm.xlu0 %1772, %v1700
        %v1774 = vpop.permute.xlu0 %1773
        %1776 = vset.pattern.permute.xlu0 4
        %1777 = vperm.xlu0 %1776, %v1701
        %v1778 = vpop.permute.xlu0 %1777
        %v1780 = vrot.slane %v1698, 2
        %v1781 = vrot.slane %v1699, 2
        %v1784 = vmul.f32 %v1780, %v1774
        %v1785 = vmul.f32 %v1781, %v1778
        %v1786 = vadd.f32 %v1770, %v1784
        %v1787 = vadd.f32 %v1771, %v1785
        %1788 = vset.pattern.permute.xlu0 5
        %1789 = vperm.xlu0 %1788, %v1700
        %v1790 = vpop.permute.xlu0 %1789
        %1792 = vset.pattern.permute.xlu0 5
        %1793 = vperm.xlu0 %1792, %v1701
        %v1794 = vpop.permute.xlu0 %1793
        %v1796 = vrot.slane %v1761, 2
        %v1797 = vrot.slane %v1763, 2
        %v1800 = vmul.f32 %v1796, %v1790
        %v1801 = vmul.f32 %v1797, %v1794
        %v1802 = vadd.f32 %v1786, %v1800
        %v1803 = vadd.f32 %v1787, %v1801
        %1804 = vset.pattern.permute.xlu0 6
        %1805 = vperm.xlu0 %1804, %v1700
        %v1806 = vpop.permute.xlu0 %1805
        %1808 = vset.pattern.permute.xlu0 6
        %1809 = vperm.xlu0 %1808, %v1701
        %v1810 = vpop.permute.xlu0 %1809
        %v1812 = vrot.slane %v1698, 3
        %v1813 = vrot.slane %v1699, 3
        %v1816 = vmul.f32 %v1812, %v1806
        %v1817 = vmul.f32 %v1813, %v1810
        %v1818 = vadd.f32 %v1802, %v1816
        %v1819 = vadd.f32 %v1803, %v1817
        %1820 = vset.pattern.permute.xlu0 7
        %1821 = vperm.xlu0 %1820, %v1700
        %v1822 = vpop.permute.xlu0 %1821
        %1824 = vset.pattern.permute.xlu0 7
        %1825 = vperm.xlu0 %1824, %v1701
        %v1826 = vpop.permute.xlu0 %1825
        %v1828 = vrot.slane %v1761, 3
        %v1829 = vrot.slane %v1763, 3
        %v1832 = vmul.f32 %v1828, %v1822
        %v1833 = vmul.f32 %v1829, %v1826
        %v1834 = vadd.f32 %v1818, %v1832
        %v1835 = vadd.f32 %v1819, %v1833
        %1836 = vst.msk [vmem:[#allocation7 + $0x1] sm:$0x1] %vm1685, %v1834
        %1837 = vst.msk [vmem:[#allocation7 + $0x9] sm:$0x1] %vm1685, %v1835
        %s1838 = scalar_lea.vmem [#allocation4], 2
        %v1839 = vld [vmem:[%s1838] ss:$8 sm:$0xf]
        %s1840 = scalar_lea.vmem [#allocation4], 34
        %v1841 = vld [vmem:[%s1840] ss:$8 sm:$0xf]
        %v1842 = vmul.f32 %v1839, %v1698
        %v1843 = vmul.f32 %v1841, %v1699
        %s1844 = scalar_lea.vmem [#allocation5], 2
        %v1845 = vld [vmem:[%s1844] ss:$8 sm:$0xf]
        %s1846 = scalar_lea.vmem [#allocation5], 34
        %v1847 = vld [vmem:[%s1846] ss:$8 sm:$0xf]
        %v1848 = vadd.f32 %v1842, %v1845
        %v1849 = vadd.f32 %v1843, %v1847
        %v1850 = vld [vmem:[#allocation6 + $0x2] sm:$0x1]
        %v1851 = vld [vmem:[#allocation6 + $0xa] sm:$0x1]
        %1853 = vset.pattern.permute.xlu0 0
        %1854 = vperm.xlu0 %1853, %v1850
        %v1855 = vpop.permute.xlu0 %1854
        %1858 = vset.pattern.permute.xlu0 0
        %1859 = vperm.xlu0 %1858, %v1851
        %v1860 = vpop.permute.xlu0 %1859
        %v1862 = vmul.f32 %v1848, %v1855
        %v1863 = vmul.f32 %v1849, %v1860
        %1864 = vset.pattern.permute.xlu0 1
        %1865 = vperm.xlu0 %1864, %v1850
        %v1866 = vpop.permute.xlu0 %1865
        %1868 = vset.pattern.permute.xlu0 1
        %1869 = vperm.xlu0 %1868, %v1851
        %v1870 = vpop.permute.xlu0 %1869
        %v1872 = vmul.f32 %v1848, %v1866
        %v1873 = vmul.f32 %v1849, %v1870
        %1876 = vrot.lane.b32.xlu0 %v1872, 64
        %v1877 = vpop.permute.xlu0 %1876
        %1878 = vrot.lane.b32.xlu0 %v1873, 64
        %v1879 = vpop.permute.xlu0 %1878
        %v1882 = vadd.f32 %v1862, %v1877
        %v1883 = vadd.f32 %v1863, %v1879
        %1884 = vset.pattern.permute.xlu0 2
        %1885 = vperm.xlu0 %1884, %v1850
        %v1886 = vpop.permute.xlu0 %1885
        %1888 = vset.pattern.permute.xlu0 2
        %1889 = vperm.xlu0 %1888, %v1851
        %v1890 = vpop.permute.xlu0 %1889
        %v1894 = vrot.slane %v1848, 1
        %v1895 = vrot.slane %v1849, 1
        %v1898 = vmul.f32 %v1894, %v1886
        %v1899 = vmul.f32 %v1895, %v1890
        %v1900 = vadd.f32 %v1882, %v1898
        %v1901 = vadd.f32 %v1883, %v1899
        %1902 = vset.pattern.permute.xlu0 3
        %1903 = vperm.xlu0 %1902, %v1850
        %v1904 = vpop.permute.xlu0 %1903
        %1906 = vset.pattern.permute.xlu0 3
        %1907 = vperm.xlu0 %1906, %v1851
        %v1908 = vpop.permute.xlu0 %1907
        %1910 = vrot.lane.b32.xlu0 %v1848, 64
        %v1911 = vpop.permute.xlu0 %1910
        %1912 = vrot.lane.b32.xlu0 %v1849, 64
        %v1913 = vpop.permute.xlu0 %1912
        %v1914 = vrot.slane %v1911, 1
        %v1915 = vrot.slane %v1913, 1
        %v1918 = vmul.f32 %v1914, %v1904
        %v1919 = vmul.f32 %v1915, %v1908
        %v1920 = vadd.f32 %v1900, %v1918
        %v1921 = vadd.f32 %v1901, %v1919
        %1922 = vset.pattern.permute.xlu0 4
        %1923 = vperm.xlu0 %1922, %v1850
        %v1924 = vpop.permute.xlu0 %1923
        %1926 = vset.pattern.permute.xlu0 4
        %1927 = vperm.xlu0 %1926, %v1851
        %v1928 = vpop.permute.xlu0 %1927
        %v1930 = vrot.slane %v1848, 2
        %v1931 = vrot.slane %v1849, 2
        %v1934 = vmul.f32 %v1930, %v1924
        %v1935 = vmul.f32 %v1931, %v1928
        %v1936 = vadd.f32 %v1920, %v1934
        %v1937 = vadd.f32 %v1921, %v1935
        %1938 = vset.pattern.permute.xlu0 5
        %1939 = vperm.xlu0 %1938, %v1850
        %v1940 = vpop.permute.xlu0 %1939
        %1942 = vset.pattern.permute.xlu0 5
        %1943 = vperm.xlu0 %1942, %v1851
        %v1944 = vpop.permute.xlu0 %1943
        %v1946 = vrot.slane %v1911, 2
        %v1947 = vrot.slane %v1913, 2
        %v1950 = vmul.f32 %v1946, %v1940
        %v1951 = vmul.f32 %v1947, %v1944
        %v1952 = vadd.f32 %v1936, %v1950
        %v1953 = vadd.f32 %v1937, %v1951
        %1954 = vset.pattern.permute.xlu0 6
        %1955 = vperm.xlu0 %1954, %v1850
        %v1956 = vpop.permute.xlu0 %1955
        %1958 = vset.pattern.permute.xlu0 6
        %1959 = vperm.xlu0 %1958, %v1851
        %v1960 = vpop.permute.xlu0 %1959
        %v1962 = vrot.slane %v1848, 3
        %v1963 = vrot.slane %v1849, 3
        %v1966 = vmul.f32 %v1962, %v1956
        %v1967 = vmul.f32 %v1963, %v1960
        %v1968 = vadd.f32 %v1952, %v1966
        %v1969 = vadd.f32 %v1953, %v1967
        %1970 = vset.pattern.permute.xlu0 7
        %1971 = vperm.xlu0 %1970, %v1850
        %v1972 = vpop.permute.xlu0 %1971
        %1974 = vset.pattern.permute.xlu0 7
        %1975 = vperm.xlu0 %1974, %v1851
        %v1976 = vpop.permute.xlu0 %1975
        %v1978 = vrot.slane %v1911, 3
        %v1979 = vrot.slane %v1913, 3
        %v1982 = vmul.f32 %v1978, %v1972
        %v1983 = vmul.f32 %v1979, %v1976
        %v1984 = vadd.f32 %v1968, %v1982
        %v1985 = vadd.f32 %v1969, %v1983
        %1986 = vst.msk [vmem:[#allocation7 + $0x2] sm:$0x1] %vm1685, %v1984
        %1987 = vst.msk [vmem:[#allocation7 + $0xa] sm:$0x1] %vm1685, %v1985
        %s1988 = scalar_lea.vmem [#allocation4], 3
        %v1989 = vld [vmem:[%s1988] ss:$8 sm:$0xf]
        %s1990 = scalar_lea.vmem [#allocation4], 35
        %v1991 = vld [vmem:[%s1990] ss:$8 sm:$0xf]
        %v1992 = vmul.f32 %v1989, %v1848
        %v1993 = vmul.f32 %v1991, %v1849
        %s1994 = scalar_lea.vmem [#allocation5], 3
        %v1995 = vld [vmem:[%s1994] ss:$8 sm:$0xf]
        %s1996 = scalar_lea.vmem [#allocation5], 35
        %v1997 = vld [vmem:[%s1996] ss:$8 sm:$0xf]
        %v1998 = vadd.f32 %v1992, %v1995
        %v1999 = vadd.f32 %v1993, %v1997
        %v2000 = vld [vmem:[#allocation6 + $0x3] sm:$0x1]
        %v2001 = vld [vmem:[#allocation6 + $0xb] sm:$0x1]
        %2003 = vset.pattern.permute.xlu0 0
        %2004 = vperm.xlu0 %2003, %v2000
        %v2005 = vpop.permute.xlu0 %2004
        %2008 = vset.pattern.permute.xlu0 0
        %2009 = vperm.xlu0 %2008, %v2001
        %v2010 = vpop.permute.xlu0 %2009
        %v2012 = vmul.f32 %v1998, %v2005
        %v2013 = vmul.f32 %v1999, %v2010
        %2014 = vset.pattern.permute.xlu0 1
        %2015 = vperm.xlu0 %2014, %v2000
        %v2016 = vpop.permute.xlu0 %2015
        %2018 = vset.pattern.permute.xlu0 1
        %2019 = vperm.xlu0 %2018, %v2001
        %v2020 = vpop.permute.xlu0 %2019
        %v2022 = vmul.f32 %v1998, %v2016
        %v2023 = vmul.f32 %v1999, %v2020
        %2026 = vrot.lane.b32.xlu0 %v2022, 64
        %v2027 = vpop.permute.xlu0 %2026
        %2028 = vrot.lane.b32.xlu0 %v2023, 64
        %v2029 = vpop.permute.xlu0 %2028
        %v2032 = vadd.f32 %v2012, %v2027
        %v2033 = vadd.f32 %v2013, %v2029
        %2034 = vset.pattern.permute.xlu0 2
        %2035 = vperm.xlu0 %2034, %v2000
        %v2036 = vpop.permute.xlu0 %2035
        %2038 = vset.pattern.permute.xlu0 2
        %2039 = vperm.xlu0 %2038, %v2001
        %v2040 = vpop.permute.xlu0 %2039
        %v2044 = vrot.slane %v1998, 1
        %v2045 = vrot.slane %v1999, 1
        %v2048 = vmul.f32 %v2044, %v2036
        %v2049 = vmul.f32 %v2045, %v2040
        %v2050 = vadd.f32 %v2032, %v2048
        %v2051 = vadd.f32 %v2033, %v2049
        %2052 = vset.pattern.permute.xlu0 3
        %2053 = vperm.xlu0 %2052, %v2000
        %v2054 = vpop.permute.xlu0 %2053
        %2056 = vset.pattern.permute.xlu0 3
        %2057 = vperm.xlu0 %2056, %v2001
        %v2058 = vpop.permute.xlu0 %2057
        %2060 = vrot.lane.b32.xlu0 %v1998, 64
        %v2061 = vpop.permute.xlu0 %2060
        %2062 = vrot.lane.b32.xlu0 %v1999, 64
        %v2063 = vpop.permute.xlu0 %2062
        %v2064 = vrot.slane %v2061, 1
        %v2065 = vrot.slane %v2063, 1
        %v2068 = vmul.f32 %v2064, %v2054
        %v2069 = vmul.f32 %v2065, %v2058
        %v2070 = vadd.f32 %v2050, %v2068
        %v2071 = vadd.f32 %v2051, %v2069
        %2072 = vset.pattern.permute.xlu0 4
        %2073 = vperm.xlu0 %2072, %v2000
        %v2074 = vpop.permute.xlu0 %2073
        %2076 = vset.pattern.permute.xlu0 4
        %2077 = vperm.xlu0 %2076, %v2001
        %v2078 = vpop.permute.xlu0 %2077
        %v2080 = vrot.slane %v1998, 2
        %v2081 = vrot.slane %v1999, 2
        %v2084 = vmul.f32 %v2080, %v2074
        %v2085 = vmul.f32 %v2081, %v2078
        %v2086 = vadd.f32 %v2070, %v2084
        %v2087 = vadd.f32 %v2071, %v2085
        %2088 = vset.pattern.permute.xlu0 5
        %2089 = vperm.xlu0 %2088, %v2000
        %v2090 = vpop.permute.xlu0 %2089
        %2092 = vset.pattern.permute.xlu0 5
        %2093 = vperm.xlu0 %2092, %v2001
        %v2094 = vpop.permute.xlu0 %2093
        %v2096 = vrot.slane %v2061, 2
        %v2097 = vrot.slane %v2063, 2
        %v2100 = vmul.f32 %v2096, %v2090
        %v2101 = vmul.f32 %v2097, %v2094
        %v2102 = vadd.f32 %v2086, %v2100
        %v2103 = vadd.f32 %v2087, %v2101
        %2104 = vset.pattern.permute.xlu0 6
        %2105 = vperm.xlu0 %2104, %v2000
        %v2106 = vpop.permute.xlu0 %2105
        %2108 = vset.pattern.permute.xlu0 6
        %2109 = vperm.xlu0 %2108, %v2001
        %v2110 = vpop.permute.xlu0 %2109
        %v2112 = vrot.slane %v1998, 3
        %v2113 = vrot.slane %v1999, 3
        %v2116 = vmul.f32 %v2112, %v2106
        %v2117 = vmul.f32 %v2113, %v2110
        %v2118 = vadd.f32 %v2102, %v2116
        %v2119 = vadd.f32 %v2103, %v2117
        %2120 = vset.pattern.permute.xlu0 7
        %2121 = vperm.xlu0 %2120, %v2000
        %v2122 = vpop.permute.xlu0 %2121
        %2124 = vset.pattern.permute.xlu0 7
        %2125 = vperm.xlu0 %2124, %v2001
        %v2126 = vpop.permute.xlu0 %2125
        %v2128 = vrot.slane %v2061, 3
        %v2129 = vrot.slane %v2063, 3
        %v2132 = vmul.f32 %v2128, %v2122
        %v2133 = vmul.f32 %v2129, %v2126
        %v2134 = vadd.f32 %v2118, %v2132
        %v2135 = vadd.f32 %v2119, %v2133
        %2136 = vst.msk [vmem:[#allocation7 + $0x3] sm:$0x1] %vm1685, %v2134
        %2137 = vst.msk [vmem:[#allocation7 + $0xb] sm:$0x1] %vm1685, %v2135
        %s2138 = scalar_lea.vmem [#allocation4], 4
        %v2139 = vld [vmem:[%s2138] ss:$8 sm:$0xf]
        %s2140 = scalar_lea.vmem [#allocation4], 36
        %v2141 = vld [vmem:[%s2140] ss:$8 sm:$0xf]
        %v2142 = vmul.f32 %v2139, %v1998
        %v2143 = vmul.f32 %v2141, %v1999
        %s2144 = scalar_lea.vmem [#allocation5], 4
        %v2145 = vld [vmem:[%s2144] ss:$8 sm:$0xf]
        %s2146 = scalar_lea.vmem [#allocation5], 36
        %v2147 = vld [vmem:[%s2146] ss:$8 sm:$0xf]
        %v2148 = vadd.f32 %v2142, %v2145
        %v2149 = vadd.f32 %v2143, %v2147
        %v2150 = vld [vmem:[#allocation6 + $0x4] sm:$0x1]
        %v2151 = vld [vmem:[#allocation6 + $0xc] sm:$0x1]
        %2153 = vset.pattern.permute.xlu0 0
        %2154 = vperm.xlu0 %2153, %v2150
        %v2155 = vpop.permute.xlu0 %2154
        %2158 = vset.pattern.permute.xlu0 0
        %2159 = vperm.xlu0 %2158, %v2151
        %v2160 = vpop.permute.xlu0 %2159
        %v2162 = vmul.f32 %v2148, %v2155
        %v2163 = vmul.f32 %v2149, %v2160
        %2164 = vset.pattern.permute.xlu0 1
        %2165 = vperm.xlu0 %2164, %v2150
        %v2166 = vpop.permute.xlu0 %2165
        %2168 = vset.pattern.permute.xlu0 1
        %2169 = vperm.xlu0 %2168, %v2151
        %v2170 = vpop.permute.xlu0 %2169
        %v2172 = vmul.f32 %v2148, %v2166
        %v2173 = vmul.f32 %v2149, %v2170
        %2176 = vrot.lane.b32.xlu0 %v2172, 64
        %v2177 = vpop.permute.xlu0 %2176
        %2178 = vrot.lane.b32.xlu0 %v2173, 64
        %v2179 = vpop.permute.xlu0 %2178
        %v2182 = vadd.f32 %v2162, %v2177
        %v2183 = vadd.f32 %v2163, %v2179
        %2184 = vset.pattern.permute.xlu0 2
        %2185 = vperm.xlu0 %2184, %v2150
        %v2186 = vpop.permute.xlu0 %2185
        %2188 = vset.pattern.permute.xlu0 2
        %2189 = vperm.xlu0 %2188, %v2151
        %v2190 = vpop.permute.xlu0 %2189
        %v2194 = vrot.slane %v2148, 1
        %v2195 = vrot.slane %v2149, 1
        %v2198 = vmul.f32 %v2194, %v2186
        %v2199 = vmul.f32 %v2195, %v2190
        %v2200 = vadd.f32 %v2182, %v2198
        %v2201 = vadd.f32 %v2183, %v2199
        %2202 = vset.pattern.permute.xlu0 3
        %2203 = vperm.xlu0 %2202, %v2150
        %v2204 = vpop.permute.xlu0 %2203
        %2206 = vset.pattern.permute.xlu0 3
        %2207 = vperm.xlu0 %2206, %v2151
        %v2208 = vpop.permute.xlu0 %2207
        %2210 = vrot.lane.b32.xlu0 %v2148, 64
        %v2211 = vpop.permute.xlu0 %2210
        %2212 = vrot.lane.b32.xlu0 %v2149, 64
        %v2213 = vpop.permute.xlu0 %2212
        %v2214 = vrot.slane %v2211, 1
        %v2215 = vrot.slane %v2213, 1
        %v2218 = vmul.f32 %v2214, %v2204
        %v2219 = vmul.f32 %v2215, %v2208
        %v2220 = vadd.f32 %v2200, %v2218
        %v2221 = vadd.f32 %v2201, %v2219
        %2222 = vset.pattern.permute.xlu0 4
        %2223 = vperm.xlu0 %2222, %v2150
        %v2224 = vpop.permute.xlu0 %2223
        %2226 = vset.pattern.permute.xlu0 4
        %2227 = vperm.xlu0 %2226, %v2151
        %v2228 = vpop.permute.xlu0 %2227
        %v2230 = vrot.slane %v2148, 2
        %v2231 = vrot.slane %v2149, 2
        %v2234 = vmul.f32 %v2230, %v2224
        %v2235 = vmul.f32 %v2231, %v2228
        %v2236 = vadd.f32 %v2220, %v2234
        %v2237 = vadd.f32 %v2221, %v2235
        %2238 = vset.pattern.permute.xlu0 5
        %2239 = vperm.xlu0 %2238, %v2150
        %v2240 = vpop.permute.xlu0 %2239
        %2242 = vset.pattern.permute.xlu0 5
        %2243 = vperm.xlu0 %2242, %v2151
        %v2244 = vpop.permute.xlu0 %2243
        %v2246 = vrot.slane %v2211, 2
        %v2247 = vrot.slane %v2213, 2
        %v2250 = vmul.f32 %v2246, %v2240
        %v2251 = vmul.f32 %v2247, %v2244
        %v2252 = vadd.f32 %v2236, %v2250
        %v2253 = vadd.f32 %v2237, %v2251
        %2254 = vset.pattern.permute.xlu0 6
        %2255 = vperm.xlu0 %2254, %v2150
        %v2256 = vpop.permute.xlu0 %2255
        %2258 = vset.pattern.permute.xlu0 6
        %2259 = vperm.xlu0 %2258, %v2151
        %v2260 = vpop.permute.xlu0 %2259
        %v2262 = vrot.slane %v2148, 3
        %v2263 = vrot.slane %v2149, 3
        %v2266 = vmul.f32 %v2262, %v2256
        %v2267 = vmul.f32 %v2263, %v2260
        %v2268 = vadd.f32 %v2252, %v2266
        %v2269 = vadd.f32 %v2253, %v2267
        %2270 = vset.pattern.permute.xlu0 7
        %2271 = vperm.xlu0 %2270, %v2150
        %v2272 = vpop.permute.xlu0 %2271
        %2274 = vset.pattern.permute.xlu0 7
        %2275 = vperm.xlu0 %2274, %v2151
        %v2276 = vpop.permute.xlu0 %2275
        %v2278 = vrot.slane %v2211, 3
        %v2279 = vrot.slane %v2213, 3
        %v2282 = vmul.f32 %v2278, %v2272
        %v2283 = vmul.f32 %v2279, %v2276
        %v2284 = vadd.f32 %v2268, %v2282
        %v2285 = vadd.f32 %v2269, %v2283
        %2286 = vst.msk [vmem:[#allocation7 + $0x4] sm:$0x1] %vm1685, %v2284
        %2287 = vst.msk [vmem:[#allocation7 + $0xc] sm:$0x1] %vm1685, %v2285
        %s2288 = scalar_lea.vmem [#allocation4], 5
        %v2289 = vld [vmem:[%s2288] ss:$8 sm:$0xf]
        %s2290 = scalar_lea.vmem [#allocation4], 37
        %v2291 = vld [vmem:[%s2290] ss:$8 sm:$0xf]
        %v2292 = vmul.f32 %v2289, %v2148
        %v2293 = vmul.f32 %v2291, %v2149
        %s2294 = scalar_lea.vmem [#allocation5], 5
        %v2295 = vld [vmem:[%s2294] ss:$8 sm:$0xf]
        %s2296 = scalar_lea.vmem [#allocation5], 37
        %v2297 = vld [vmem:[%s2296] ss:$8 sm:$0xf]
        %v2298 = vadd.f32 %v2292, %v2295
        %v2299 = vadd.f32 %v2293, %v2297
        %v2300 = vld [vmem:[#allocation6 + $0x5] sm:$0x1]
        %v2301 = vld [vmem:[#allocation6 + $0xd] sm:$0x1]
        %2303 = vset.pattern.permute.xlu0 0
        %2304 = vperm.xlu0 %2303, %v2300
        %v2305 = vpop.permute.xlu0 %2304
        %2308 = vset.pattern.permute.xlu0 0
        %2309 = vperm.xlu0 %2308, %v2301
        %v2310 = vpop.permute.xlu0 %2309
        %v2312 = vmul.f32 %v2298, %v2305
        %v2313 = vmul.f32 %v2299, %v2310
        %2314 = vset.pattern.permute.xlu0 1
        %2315 = vperm.xlu0 %2314, %v2300
        %v2316 = vpop.permute.xlu0 %2315
        %2318 = vset.pattern.permute.xlu0 1
        %2319 = vperm.xlu0 %2318, %v2301
        %v2320 = vpop.permute.xlu0 %2319
        %v2322 = vmul.f32 %v2298, %v2316
        %v2323 = vmul.f32 %v2299, %v2320
        %2326 = vrot.lane.b32.xlu0 %v2322, 64
        %v2327 = vpop.permute.xlu0 %2326
        %2328 = vrot.lane.b32.xlu0 %v2323, 64
        %v2329 = vpop.permute.xlu0 %2328
        %v2332 = vadd.f32 %v2312, %v2327
        %v2333 = vadd.f32 %v2313, %v2329
        %2334 = vset.pattern.permute.xlu0 2
        %2335 = vperm.xlu0 %2334, %v2300
        %v2336 = vpop.permute.xlu0 %2335
        %2338 = vset.pattern.permute.xlu0 2
        %2339 = vperm.xlu0 %2338, %v2301
        %v2340 = vpop.permute.xlu0 %2339
        %v2344 = vrot.slane %v2298, 1
        %v2345 = vrot.slane %v2299, 1
        %v2348 = vmul.f32 %v2344, %v2336
        %v2349 = vmul.f32 %v2345, %v2340
        %v2350 = vadd.f32 %v2332, %v2348
        %v2351 = vadd.f32 %v2333, %v2349
        %2352 = vset.pattern.permute.xlu0 3
        %2353 = vperm.xlu0 %2352, %v2300
        %v2354 = vpop.permute.xlu0 %2353
        %2356 = vset.pattern.permute.xlu0 3
        %2357 = vperm.xlu0 %2356, %v2301
        %v2358 = vpop.permute.xlu0 %2357
        %2360 = vrot.lane.b32.xlu0 %v2298, 64
        %v2361 = vpop.permute.xlu0 %2360
        %2362 = vrot.lane.b32.xlu0 %v2299, 64
        %v2363 = vpop.permute.xlu0 %2362
        %v2364 = vrot.slane %v2361, 1
        %v2365 = vrot.slane %v2363, 1
        %v2368 = vmul.f32 %v2364, %v2354
        %v2369 = vmul.f32 %v2365, %v2358
        %v2370 = vadd.f32 %v2350, %v2368
        %v2371 = vadd.f32 %v2351, %v2369
        %2372 = vset.pattern.permute.xlu0 4
        %2373 = vperm.xlu0 %2372, %v2300
        %v2374 = vpop.permute.xlu0 %2373
        %2376 = vset.pattern.permute.xlu0 4
        %2377 = vperm.xlu0 %2376, %v2301
        %v2378 = vpop.permute.xlu0 %2377
        %v2380 = vrot.slane %v2298, 2
        %v2381 = vrot.slane %v2299, 2
        %v2384 = vmul.f32 %v2380, %v2374
        %v2385 = vmul.f32 %v2381, %v2378
        %v2386 = vadd.f32 %v2370, %v2384
        %v2387 = vadd.f32 %v2371, %v2385
        %2388 = vset.pattern.permute.xlu0 5
        %2389 = vperm.xlu0 %2388, %v2300
        %v2390 = vpop.permute.xlu0 %2389
        %2392 = vset.pattern.permute.xlu0 5
        %2393 = vperm.xlu0 %2392, %v2301
        %v2394 = vpop.permute.xlu0 %2393
        %v2396 = vrot.slane %v2361, 2
        %v2397 = vrot.slane %v2363, 2
        %v2400 = vmul.f32 %v2396, %v2390
        %v2401 = vmul.f32 %v2397, %v2394
        %v2402 = vadd.f32 %v2386, %v2400
        %v2403 = vadd.f32 %v2387, %v2401
        %2404 = vset.pattern.permute.xlu0 6
        %2405 = vperm.xlu0 %2404, %v2300
        %v2406 = vpop.permute.xlu0 %2405
        %2408 = vset.pattern.permute.xlu0 6
        %2409 = vperm.xlu0 %2408, %v2301
        %v2410 = vpop.permute.xlu0 %2409
        %v2412 = vrot.slane %v2298, 3
        %v2413 = vrot.slane %v2299, 3
        %v2416 = vmul.f32 %v2412, %v2406
        %v2417 = vmul.f32 %v2413, %v2410
        %v2418 = vadd.f32 %v2402, %v2416
        %v2419 = vadd.f32 %v2403, %v2417
        %2420 = vset.pattern.permute.xlu0 7
        %2421 = vperm.xlu0 %2420, %v2300
        %v2422 = vpop.permute.xlu0 %2421
        %2424 = vset.pattern.permute.xlu0 7
        %2425 = vperm.xlu0 %2424, %v2301
        %v2426 = vpop.permute.xlu0 %2425
        %v2428 = vrot.slane %v2361, 3
        %v2429 = vrot.slane %v2363, 3
        %v2432 = vmul.f32 %v2428, %v2422
        %v2433 = vmul.f32 %v2429, %v2426
        %v2434 = vadd.f32 %v2418, %v2432
        %v2435 = vadd.f32 %v2419, %v2433
        %2436 = vst.msk [vmem:[#allocation7 + $0x5] sm:$0x1] %vm1685, %v2434
        %2437 = vst.msk [vmem:[#allocation7 + $0xd] sm:$0x1] %vm1685, %v2435
        %s2438 = scalar_lea.vmem [#allocation4], 6
        %v2439 = vld [vmem:[%s2438] ss:$8 sm:$0xf]
        %s2440 = scalar_lea.vmem [#allocation4], 38
        %v2441 = vld [vmem:[%s2440] ss:$8 sm:$0xf]
        %v2442 = vmul.f32 %v2439, %v2298
        %v2443 = vmul.f32 %v2441, %v2299
        %s2444 = scalar_lea.vmem [#allocation5], 6
        %v2445 = vld [vmem:[%s2444] ss:$8 sm:$0xf]
        %s2446 = scalar_lea.vmem [#allocation5], 38
        %v2447 = vld [vmem:[%s2446] ss:$8 sm:$0xf]
        %v2448 = vadd.f32 %v2442, %v2445
        %v2449 = vadd.f32 %v2443, %v2447
        %v2450 = vld [vmem:[#allocation6 + $0x6] sm:$0x1]
        %v2451 = vld [vmem:[#allocation6 + $0xe] sm:$0x1]
        %2453 = vset.pattern.permute.xlu0 0
        %2454 = vperm.xlu0 %2453, %v2450
        %v2455 = vpop.permute.xlu0 %2454
        %2458 = vset.pattern.permute.xlu0 0
        %2459 = vperm.xlu0 %2458, %v2451
        %v2460 = vpop.permute.xlu0 %2459
        %v2462 = vmul.f32 %v2448, %v2455
        %v2463 = vmul.f32 %v2449, %v2460
        %2464 = vset.pattern.permute.xlu0 1
        %2465 = vperm.xlu0 %2464, %v2450
        %v2466 = vpop.permute.xlu0 %2465
        %2468 = vset.pattern.permute.xlu0 1
        %2469 = vperm.xlu0 %2468, %v2451
        %v2470 = vpop.permute.xlu0 %2469
        %v2472 = vmul.f32 %v2448, %v2466
        %v2473 = vmul.f32 %v2449, %v2470
        %2476 = vrot.lane.b32.xlu0 %v2472, 64
        %v2477 = vpop.permute.xlu0 %2476
        %2478 = vrot.lane.b32.xlu0 %v2473, 64
        %v2479 = vpop.permute.xlu0 %2478
        %v2482 = vadd.f32 %v2462, %v2477
        %v2483 = vadd.f32 %v2463, %v2479
        %2484 = vset.pattern.permute.xlu0 2
        %2485 = vperm.xlu0 %2484, %v2450
        %v2486 = vpop.permute.xlu0 %2485
        %2488 = vset.pattern.permute.xlu0 2
        %2489 = vperm.xlu0 %2488, %v2451
        %v2490 = vpop.permute.xlu0 %2489
        %v2494 = vrot.slane %v2448, 1
        %v2495 = vrot.slane %v2449, 1
        %v2498 = vmul.f32 %v2494, %v2486
        %v2499 = vmul.f32 %v2495, %v2490
        %v2500 = vadd.f32 %v2482, %v2498
        %v2501 = vadd.f32 %v2483, %v2499
        %2502 = vset.pattern.permute.xlu0 3
        %2503 = vperm.xlu0 %2502, %v2450
        %v2504 = vpop.permute.xlu0 %2503
        %2506 = vset.pattern.permute.xlu0 3
        %2507 = vperm.xlu0 %2506, %v2451
        %v2508 = vpop.permute.xlu0 %2507
        %2510 = vrot.lane.b32.xlu0 %v2448, 64
        %v2511 = vpop.permute.xlu0 %2510
        %2512 = vrot.lane.b32.xlu0 %v2449, 64
        %v2513 = vpop.permute.xlu0 %2512
        %v2514 = vrot.slane %v2511, 1
        %v2515 = vrot.slane %v2513, 1
        %v2518 = vmul.f32 %v2514, %v2504
        %v2519 = vmul.f32 %v2515, %v2508
        %v2520 = vadd.f32 %v2500, %v2518
        %v2521 = vadd.f32 %v2501, %v2519
        %2522 = vset.pattern.permute.xlu0 4
        %2523 = vperm.xlu0 %2522, %v2450
        %v2524 = vpop.permute.xlu0 %2523
        %2526 = vset.pattern.permute.xlu0 4
        %2527 = vperm.xlu0 %2526, %v2451
        %v2528 = vpop.permute.xlu0 %2527
        %v2530 = vrot.slane %v2448, 2
        %v2531 = vrot.slane %v2449, 2
        %v2534 = vmul.f32 %v2530, %v2524
        %v2535 = vmul.f32 %v2531, %v2528
        %v2536 = vadd.f32 %v2520, %v2534
        %v2537 = vadd.f32 %v2521, %v2535
        %2538 = vset.pattern.permute.xlu0 5
        %2539 = vperm.xlu0 %2538, %v2450
        %v2540 = vpop.permute.xlu0 %2539
        %2542 = vset.pattern.permute.xlu0 5
        %2543 = vperm.xlu0 %2542, %v2451
        %v2544 = vpop.permute.xlu0 %2543
        %v2546 = vrot.slane %v2511, 2
        %v2547 = vrot.slane %v2513, 2
        %v2550 = vmul.f32 %v2546, %v2540
        %v2551 = vmul.f32 %v2547, %v2544
        %v2552 = vadd.f32 %v2536, %v2550
        %v2553 = vadd.f32 %v2537, %v2551
        %2554 = vset.pattern.permute.xlu0 6
        %2555 = vperm.xlu0 %2554, %v2450
        %v2556 = vpop.permute.xlu0 %2555
        %2558 = vset.pattern.permute.xlu0 6
        %2559 = vperm.xlu0 %2558, %v2451
        %v2560 = vpop.permute.xlu0 %2559
        %v2562 = vrot.slane %v2448, 3
        %v2563 = vrot.slane %v2449, 3
        %v2566 = vmul.f32 %v2562, %v2556
        %v2567 = vmul.f32 %v2563, %v2560
        %v2568 = vadd.f32 %v2552, %v2566
        %v2569 = vadd.f32 %v2553, %v2567
        %2570 = vset.pattern.permute.xlu0 7
        %2571 = vperm.xlu0 %2570, %v2450
        %v2572 = vpop.permute.xlu0 %2571
        %2574 = vset.pattern.permute.xlu0 7
        %2575 = vperm.xlu0 %2574, %v2451
        %v2576 = vpop.permute.xlu0 %2575
        %v2578 = vrot.slane %v2511, 3
        %v2579 = vrot.slane %v2513, 3
        %v2582 = vmul.f32 %v2578, %v2572
        %v2583 = vmul.f32 %v2579, %v2576
        %v2584 = vadd.f32 %v2568, %v2582
        %v2585 = vadd.f32 %v2569, %v2583
        %2586 = vst.msk [vmem:[#allocation7 + $0x6] sm:$0x1] %vm1685, %v2584
        %2587 = vst.msk [vmem:[#allocation7 + $0xe] sm:$0x1] %vm1685, %v2585
        %s2588 = scalar_lea.vmem [#allocation4], 7
        %v2589 = vld [vmem:[%s2588] ss:$8 sm:$0xf]
        %s2590 = scalar_lea.vmem [#allocation4], 39
        %v2591 = vld [vmem:[%s2590] ss:$8 sm:$0xf]
        %v2592 = vmul.f32 %v2589, %v2448
        %v2593 = vmul.f32 %v2591, %v2449
        %s2594 = scalar_lea.vmem [#allocation5], 7
        %v2595 = vld [vmem:[%s2594] ss:$8 sm:$0xf]
        %s2596 = scalar_lea.vmem [#allocation5], 39
        %v2597 = vld [vmem:[%s2596] ss:$8 sm:$0xf]
        %v2598 = vadd.f32 %v2592, %v2595
        %v2599 = vadd.f32 %v2593, %v2597
        %v2600 = vld [vmem:[#allocation6 + $0x7] sm:$0x1]
        %v2601 = vld [vmem:[#allocation6 + $0xf] sm:$0x1]
        %2603 = vset.pattern.permute.xlu0 0
        %2604 = vperm.xlu0 %2603, %v2600
        %v2605 = vpop.permute.xlu0 %2604
        %2608 = vset.pattern.permute.xlu0 0
        %2609 = vperm.xlu0 %2608, %v2601
        %v2610 = vpop.permute.xlu0 %2609
        %v2612 = vmul.f32 %v2598, %v2605
        %v2613 = vmul.f32 %v2599, %v2610
        %2614 = vset.pattern.permute.xlu0 1
        %2615 = vperm.xlu0 %2614, %v2600
        %v2616 = vpop.permute.xlu0 %2615
        %2618 = vset.pattern.permute.xlu0 1
        %2619 = vperm.xlu0 %2618, %v2601
        %v2620 = vpop.permute.xlu0 %2619
        %v2622 = vmul.f32 %v2598, %v2616
        %v2623 = vmul.f32 %v2599, %v2620
        %2626 = vrot.lane.b32.xlu0 %v2622, 64
        %v2627 = vpop.permute.xlu0 %2626
        %2628 = vrot.lane.b32.xlu0 %v2623, 64
        %v2629 = vpop.permute.xlu0 %2628
        %v2632 = vadd.f32 %v2612, %v2627
        %v2633 = vadd.f32 %v2613, %v2629
        %2634 = vset.pattern.permute.xlu0 2
        %2635 = vperm.xlu0 %2634, %v2600
        %v2636 = vpop.permute.xlu0 %2635
        %2638 = vset.pattern.permute.xlu0 2
        %2639 = vperm.xlu0 %2638, %v2601
        %v2640 = vpop.permute.xlu0 %2639
        %v2644 = vrot.slane %v2598, 1
        %v2645 = vrot.slane %v2599, 1
        %v2648 = vmul.f32 %v2644, %v2636
        %v2649 = vmul.f32 %v2645, %v2640
        %v2650 = vadd.f32 %v2632, %v2648
        %v2651 = vadd.f32 %v2633, %v2649
        %2652 = vset.pattern.permute.xlu0 3
        %2653 = vperm.xlu0 %2652, %v2600
        %v2654 = vpop.permute.xlu0 %2653
        %2656 = vset.pattern.permute.xlu0 3
        %2657 = vperm.xlu0 %2656, %v2601
        %v2658 = vpop.permute.xlu0 %2657
        %2660 = vrot.lane.b32.xlu0 %v2598, 64
        %v2661 = vpop.permute.xlu0 %2660
        %2662 = vrot.lane.b32.xlu0 %v2599, 64
        %v2663 = vpop.permute.xlu0 %2662
        %v2664 = vrot.slane %v2661, 1
        %v2665 = vrot.slane %v2663, 1
        %v2668 = vmul.f32 %v2664, %v2654
        %v2669 = vmul.f32 %v2665, %v2658
        %v2670 = vadd.f32 %v2650, %v2668
        %v2671 = vadd.f32 %v2651, %v2669
        %2672 = vset.pattern.permute.xlu0 4
        %2673 = vperm.xlu0 %2672, %v2600
        %v2674 = vpop.permute.xlu0 %2673
        %2676 = vset.pattern.permute.xlu0 4
        %2677 = vperm.xlu0 %2676, %v2601
        %v2678 = vpop.permute.xlu0 %2677
        %v2680 = vrot.slane %v2598, 2
        %v2681 = vrot.slane %v2599, 2
        %v2684 = vmul.f32 %v2680, %v2674
        %v2685 = vmul.f32 %v2681, %v2678
        %v2686 = vadd.f32 %v2670, %v2684
        %v2687 = vadd.f32 %v2671, %v2685
        %2688 = vset.pattern.permute.xlu0 5
        %2689 = vperm.xlu0 %2688, %v2600
        %v2690 = vpop.permute.xlu0 %2689
        %2692 = vset.pattern.permute.xlu0 5
        %2693 = vperm.xlu0 %2692, %v2601
        %v2694 = vpop.permute.xlu0 %2693
        %v2696 = vrot.slane %v2661, 2
        %v2697 = vrot.slane %v2663, 2
        %v2700 = vmul.f32 %v2696, %v2690
        %v2701 = vmul.f32 %v2697, %v2694
        %v2702 = vadd.f32 %v2686, %v2700
        %v2703 = vadd.f32 %v2687, %v2701
        %2704 = vset.pattern.permute.xlu0 6
        %2705 = vperm.xlu0 %2704, %v2600
        %v2706 = vpop.permute.xlu0 %2705
        %2708 = vset.pattern.permute.xlu0 6
        %2709 = vperm.xlu0 %2708, %v2601
        %v2710 = vpop.permute.xlu0 %2709
        %v2712 = vrot.slane %v2598, 3
        %v2713 = vrot.slane %v2599, 3
        %v2716 = vmul.f32 %v2712, %v2706
        %v2717 = vmul.f32 %v2713, %v2710
        %v2718 = vadd.f32 %v2702, %v2716
        %v2719 = vadd.f32 %v2703, %v2717
        %2720 = vset.pattern.permute.xlu0 7
        %2721 = vperm.xlu0 %2720, %v2600
        %v2722 = vpop.permute.xlu0 %2721
        %2724 = vset.pattern.permute.xlu0 7
        %2725 = vperm.xlu0 %2724, %v2601
        %v2726 = vpop.permute.xlu0 %2725
        %v2728 = vrot.slane %v2661, 3
        %v2729 = vrot.slane %v2663, 3
        %v2732 = vmul.f32 %v2728, %v2722
        %v2733 = vmul.f32 %v2729, %v2726
        %v2734 = vadd.f32 %v2718, %v2732
        %v2735 = vadd.f32 %v2719, %v2733
        %2736 = vst.msk [vmem:[#allocation7 + $0x7] sm:$0x1] %vm1685, %v2734
        %2737 = vst.msk [vmem:[#allocation7 + $0xf] sm:$0x1] %vm1685, %v2735
        %v2738 = vld [vmem:[#allocation7] sm:$0xff]
        %v2739 = vld [vmem:[#allocation7 + $0x8] sm:$0xff]
        %v2740 = vld [vmem:[%s994] sm:$0x1]
        %v2742 = vlaneseq
        %v2743 = vshrl.u32 %v2742, 7
        %v2744 = vsub.s32 0, %v2743
        %v2745 = vrot.slane %v2740, %v2744
        %v2747 = vmul.f32 %v2745, %v1214
        %v2748 = vmul.f32 %v2745, %v1215
        %v2749 = vadd.f32 %v2738, %v2747
        %v2750 = vadd.f32 %v2739, %v2748
        %v2751 = vsub.f32 0.0, %v1124
        %v2752 = vsub.f32 0.0, %v1127
        %v2753 = vmul.f32 %v2751, 1.442695
        %v2754 = vpow.pop %v2753
        %v2755 = vmul.f32 %v2752, 1.442695
        %v2756 = vpow.pop %v2755
        %v2757 = vadd.f32 %v2754, 1.0
        %v2758 = vadd.f32 %v2756, 1.0
        %v2759 = vrcp.pop %v2757
        %v2760 = vmul.f32 1.0, %v2759
        %v2761 = vrcp.pop %v2758
        %v2762 = vmul.f32 1.0, %v2761
        %v2763 = vmul.f32 %v1124, %v2760
        %v2764 = vmul.f32 %v1127, %v2762
        %2767 = vrot.lane.b32.xlu0 %v2763, 64
        %v2768 = vpop.permute.xlu0 %2767
        %2769 = vrot.lane.b32.xlu0 %v2764, 64
        %v2770 = vpop.permute.xlu0 %2769
        %v2773 = vmul.f32 %v2749, %v2768
        %v2774 = vmul.f32 %v2750, %v2770
        %v2775 = vpack.c.bf16 %v2774, %v2773
        %v2776 = vld [vmem:[%s999] sm:$0xf]
        %v2777 = vld [vmem:[%s999 + $0x4] sm:$0xf]
        %v2778 = vld [vmem:[%s999 + $0x8] sm:$0xf]
        %v2779 = vld [vmem:[%s999 + $0xc] sm:$0xf]
        %v2780 = vld [vmem:[%s999 + $0x10] sm:$0xf]
        %v2781 = vld [vmem:[%s999 + $0x14] sm:$0xf]
        %v2782 = vld [vmem:[%s999 + $0x18] sm:$0xf]
        %v2783 = vld [vmem:[%s999 + $0x1c] sm:$0xf]
        %v2792 = vunpack.c.l.b16 %v2776
        %v2793 = vunpack.c.l.b16 %v2777
        %v2794 = vunpack.c.l.b16 %v2778
        %v2795 = vunpack.c.l.b16 %v2779
        %v2796 = vunpack.c.l.b16 %v2780
        %v2797 = vunpack.c.l.b16 %v2781
        %v2798 = vunpack.c.l.b16 %v2782
        %v2799 = vunpack.c.l.b16 %v2783
        %v2800 = vpack.c.b16 %v2793, %v2792
        %v2801 = vpack.c.b16 %v2795, %v2794
        %v2802 = vpack.c.b16 %v2797, %v2796
        %v2803 = vpack.c.b16 %v2799, %v2798
        %v2809 = vsel %vm1224, %v2775, 0
        %2811 = vmatprep.subr.bf16.mxu0 0
        %2812 = vmatpush1.bf16.msra.mxu0 %v2800
        %2813 = vmatprep.subr.bf16.mxu0 0
        %2814 = vmatpush1.bf16.msra.mxu0 %v2801
        %2815 = vmatprep.subr.bf16.mxu0 0
        %2816 = vmatpush1.bf16.msra.mxu0 %v2802
        %2817 = vmatprep.subr.bf16.mxu0 0
        %2818 = vmatpush1.bf16.msra.mxu0 %v2803
        %2819 = vmatprep.subr.bf16.mxu0 0
        %2820 = vmatpush1.bf16.msra.mxu0 0
        %2821 = vmatprep.subr.bf16.mxu0 0
        %2822 = vmatpush1.bf16.msra.mxu0 0
        %2823 = vmatprep.subr.bf16.mxu0 0
        %2824 = vmatpush1.bf16.msra.mxu0 0
        %2825 = vmatprep.subr.bf16.mxu0 0
        %2826 = vmatpush1.bf16.msra.mxu0 0
        %2827 = vmatprep.subr.bf16.mxu0 0
        %2828 = vmatpush1.bf16.msra.mxu0 0
        %2829 = vmatprep.subr.bf16.mxu0 0
        %2830 = vmatpush1.bf16.msra.mxu0 0
        %2831 = vmatprep.subr.bf16.mxu0 0
        %2832 = vmatpush1.bf16.msra.mxu0 0
        %2833 = vmatprep.subr.bf16.mxu0 0
        %2834 = vmatpush1.bf16.msra.mxu0 0
        %2835 = vmatprep.subr.bf16.mxu0 0
        %2836 = vmatpush1.bf16.msra.mxu0 0
        %2837 = vmatprep.subr.bf16.mxu0 0
        %2838 = vmatpush1.bf16.msra.mxu0 0
        %2839 = vmatprep.subr.bf16.mxu0 0
        %2840 = vmatpush1.bf16.msra.mxu0 0
        %2841 = vmatprep.subr.bf16.mxu0 0
        %2842 = vmatpush1.bf16.msra.mxu0 0
        %2843 = vmatprep.mubr.bf16.mxu0 0
        %2844 = vmatmul.mubr.bf16.gmra.mrb[0].mxu0 %v2809
        %v2845 = vpop.f32.mrb[0].mxu0
        %v2846 = vadd.f32 0.0, %v2845
        %v2847 = vpop.f32.mrb[0].mxu0
        %v2848 = vpop.f32.mrb[0].mxu0
        %v2849 = vadd.f32 0.0, %v2848
        %v2850 = vpop.f32.mrb[0].mxu0
        %2851 = vdwg.mxu0
        %2852 = vst.msk [vmem:[#allocation2] sm:$0xff] %vm1021, %v2846
        %2853 = vst.msk [vmem:[#allocation2 + $0x8] sm:$0xff] %vm1021, %v2849
        %p2854 = scmp.eq.s32.totalorder %s53, 1
        // Predicated region
        $region137: #{tpu_custom_call.1} parent=95 // pred_check
          %p2855 = pneg %p2854
        $region138: #{tpu_custom_call.1} parent=95 // pred_check_branch
          %2857 = sbr.rel (%p2855) target = $region140
        $region139: #{tpu_custom_call.1} parent=95 // pred_region
          %v2858 = vld [vmem:[#allocation2] sm:$0xff]
          %v2859 = vld [vmem:[#allocation2 + $0x8] sm:$0xff]
          %v2860 = vld [vmem:[#allocation3] sm:$0xff]
          %v2861 = vld [vmem:[#allocation3 + $0x8] sm:$0xff]
          %v2862 = vadd.f32 %v2858, %v2860
          %v2863 = vadd.f32 %v2859, %v2861
          %v2864 = vld [vmem:[%s12] sm:$0x1]
          %v2865 = vld [vmem:[#allocation22] sm:$0x1]
          %v2866 = vsel %vm1021, %v2862, 0.0
          %2867 = vadd.xlane.f32.xlu0 %v2866
          %v2868 = vpop.xlane.xlu0 %2867
          %v2869 = vsel %vm1021, %v2863, 0.0
          %2870 = vadd.xlane.f32.xlu0 %v2869
          %v2871 = vpop.xlane.xlu0 %2870
          %v2872 = vmul.f32 %v2868, %v1032
          %v2873 = vmul.f32 %v2871, %v1032
          %v2874 = vsub.f32 %v2862, %v2872
          %v2875 = vsub.f32 %v2863, %v2873
          %v2876 = vmul.f32 %v2874, %v2874
          %v2877 = vmul.f32 %v2875, %v2875
          %v2878 = vsel %vm1021, %v2876, 0.0
          %2879 = vadd.xlane.f32.xlu0 %v2878
          %v2880 = vpop.xlane.xlu0 %2879
          %v2881 = vsel %vm1021, %v2877, 0.0
          %2882 = vadd.xlane.f32.xlu0 %v2881
          %v2883 = vpop.xlane.xlu0 %2882
          %v2884 = vmul.f32 %v2880, %v1032
          %v2885 = vmul.f32 %v2883, %v1032
          %v2886 = vadd.f32 %v2884, 1e-05
          %v2887 = vadd.f32 %v2885, 1e-05
          %v2888 = vrsqrt.pop %v2886
          %v2889 = vrsqrt.pop %v2887
          %v2890 = vmul.f32 %v2874, %v2888
          %v2891 = vmul.f32 %v2875, %v2889
          %v2893 = vlaneseq
          %v2894 = vshrl.u32 %v2893, 7
          %v2895 = vsub.s32 0, %v2894
          %v2896 = vrot.slane %v2864, %v2895
          %v2898 = vmul.f32 %v2890, %v2896
          %v2899 = vmul.f32 %v2891, %v2896
          %v2901 = vlaneseq
          %v2902 = vshrl.u32 %v2901, 7
          %v2903 = vsub.s32 0, %v2902
          %v2904 = vrot.slane %v2865, %v2903
          %v2906 = vadd.f32 %v2898, %v2904
          %v2907 = vadd.f32 %v2899, %v2904
          %2908 = vst.msk [vmem:[#allocation24] sm:$0xff] %vm1021, %v2906
          %2909 = vst.msk [vmem:[#allocation24 + $0x8] sm:$0xff] %vm1021, %v2907
          %v2910 = vld [vmem:[%s985] sm:$0xff]
          %v2911 = vld [vmem:[%s985 + $0x8] sm:$0xff]
          %2913 = vset.pattern.permute.xlu0 0
          %2914 = vperm.xlu0 %2913, %v2910
          %v2915 = vpop.permute.xlu0 %2914
          %2918 = vset.pattern.permute.xlu0 0
          %2919 = vperm.xlu0 %2918, %v2911
          %v2920 = vpop.permute.xlu0 %2919
          %v2922 = vmul.f32 %v2906, %v2915
          %v2923 = vmul.f32 %v2907, %v2920
          %v2924 = vsel %vm1021, %v2922, 0.0
          %v2925 = vrot.slane %v2924, 4
          %v2926 = vadd.f32 %v2924, %v2925
          %v2927 = vrot.slane %v2926, 2
          %v2928 = vadd.f32 %v2926, %v2927
          %v2929 = vrot.slane %v2928, 1
          %v2930 = vadd.f32 %v2928, %v2929
          %v2931 = vsel %vm1021, %v2923, 0.0
          %v2932 = vrot.slane %v2931, 4
          %v2933 = vadd.f32 %v2931, %v2932
          %v2934 = vrot.slane %v2933, 2
          %v2935 = vadd.f32 %v2933, %v2934
          %v2936 = vrot.slane %v2935, 1
          %v2937 = vadd.f32 %v2935, %v2936
          %vm2938 = vcmask 7168
          %v2939 = vsel %vm2938, %v2910, 0.0
          %v2940 = vrot.slane %v2939, 4
          %v2941 = vadd.f32 %v2939, %v2940
          %v2942 = vrot.slane %v2941, 2
          %v2943 = vadd.f32 %v2941, %v2942
          %v2944 = vrot.slane %v2943, 1
          %v2945 = vadd.f32 %v2943, %v2944
          %v2946 = vsel %vm2938, %v2911, 0.0
          %v2947 = vrot.slane %v2946, 4
          %v2948 = vadd.f32 %v2946, %v2947
          %v2949 = vrot.slane %v2948, 2
          %v2950 = vadd.f32 %v2948, %v2949
          %v2951 = vrot.slane %v2950, 1
          %v2952 = vadd.f32 %v2950, %v2951
          %v2953 = vmax.f32 %v2945, 1e-09
          %v2954 = vmax.f32 %v2952, 1e-09
          %v2955 = vrcp.pop %v2953
          %v2956 = vrcp.pop %v2954
          %2958 = vset.pattern.permute.xlu0 0
          %2959 = vperm.xlu0 %2958, %v2955
          %v2960 = vpop.permute.xlu0 %2959
          %2963 = vset.pattern.permute.xlu0 0
          %2964 = vperm.xlu0 %2963, %v2956
          %v2965 = vpop.permute.xlu0 %2964
          %v2967 = vmul.f32 %v2930, %v2960
          %v2968 = vmul.f32 %v2937, %v2965
          %vm2969 = vcmask 253952
          %2970 = vst.msk [vmem:[#allocation26] sm:$0x1] %vm2969, %v2967
          %2971 = vst.msk [vmem:[#allocation26 + $0x1] sm:$0x1] %vm2969, %v2968
          %v2972 = vpack.c.bf16 %v2907, %v2906
          %v2973 = vld [vmem:[%s14] sm:$0xf]
          %v2974 = vld [vmem:[%s14 + $0x4] sm:$0xf]
          %v2975 = vld [vmem:[%s14 + $0x8] sm:$0xf]
          %v2976 = vld [vmem:[%s14 + $0xc] sm:$0xf]
          %v2977 = vld [vmem:[%s15] sm:$0x1]
          %v2979 = vlaneseq
          %v2980 = vshrl.u32 %v2979, 7
          %v2981 = vsub.s32 0, %v2980
          %v2982 = vrot.slane %v2977, %v2981
          %v2988 = vunpack.c.l.b16 %v2973
          %v2989 = vunpack.c.l.b16 %v2974
          %v2990 = vunpack.c.l.b16 %v2975
          %v2991 = vunpack.c.l.b16 %v2976
          %v2992 = vpack.c.b16 %v2989, %v2988
          %v2993 = vpack.c.b16 %v2991, %v2990
          %v2997 = vsel %vm1021, %v2972, 0
          %2999 = vmatprep.subr.bf16.mxu0 0
          %3000 = vmatpush1.bf16.msra.mxu0 %v2992
          %3001 = vmatprep.subr.bf16.mxu0 0
          %3002 = vmatpush1.bf16.msra.mxu0 %v2993
          %3003 = vmatprep.subr.bf16.mxu0 0
          %3004 = vmatpush1.bf16.msra.mxu0 0
          %3005 = vmatprep.subr.bf16.mxu0 0
          %3006 = vmatpush1.bf16.msra.mxu0 0
          %3007 = vmatprep.subr.bf16.mxu0 0
          %3008 = vmatpush1.bf16.msra.mxu0 0
          %3009 = vmatprep.subr.bf16.mxu0 0
          %3010 = vmatpush1.bf16.msra.mxu0 0
          %3011 = vmatprep.subr.bf16.mxu0 0
          %3012 = vmatpush1.bf16.msra.mxu0 0
          %3013 = vmatprep.subr.bf16.mxu0 0
          %3014 = vmatpush1.bf16.msra.mxu0 0
          %3015 = vmatprep.subr.bf16.mxu0 0
          %3016 = vmatpush1.bf16.msra.mxu0 0
          %3017 = vmatprep.subr.bf16.mxu0 0
          %3018 = vmatpush1.bf16.msra.mxu0 0
          %3019 = vmatprep.subr.bf16.mxu0 0
          %3020 = vmatpush1.bf16.msra.mxu0 0
          %3021 = vmatprep.subr.bf16.mxu0 0
          %3022 = vmatpush1.bf16.msra.mxu0 0
          %3023 = vmatprep.subr.bf16.mxu0 0
          %3024 = vmatpush1.bf16.msra.mxu0 0
          %3025 = vmatprep.subr.bf16.mxu0 0
          %3026 = vmatpush1.bf16.msra.mxu0 0
          %3027 = vmatprep.subr.bf16.mxu0 0
          %3028 = vmatpush1.bf16.msra.mxu0 0
          %3029 = vmatprep.subr.bf16.mxu0 0
          %3030 = vmatpush1.bf16.msra.mxu0 0
          %3031 = vmatprep.mubr.bf16.mxu0 0
          %3032 = vmatmul.mubr.bf16.gmra.mrb[0].mxu0 %v2997
          %v3033 = vpop.f32.mrb[0].mxu0
          %v3034 = vadd.f32 %v2982, %v3033
          %v3035 = vpop.f32.mrb[0].mxu0
          %v3036 = vpop.f32.mrb[0].mxu0
          %v3037 = vadd.f32 %v2982, %v3036
          %v3038 = vpop.f32.mrb[0].mxu0
          %3039 = vdwg.mxu0
          %v3040 = vmul.f32 %v3034, 0.5
          %v3041 = vmul.f32 %v3037, 0.5
          %v3042 = vmul.f32 %v3034, 0.70710677
          %v3043 = vmul.f32 %v3037, 0.70710677
          %vm3044 = vcmp.ge.f32.partialorder %v3042, 0.0
          %vm3045 = vcmp.ge.f32.partialorder %v3043, 0.0
          %v3046 = vsel %vm3044, 1.0, -1.0
          %v3047 = vsel %vm3045, 1.0, -1.0
          %v3048 = vand.u32 2147483647, %v3042
          %v3049 = vand.u32 2147483647, %v3043
          %v3050 = vmul.f32 %v3048, 0.3275911
          %v3051 = vmul.f32 %v3049, 0.3275911
          %v3052 = vadd.f32 %v3050, 1.0
          %v3053 = vadd.f32 %v3051, 1.0
          %v3054 = vrcp.pop %v3052
          %v3055 = vmul.f32 1.0, %v3054
          %v3056 = vrcp.pop %v3053
          %v3057 = vmul.f32 1.0, %v3056
          %v3058 = vmul.f32 %v3055, 1.0614054
          %v3059 = vmul.f32 %v3057, 1.0614054
          %v3060 = vadd.f32 %v3058, -1.4531521
          %v3061 = vadd.f32 %v3059, -1.4531521
          %v3062 = vmul.f32 %v3060, %v3055
          %v3063 = vmul.f32 %v3061, %v3057
          %v3064 = vadd.f32 %v3062, 1.4214138
          %v3065 = vadd.f32 %v3063, 1.4214138
          %v3066 = vmul.f32 %v3064, %v3055
          %v3067 = vmul.f32 %v3065, %v3057
          %v3068 = vadd.f32 %v3066, -0.28449672
          %v3069 = vadd.f32 %v3067, -0.28449672
          %v3070 = vmul.f32 %v3068, %v3055
          %v3071 = vmul.f32 %v3069, %v3057
          %v3072 = vadd.f32 %v3070, 0.2548296
          %v3073 = vadd.f32 %v3071, 0.2548296
          %v3074 = vmul.f32 %v3072, %v3055
          %v3075 = vmul.f32 %v3073, %v3057
          %v3076 = vsub.f32 0.0, %v3048
          %v3077 = vsub.f32 0.0, %v3049
          %v3078 = vmul.f32 %v3076, %v3048
          %v3079 = vmul.f32 %v3077, %v3049
          %v3080 = vmul.f32 %v3078, 1.442695
          %v3081 = vpow.pop %v3080
          %v3082 = vmul.f32 %v3079, 1.442695
          %v3083 = vpow.pop %v3082
          %v3084 = vmul.f32 %v3074, %v3081
          %v3085 = vmul.f32 %v3075, %v3083
          %v3086 = vsub.f32 1.0, %v3084
          %v3087 = vsub.f32 1.0, %v3085
          %v3088 = vmul.f32 %v3046, %v3086
          %v3089 = vmul.f32 %v3047, %v3087
          %v3090 = vadd.f32 %v3088, 1.0
          %v3091 = vadd.f32 %v3089, 1.0
          %v3092 = vmul.f32 %v3040, %v3090
          %v3093 = vmul.f32 %v3041, %v3091
          %v3094 = vld [vmem:[%s16] sm:$0x1]
          %v3095 = vld [vmem:[%s17] sm:$0x1]
          %v3096 = vsel %vm1021, %v3092, 0.0
          %3097 = vadd.xlane.f32.xlu0 %v3096
          %v3098 = vpop.xlane.xlu0 %3097
          %v3099 = vsel %vm1021, %v3093, 0.0
          %3100 = vadd.xlane.f32.xlu0 %v3099
          %v3101 = vpop.xlane.xlu0 %3100
          %v3102 = vmul.f32 %v3098, %v1032
          %v3103 = vmul.f32 %v3101, %v1032
          %v3104 = vsub.f32 %v3092, %v3102
          %v3105 = vsub.f32 %v3093, %v3103
          %v3106 = vmul.f32 %v3104, %v3104
          %v3107 = vmul.f32 %v3105, %v3105
          %v3108 = vsel %vm1021, %v3106, 0.0
          %3109 = vadd.xlane.f32.xlu0 %v3108
          %v3110 = vpop.xlane.xlu0 %3109
          %v3111 = vsel %vm1021, %v3107, 0.0
          %3112 = vadd.xlane.f32.xlu0 %v3111
          %v3113 = vpop.xlane.xlu0 %3112
          %v3114 = vmul.f32 %v3110, %v1032
          %v3115 = vmul.f32 %v3113, %v1032
          %v3116 = vadd.f32 %v3114, 1e-05
          %v3117 = vadd.f32 %v3115, 1e-05
          %v3118 = vrsqrt.pop %v3116
          %v3119 = vrsqrt.pop %v3117
          %v3120 = vmul.f32 %v3104, %v3118
          %v3121 = vmul.f32 %v3105, %v3119
          %v3123 = vlaneseq
          %v3124 = vshrl.u32 %v3123, 7
          %v3125 = vsub.s32 0, %v3124
          %v3126 = vrot.slane %v3094, %v3125
          %v3128 = vmul.f32 %v3120, %v3126
          %v3129 = vmul.f32 %v3121, %v3126
          %v3131 = vlaneseq
          %v3132 = vshrl.u32 %v3131, 7
          %v3133 = vsub.s32 0, %v3132
          %v3134 = vrot.slane %v3095, %v3133
          %v3136 = vadd.f32 %v3128, %v3134
          %v3137 = vadd.f32 %v3129, %v3134
          %v3138 = vpack.c.bf16 %v3137, %v3136
          %v3139 = vld [vmem:[%s18] sm:$0xf]
          %v3140 = vld [vmem:[%s18 + $0x4] sm:$0xf]
          %v3141 = vld [vmem:[%s18 + $0x8] sm:$0xf]
          %v3142 = vld [vmem:[%s18 + $0xc] sm:$0xf]
          %v3147 = vunpack.c.l.b16 %v3139
          %v3148 = vunpack.c.l.b16 %v3140
          %v3149 = vunpack.c.l.b16 %v3141
          %v3150 = vunpack.c.l.b16 %v3142
          %v3151 = vpack.c.b16 %v3148, %v3147
          %v3152 = vpack.c.b16 %v3150, %v3149
          %v3156 = vsel %vm1021, %v3138, 0
          %3158 = vmatprep.subr.bf16.mxu0 0
          %3159 = vmatpush1.bf16.msra.mxu0 %v3151
          %3160 = vmatprep.subr.bf16.mxu0 0
          %3161 = vmatpush1.bf16.msra.mxu0 %v3152
          %3162 = vmatprep.subr.bf16.mxu0 0
          %3163 = vmatpush1.bf16.msra.mxu0 0
          %3164 = vmatprep.subr.bf16.mxu0 0
          %3165 = vmatpush1.bf16.msra.mxu0 0
          %3166 = vmatprep.subr.bf16.mxu0 0
          %3167 = vmatpush1.bf16.msra.mxu0 0
          %3168 = vmatprep.subr.bf16.mxu0 0
          %3169 = vmatpush1.bf16.msra.mxu0 0
          %3170 = vmatprep.subr.bf16.mxu0 0
          %3171 = vmatpush1.bf16.msra.mxu0 0
          %3172 = vmatprep.subr.bf16.mxu0 0
          %3173 = vmatpush1.bf16.msra.mxu0 0
          %3174 = vmatprep.subr.bf16.mxu0 0
          %3175 = vmatpush1.bf16.msra.mxu0 0
          %3176 = vmatprep.subr.bf16.mxu0 0
          %3177 = vmatpush1.bf16.msra.mxu0 0
          %3178 = vmatprep.subr.bf16.mxu0 0
          %3179 = vmatpush1.bf16.msra.mxu0 0
          %3180 = vmatprep.subr.bf16.mxu0 0
          %3181 = vmatpush1.bf16.msra.mxu0 0
          %3182 = vmatprep.subr.bf16.mxu0 0
          %3183 = vmatpush1.bf16.msra.mxu0 0
          %3184 = vmatprep.subr.bf16.mxu0 0
          %3185 = vmatpush1.bf16.msra.mxu0 0
          %3186 = vmatprep.subr.bf16.mxu0 0
          %3187 = vmatpush1.bf16.msra.mxu0 0
          %3188 = vmatprep.subr.bf16.mxu0 0
          %3189 = vmatpush1.bf16.msra.mxu0 0
          %3190 = vmatprep.mubr.bf16.mxu0 0
          %3191 = vmatmul.mubr.bf16.gmra.mrb[0].mxu0 %v3156
          %v3192 = vpop.f32.mrb[0].mxu0
          %v3193 = vadd.f32 0.0, %v3192
          %v3194 = vpop.f32.mrb[0].mxu0
          %v3195 = vpop.f32.mrb[0].mxu0
          %v3196 = vadd.f32 0.0, %v3195
          %v3197 = vpop.f32.mrb[0].mxu0
          %3198 = vdwg.mxu0
          %3199 = vst.msk [vmem:[#allocation23] sm:$0xff] %vm1224, %v3193
          %3200 = vst.msk [vmem:[#allocation23 + $0x8] sm:$0xff] %vm1224, %v3196
        $region140: #{tpu_custom_call.1} parent=95 // pred_fallthru
          _
        // Predicated region
        $region141: #{tpu_custom_call.1} parent=95 // pred_check
          %p3201 = pneg %p537
        $region142: #{tpu_custom_call.1} parent=95 // pred_check_branch
          %3203 = sbr.rel (%p3201) target = $region144
        $region143: #{tpu_custom_call.1} parent=95 // pred_region
          %s3204 = smul.u32 2, %s52
          %s3206 = ssub.s32 256, 256
          %3207 = vsyncadd [#allocation10], %s3206
          %s3208 = smul.addr %s3204, 128
          %s3209 = scalar_lea.hbm %s19, %s3208
          %s3210 = sshll.u32 [#allocation23], 4
          %s3211 = int_to_ptr.vmem [resolvable:$true] %s3210
          %3216 = dma.vmem_to_hbm [thread:$0]  %s3211, 256, %s3209, [#allocation10], 128, 128, 8
        $region144: #{tpu_custom_call.1} parent=95 // pred_fallthru
          _
        // Predicated region
        $region145: #{tpu_custom_call.1} parent=95 // pred_check
          %p3217 = pneg %p563
        $region146: #{tpu_custom_call.1} parent=95 // pred_check_branch
          %3219 = sbr.rel (%p3217) target = $region148
        $region147: #{tpu_custom_call.1} parent=95 // pred_region
          %s3220 = smul.u32 2, %s52
          %s3222 = ssub.s32 256, 256
          %3223 = vsyncadd [#allocation25], %s3222
          %s3224 = smul.addr %s3220, 128
          %s3225 = scalar_lea.hbm %s20, %s3224
          %s3226 = sshll.u32 [#allocation24], 4
          %s3227 = int_to_ptr.vmem [resolvable:$true] %s3226
          %3232 = dma.vmem_to_hbm [thread:$0]  %s3227, 256, %s3225, [#allocation25], 128, 128, 8
        $region148: #{tpu_custom_call.1} parent=95 // pred_fallthru
          _
        // Predicated region
        $region149: #{tpu_custom_call.1} parent=95 // pred_check
          %p3233 = pneg %p589
        $region150: #{tpu_custom_call.1} parent=95 // pred_check_branch
          %3235 = sbr.rel (%p3233) target = $region152
        $region151: #{tpu_custom_call.1} parent=95 // pred_region
          %s3236 = smul.u32 2, %s52
          %s3238 = ssub.s32 32, 32
          %3239 = vsyncadd [#allocation25], %s3238
          %s3240 = smul.addr %s3236, 16
          %s3241 = scalar_lea.hbm %s21, %s3240
          %s3242 = sshll.u32 [#allocation26], 4
          %s3243 = int_to_ptr.vmem [resolvable:$true] %s3242
          %3248 = dma.vmem_to_hbm [thread:$0]  %s3243, 32, %s3241, [#allocation25], 16, 16, 1
        $region152: #{tpu_custom_call.1} parent=95 // pred_fallthru
          _
        // Predicated region
        $region153: #{tpu_custom_call.1} parent=95 // pred_check
          %p3249 = pneg %p537
        $region154: #{tpu_custom_call.1} parent=95 // pred_check_branch
          %3251 = sbr.rel (%p3249) target = $region156
        $region155: #{tpu_custom_call.1} parent=95 // pred_region
          %3252 = dma.done [#allocation10], 256
        $region156: #{tpu_custom_call.1} parent=95 // pred_fallthru
          _
        // Predicated region
        $region157: #{tpu_custom_call.1} parent=95 // pred_check
          %p3253 = pneg %p563
        $region158: #{tpu_custom_call.1} parent=95 // pred_check_branch
          %3255 = sbr.rel (%p3253) target = $region160
        $region159: #{tpu_custom_call.1} parent=95 // pred_region
          %3256 = dma.done [#allocation25], 256
        $region160: #{tpu_custom_call.1} parent=95 // pred_fallthru
          _
        // Predicated region
        $region161: #{tpu_custom_call.1} parent=95 // pred_check
          %p3257 = pneg %p589
        $region162: #{tpu_custom_call.1} parent=95 // pred_check_branch
          %3259 = sbr.rel (%p3257) target = $region164
        $region163: #{tpu_custom_call.1} parent=95 // pred_region
          %3260 = dma.done [#allocation25], 32
        $region164: #{tpu_custom_call.1} parent=95 // pred_fallthru
          _
      $region96: #{tpu_custom_call.1} parent=5 // pred_fallthru
        _
      %p3261 = scmp.le.s32.totalorder 2, %s43
      // Predicated region
      $region165: #{tpu_custom_call.1} parent=5 // pred_check
        %p3262 = pneg %p3261
      $region166: #{tpu_custom_call.1} parent=5 // pred_check_branch
        %3264 = sbr.rel (%p3262) target = $region168
      $region167: #{tpu_custom_call.1} parent=5 // pred_region
        %s3265 = ssub.s32 %s43, 2
      $region168: #{tpu_custom_call.1} parent=5 // pred_fallthru
        _
    $region6: #{tpu_custom_call.1} parent=1 // loop_footer
      %s47 = sadd.s32 1, %s43
    $region7: #{tpu_custom_call.1} parent=1 // loop_footer_branch
      %42 = sbr.rel target = $region3
    $region8: #{tpu_custom_call.1} parent=1 // loop_exit
      _
    %3266 = vsyncpa [#allocation9], 1
    %s3267 = scalar_lea.sflag [#allocation9], 1
    %3268 = vsyncpa %s3267, 1
    %3269 = vsyncpa [#allocation12], 1
    %s3270 = scalar_lea.sflag [#allocation12], 1
    %3271 = vsyncpa %s3270, 1
    %3272 = vsyncpa [#allocation15], 1
    %s3273 = scalar_lea.sflag [#allocation15], 1
    %3274 = vsyncpa %s3273, 1
    %3275 = vsyncpa [#allocation18], 1
    %s3276 = scalar_lea.sflag [#allocation18], 1
    %3277 = vsyncpa %s3276, 1
    %3278 = vsyncpa [#allocation21], 1
    %s3279 = scalar_lea.sflag [#allocation21], 1
    %3280 = vsyncpa %s3279, 1
    %3281 = vsyncpa [#allocation10], 1
    %s3282 = scalar_lea.sflag [#allocation10], 1
    %3283 = vsyncpa %s3282, 1
    %3284 = vsyncpa [#allocation25], 1

</llo_original>
